<compile_context>
chip_gen: v6e
topology: v6e:2x2x1
jax: 0.10.0
libtpu: 0.0.40
codegen_flags: <defaults>
</compile_context>

<pallas_src>
import functools

import jax
import jax.numpy as jnp
from jax.experimental import pallas as pl
from jax.experimental.pallas import tpu as pltpu


# A @ B.T : contract the last dim of both operands (standard Mosaic pattern).
_NT_DIMS = (((1,), (1,)), ((), ()))


# ----------------------------------------------------------------------------
# Fused ASPP kernel (one grid step == b_blk batch samples)
# ----------------------------------------------------------------------------
def _aspp_kernel(x_ref, wcat_ref, w4_ref, wpmt_ref, wppt_ref,
                 sbm_ref, sbp_ref, sbj_ref,
                 o_ref, stage_ref, *, h, w, offsets, b_blk):
    f32 = jnp.float32
    hw = h * w
    c = x_ref.shape[-1]
    ktot = stage_ref.shape[-1]

    # ---- deduplicated, fused im2col into a zeroed VMEM staging buffer ------
    # The memset provides the conv's zero padding (out-of-image parts of the
    # shifted windows) and zeros the K-alignment padding columns.
    stage_ref[...] = jnp.zeros(stage_ref.shape, stage_ref.dtype)
    for s in range(b_blk):
        for k, (oy, ox) in enumerate(offsets):
            y0, y1 = max(0, -oy), min(h, h - oy)
            x0, x1 = max(0, -ox), min(w, w - ox)
            stage_ref[s, y0:y1, x0:x1, k * c:(k + 1) * c] = (
                x_ref[s, y0 + oy:y1 + oy, x0 + ox:x1 + ox, :])

    # ---- branches 0-3 (1x1 conv + three atrous 3x3 convs): one wide GEMM ---
    lhs = stage_ref[...].reshape(b_blk * hw, ktot)                   # bf16
    acc = jnp.dot(lhs, wcat_ref[...], preferred_element_type=f32)    # (M, 4D)
    # Per-branch folded BatchNorm + ReLU (f32 epilogue).
    y_main = jnp.maximum(acc * sbm_ref[0:1, :] + sbm_ref[1:2, :], 0.0)
    y_main = y_main.astype(jnp.bfloat16)

    # ---- 1x1 projection of the conv branches, produced channel-major -------
    # (D, M) = Wp_main^T (D, 4D) contracted with y_main (M, 4D); the channel
    # concat is never materialised and no output transpose is required.
    proj_t = jax.lax.dot_general(wpmt_ref[...], y_main, _NT_DIMS,
                                 preferred_element_type=f32)         # (D, M)

    for s in range(b_blk):
        # Global-average-pool branch: 1x1 conv + BN + ReLU on the pooled
        # vector.  Bilinear upsample of a 1x1 map with align_corners=True is a
        # broadcast, so its projection is a constant column added everywhere.
        pooled = jnp.mean(x_ref[s].astype(f32).reshape(hw, c),
                          axis=0, keepdims=True)                     # (1, C)
        y4 = jnp.maximum(
            jnp.dot(pooled.astype(x_ref.dtype), w4_ref[...],
                    preferred_element_type=f32)
            * sbp_ref[0:1, :] + sbp_ref[1:2, :], 0.0)                # (1, D)
        pool_col = jax.lax.dot_general(wppt_ref[...], y4, _NT_DIMS,
                                       preferred_element_type=f32)   # (D, 1)

        # Projection BN + ReLU, lane-dense (D, H*W) store.
        out_t = proj_t[:, s * hw:(s + 1) * hw] + pool_col
        out_t = jnp.maximum(out_t * sbj_ref[:, 0:1] + sbj_ref[:, 1:2], 0.0)
        # TODO(synk): nn.Dropout2d(0.5) is identity in eval mode; not applied.
        o_ref[s] = out_t


def _round_up(x, m):
    return ((x + m - 1) // m) * m


def _pick_batch_block(n):
    """Samples per grid step: amortize per-step overhead but keep >=2 steps
    (v7x has 2 TensorCores)."""
    if n <= 2:
        return 1
    for b in range(n // 2, 0, -1):
        if n % b == 0:
            return b
    return 1


# ----------------------------------------------------------------------------
# Host wrapper
# ----------------------------------------------------------------------------
def aspp_forward(params, x_nchw, atrous_rates=(6, 12, 18)):
    rates = tuple(atrous_rates)
    n, c, h, w = x_nchw.shape
    d = params["w0"].shape[0]
    hw = h * w

    # bf16 before the layout change halves the HBM traffic of the transpose.
    x = jnp.transpose(x_nchw.astype(jnp.bfloat16), (0, 2, 3, 1))  # NCHW->NHWC

    # ---- fold BatchNorm (eval mode) ----------------------------------------
    def fold_bn(bn, eps=1e-5):
        gamma, beta, mean, var = bn
        s = gamma / jnp.sqrt(var + eps)
        return s, beta - mean * s

    s0, b0 = fold_bn(params["bn0"])
    s1, b1 = fold_bn(params["bn1"])
    s2, b2 = fold_bn(params["bn2"])
    s3, b3 = fold_bn(params["bn3"])
    s4, b4 = fold_bn(params["bn4"])
    sp, bp = fold_bn(params["bnp"])
    sb_main = jnp.stack([jnp.concatenate([s0, s1, s2, s3]),
                         jnp.concatenate([b0, b1, b2, b3])]).astype(jnp.float32)
    sb_pool = jnp.stack([s4, b4]).astype(jnp.float32)             # (2, D)
    sbj = jnp.stack([sp, bp], axis=1).astype(jnp.float32)         # (D, 2) cols

    # ---- static tap collection: skip all-zero taps, dedup offsets ----------
    offsets = {(0, 0): 0}
    taps = [((0, 0), 0, None)]                                    # branch 0: 1x1
    for b_idx, rate in enumerate(rates, start=1):
        for ky in range(3):
            for kx in range(3):
                oy, ox = rate * (ky - 1), rate * (kx - 1)
                if abs(oy) < h and abs(ox) < w:     # else window is all zeros
                    if (oy, ox) not in offsets:
                        offsets[(oy, ox)] = len(offsets)
                    taps.append(((oy, ox), b_idx, (ky, kx)))
    off_list = tuple(offsets.keys())
    ktot = _round_up(len(off_list) * c, 128)        # lane-aligned GEMM K

    # ---- combined conv weight for branches 0-3: (ktot, 4D) bf16 ------------
    wcat = jnp.zeros((ktot, 4 * d), jnp.float32)
    for off, b_idx, k_idx in taps:
        k = offsets[off]
        if b_idx == 0:
            w_cd = jnp.transpose(params["w0"].reshape(d, c))            # (C,D)
        else:
            ky, kx = k_idx
            w_cd = jnp.transpose(params[f"w{b_idx}"][:, :, ky, kx])     # (C,D)
        wcat = wcat.at[k * c:(k + 1) * c, b_idx * d:(b_idx + 1) * d].set(w_cd)
    wcat = wcat.astype(jnp.bfloat16)

    w4 = jnp.transpose(params["w4"].reshape(d, c)).astype(jnp.bfloat16)  # (C,D)
    wp = jnp.transpose(params["wproj"].reshape(d, 5 * d))                # (5D,D)
    wpm_t = jnp.transpose(wp[:4 * d, :]).astype(jnp.bfloat16)            # (D,4D)
    wpp_t = jnp.transpose(wp[4 * d:, :]).astype(jnp.float32)             # (D,D)

    b_blk = _pick_batch_block(n)
    grid = (n // b_blk,)

    kernel = functools.partial(_aspp_kernel, h=h, w=w, offsets=off_list,
                               b_blk=b_blk)

    def bcast(arr):
        return pl.BlockSpec(arr.shape, lambda i, nd=arr.ndim: (0,) * nd)

    flops = n * (2 * hw * ktot * 4 * d      # main GEMM
                 + 2 * hw * 4 * d * d       # projection GEMM
                 + 2 * c * d + 2 * d * d    # pool branch
                 + hw * c)                  # pooling reduction
    bytes_accessed = (x.size * 2 + n * d * hw * 4
                      + wcat.size * 2 + w4.size * 2 + wpm_t.size * 2
                      + wpp_t.size * 4
                      + (sb_main.size + sb_pool.size + sbj.size) * 4)

    out = pl.pallas_call(
        kernel,
        out_shape=jax.ShapeDtypeStruct((n, d, hw), jnp.float32),
        grid=grid,
        in_specs=[
            pl.BlockSpec((b_blk, h, w, c), lambda i: (i, 0, 0, 0)),
            bcast(wcat), bcast(w4), bcast(wpm_t), bcast(wpp_t),
            bcast(sb_main), bcast(sb_pool), bcast(sbj),
        ],
        out_specs=pl.BlockSpec((b_blk, d, hw), lambda i: (i, 0, 0)),
        scratch_shapes=[pltpu.VMEM((b_blk, h, w, ktot), jnp.bfloat16)],
        compiler_params=pltpu.CompilerParams(
            dimension_semantics=("parallel",)),
        cost_estimate=pl.CostEstimate(flops=int(flops), transcendentals=0,
                                      bytes_accessed=int(bytes_accessed)),
    )(x, wcat, w4, wpm_t, wpp_t, sb_main, sb_pool, sbj)

    # Channel-major (N, D, H*W) -> NCHW is a pure reshape (no HBM transpose).
    return out.reshape(n, d, h, w)


# ----------------------------------------------------------------------------
# Pure-JAX f32 reference (correctness check)
# ----------------------------------------------------------------------------
def _conv(x, w, *, padding=0, dilation=1):
    return jax.lax.conv_general_dilated(
        x, w, window_strides=(1, 1),
        padding=[(padding, padding), (padding, padding)],
        rhs_dilation=(dilation, dilation),
        dimension_numbers=("NCHW", "OIHW", "NCHW"))


def _bn_relu(x, bn, eps=1e-5):
    gamma, beta, mean, var = bn
    scale = (gamma / jnp.sqrt(var + eps)).reshape(1, -1, 1, 1)
    bias = (beta - mean * gamma / jnp.sqrt(var + eps)).reshape(1, -1, 1, 1)
    return jnp.maximum(x * scale + bias, 0.0)


def aspp_reference(params, x, rates=(6, 12, 18)):
    x = x.astype(jnp.float32)
    b0 = _bn_relu(_conv(x, params["w0"]), params["bn0"])
    b1 = _bn_relu(_conv(x, params["w1"], padding=rates[0], dilation=rates[0]),
                  params["bn1"])
    b2 = _bn_relu(_conv(x, params["w2"], padding=rates[1], dilation=rates[1]),
                  params["bn2"])
    b3 = _bn_relu(_conv(x, params["w3"], padding=rates[2], dilation=rates[2]),
                  params["bn3"])
    pooled = jnp.mean(x, axis=(2, 3), keepdims=True)
    b4 = _bn_relu(_conv(pooled, params["w4"]), params["bn4"])
    b4 = jnp.broadcast_to(b4, b0.shape)  # bilinear upsample of a 1x1 map
    cat = jnp.concatenate([b0, b1, b2, b3, b4], axis=1)
    return _bn_relu(_conv(cat, params["wproj"]), params["bnp"])


# ----------------------------------------------------------------------------
# Deterministic synthetic parameters
# ----------------------------------------------------------------------------
def init_params(key, in_dim=64):
    out_dim = in_dim // 8
    keys = iter(jax.random.split(key, 64))

    def conv_w(o, i, k):
        fan_in = i * k * k
        return (jax.random.normal(next(keys), (o, i, k, k), jnp.float32)
                * jnp.sqrt(2.0 / fan_in))

    def bn(ch):
        gamma = 1.0 + 0.05 * jax.random.normal(next(keys), (ch,), jnp.float32)
        beta = 0.05 * jax.random.normal(next(keys), (ch,), jnp.float32)
        mean = 0.05 * jax.random.normal(next(keys), (ch,), jnp.float32)
        var = 1.0 + 0.1 * jax.random.uniform(next(keys), (ch,), jnp.float32)
        return gamma, beta, mean, var

    return {
        "w0": conv_w(out_dim, in_dim, 1), "bn0": bn(out_dim),
        "w1": conv_w(out_dim, in_dim, 3), "bn1": bn(out_dim),
        "w2": conv_w(out_dim, in_dim, 3), "bn2": bn(out_dim),
        "w3": conv_w(out_dim, in_dim, 3), "bn3": bn(out_dim),
        "w4": conv_w(out_dim, in_dim, 1), "bn4": bn(out_dim),
        "wproj": conv_w(out_dim, 5 * out_dim, 1), "bnp": bn(out_dim),
    }


if __name__ == "__main__":
    key = jax.random.PRNGKey(0)
    pkey, xkey, xkey2 = jax.random.split(key, 3)

    in_dim = 64
    params = init_params(pkey, in_dim=in_dim)
    fwd = jax.jit(aspp_forward)

    # Test 1: small spatial (rate-18/12 windows mostly in the zero halo).
    x_a = jax.random.normal(xkey, (2, in_dim, 16, 16), jnp.float32)
    out_a = fwd(params, x_a)
    jax.block_until_ready(out_a)
    assert out_a.shape == (2, in_dim // 8, 16, 16)
    err_a = float(jnp.max(jnp.abs(out_a - aspp_reference(params, x_a))))
    assert err_a < 1e-1, f"test1 max abs error too large: {err_a}"

    # Test 2: larger spatial so every atrous tap intersects the image
    # (exercises the valid-rectangle / zero-halo staging logic).
    x_b = jax.random.normal(xkey2, (2, in_dim, 32, 32), jnp.float32)
    out_b = fwd(params, x_b)
    jax.block_until_ready(out_b)
    assert out_b.shape == (2, in_dim // 8, 32, 32)
    err_b = float(jnp.max(jnp.abs(out_b - aspp_reference(params, x_b))))
    assert err_b < 1e-1, f"test2 max abs error too large: {err_b}"

    print("KERNEL_OK")
</pallas_src>

<mosaic_0001>
module attributes {stable_mosaic.version = 11 : i64} {
  func.func @_aspp_kernel(%arg0: i32, %arg1: memref<1x16x16x64xbf16, #tpu.memory_space<vmem>>, %arg2: memref<1152x32xbf16, #tpu.memory_space<vmem>>, %arg3: memref<64x8xbf16, #tpu.memory_space<vmem>>, %arg4: memref<8x32xbf16, #tpu.memory_space<vmem>>, %arg5: memref<8x8xf32, #tpu.memory_space<vmem>>, %arg6: memref<2x32xf32, #tpu.memory_space<vmem>>, %arg7: memref<2x8xf32, #tpu.memory_space<vmem>>, %arg8: memref<8x2xf32, #tpu.memory_space<vmem>>, %arg9: memref<1x8x256xf32, #tpu.memory_space<vmem>>, %arg10: memref<1x16x16x1152xbf16, #tpu.memory_space<vmem>>) attributes {dimension_semantics = [#tpu.dimension_semantics<parallel>], iteration_bounds = array<i64: 2>, scalar_prefetch = 0 : i64, scratch_operands = 1 : i64, tpu.core_type = #tpu.core_type<tc>, window_params = [{transform_indices = @transform_0, window_bounds = array<i64: 1, 16, 16, 64>}, {pipeline_mode = #tpu.pipeline_mode<synchronous>, transform_indices = @transform_1, window_bounds = array<i64: 1152, 32>}, {pipeline_mode = #tpu.pipeline_mode<synchronous>, transform_indices = @transform_2, window_bounds = array<i64: 64, 8>}, {pipeline_mode = #tpu.pipeline_mode<synchronous>, transform_indices = @transform_3, window_bounds = array<i64: 8, 32>}, {pipeline_mode = #tpu.pipeline_mode<synchronous>, transform_indices = @transform_4, window_bounds = array<i64: 8, 8>}, {pipeline_mode = #tpu.pipeline_mode<synchronous>, transform_indices = @transform_5, window_bounds = array<i64: 2, 32>}, {pipeline_mode = #tpu.pipeline_mode<synchronous>, transform_indices = @transform_6, window_bounds = array<i64: 2, 8>}, {pipeline_mode = #tpu.pipeline_mode<synchronous>, transform_indices = @transform_7, window_bounds = array<i64: 8, 2>}, {transform_indices = @transform_8, window_bounds = array<i64: 1, 8, 256>}]} {
    %cst = arith.constant 0.000000e+00 : bf16
    %0 = vector.broadcast %cst : bf16 to vector<1x16x16x1152xbf16>
    %c0 = arith.constant 0 : index
    %c0_0 = arith.constant 0 : index
    %c0_1 = arith.constant 0 : index
    %c0_2 = arith.constant 0 : index
    %1 = vector.load %arg10[%c0, %c0_0, %c0_1, %c0_2] : memref<1x16x16x1152xbf16, #tpu.memory_space<vmem>>, vector<1x16x16x1152xbf16>
    tpu.vector_store %arg10[%c0, %c0_0, %c0_1, %c0_2], %0 {strides = array<i32>} : memref<1x16x16x1152xbf16, #tpu.memory_space<vmem>>, vector<1x16x16x1152xbf16>,
    %c0_3 = arith.constant 0 : index
    %c0_4 = arith.constant 0 : index
    %c0_5 = arith.constant 0 : index
    %c0_6 = arith.constant 0 : index
    %2 = vector.load %arg1[%c0_3, %c0_4, %c0_5, %c0_6] : memref<1x16x16x64xbf16, #tpu.memory_space<vmem>>, vector<1x16x16x64xbf16>
    %3 = vector.shape_cast %2 : vector<1x16x16x64xbf16> to vector<16x16x64xbf16>
    %c0_7 = arith.constant 0 : index
    %c0_8 = arith.constant 0 : index
    %c0_9 = arith.constant 0 : index
    %c0_10 = arith.constant 0 : index
    %4 = vector.load %arg10[%c0_7, %c0_8, %c0_9, %c0_10] : memref<1x16x16x1152xbf16, #tpu.memory_space<vmem>>, vector<1x16x16x64xbf16>
    %5 = vector.shape_cast %4 : vector<1x16x16x64xbf16> to vector<16x16x64xbf16>
    %6 = vector.shape_cast %3 : vector<16x16x64xbf16> to vector<1x16x16x64xbf16>
    tpu.vector_store %arg10[%c0_7, %c0_8, %c0_9, %c0_10], %6 {strides = array<i32>} : memref<1x16x16x1152xbf16, #tpu.memory_space<vmem>>, vector<1x16x16x64xbf16>,
    %c0_11 = arith.constant 0 : index
    %c0_12 = arith.constant 0 : index
    %c0_13 = arith.constant 0 : index
    %c0_14 = arith.constant 0 : index
    %7 = vector.load %arg1[%c0_11, %c0_12, %c0_13, %c0_14] : memref<1x16x16x64xbf16, #tpu.memory_space<vmem>>, vector<1x10x10x64xbf16>
    %8 = vector.shape_cast %7 : vector<1x10x10x64xbf16> to vector<10x10x64xbf16>
    %c0_15 = arith.constant 0 : index
    %c6 = arith.constant 6 : index
    %c6_16 = arith.constant 6 : index
    %c64 = arith.constant 64 : index
    %9 = vector.load %arg10[%c0_15, %c6, %c6_16, %c64] : memref<1x16x16x1152xbf16, #tpu.memory_space<vmem>>, vector<1x10x10x64xbf16>
    %10 = vector.shape_cast %9 : vector<1x10x10x64xbf16> to vector<10x10x64xbf16>
    %11 = vector.shape_cast %8 : vector<10x10x64xbf16> to vector<1x10x10x64xbf16>
    tpu.vector_store %arg10[%c0_15, %c6, %c6_16, %c64], %11 {strides = array<i32>} : memref<1x16x16x1152xbf16, #tpu.memory_space<vmem>>, vector<1x10x10x64xbf16>,
    %c0_17 = arith.constant 0 : index
    %c0_18 = arith.constant 0 : index
    %c0_19 = arith.constant 0 : index
    %c0_20 = arith.constant 0 : index
    %12 = vector.load %arg1[%c0_17, %c0_18, %c0_19, %c0_20] : memref<1x16x16x64xbf16, #tpu.memory_space<vmem>>, vector<1x10x16x64xbf16>
    %13 = vector.shape_cast %12 : vector<1x10x16x64xbf16> to vector<10x16x64xbf16>
    %c0_21 = arith.constant 0 : index
    %c6_22 = arith.constant 6 : index
    %c0_23 = arith.constant 0 : index
    %c128 = arith.constant 128 : index
    %14 = vector.load %arg10[%c0_21, %c6_22, %c0_23, %c128] : memref<1x16x16x1152xbf16, #tpu.memory_space<vmem>>, vector<1x10x16x64xbf16>
    %15 = vector.shape_cast %14 : vector<1x10x16x64xbf16> to vector<10x16x64xbf16>
    %16 = vector.shape_cast %13 : vector<10x16x64xbf16> to vector<1x10x16x64xbf16>
    tpu.vector_store %arg10[%c0_21, %c6_22, %c0_23, %c128], %16 {strides = array<i32>} : memref<1x16x16x1152xbf16, #tpu.memory_space<vmem>>, vector<1x10x16x64xbf16>,
    %c0_24 = arith.constant 0 : index
    %c0_25 = arith.constant 0 : index
    %c6_26 = arith.constant 6 : index
    %c0_27 = arith.constant 0 : index
    %17 = vector.load %arg1[%c0_24, %c0_25, %c6_26, %c0_27] : memref<1x16x16x64xbf16, #tpu.memory_space<vmem>>, vector<1x10x10x64xbf16>
    %18 = vector.shape_cast %17 : vector<1x10x10x64xbf16> to vector<10x10x64xbf16>
    %c0_28 = arith.constant 0 : index
    %c6_29 = arith.constant 6 : index
    %c0_30 = arith.constant 0 : index
    %c192 = arith.constant 192 : index
    %19 = vector.load %arg10[%c0_28, %c6_29, %c0_30, %c192] : memref<1x16x16x1152xbf16, #tpu.memory_space<vmem>>, vector<1x10x10x64xbf16>
    %20 = vector.shape_cast %19 : vector<1x10x10x64xbf16> to vector<10x10x64xbf16>
    %21 = vector.shape_cast %18 : vector<10x10x64xbf16> to vector<1x10x10x64xbf16>
    tpu.vector_store %arg10[%c0_28, %c6_29, %c0_30, %c192], %21 {strides = array<i32>} : memref<1x16x16x1152xbf16, #tpu.memory_space<vmem>>, vector<1x10x10x64xbf16>,
    %c0_31 = arith.constant 0 : index
    %c0_32 = arith.constant 0 : index
    %c0_33 = arith.constant 0 : index
    %c0_34 = arith.constant 0 : index
    %22 = vector.load %arg1[%c0_31, %c0_32, %c0_33, %c0_34] : memref<1x16x16x64xbf16, #tpu.memory_space<vmem>>, vector<1x16x10x64xbf16>
    %23 = vector.shape_cast %22 : vector<1x16x10x64xbf16> to vector<16x10x64xbf16>
    %c0_35 = arith.constant 0 : index
    %c0_36 = arith.constant 0 : index
    %c6_37 = arith.constant 6 : index
    %c256 = arith.constant 256 : index
    %24 = vector.load %arg10[%c0_35, %c0_36, %c6_37, %c256] : memref<1x16x16x1152xbf16, #tpu.memory_space<vmem>>, vector<1x16x10x64xbf16>
    %25 = vector.shape_cast %24 : vector<1x16x10x64xbf16> to vector<16x10x64xbf16>
    %26 = vector.shape_cast %23 : vector<16x10x64xbf16> to vector<1x16x10x64xbf16>
    tpu.vector_store %arg10[%c0_35, %c0_36, %c6_37, %c256], %26 {strides = array<i32>} : memref<1x16x16x1152xbf16, #tpu.memory_space<vmem>>, vector<1x16x10x64xbf16>,
    %c0_38 = arith.constant 0 : index
    %c0_39 = arith.constant 0 : index
    %c6_40 = arith.constant 6 : index
    %c0_41 = arith.constant 0 : index
    %27 = vector.load %arg1[%c0_38, %c0_39, %c6_40, %c0_41] : memref<1x16x16x64xbf16, #tpu.memory_space<vmem>>, vector<1x16x10x64xbf16>
    %28 = vector.shape_cast %27 : vector<1x16x10x64xbf16> to vector<16x10x64xbf16>
    %c0_42 = arith.constant 0 : index
    %c0_43 = arith.constant 0 : index
    %c0_44 = arith.constant 0 : index
    %c320 = arith.constant 320 : index
    %29 = vector.load %arg10[%c0_42, %c0_43, %c0_44, %c320] : memref<1x16x16x1152xbf16, #tpu.memory_space<vmem>>, vector<1x16x10x64xbf16>
    %30 = vector.shape_cast %29 : vector<1x16x10x64xbf16> to vector<16x10x64xbf16>
    %31 = vector.shape_cast %28 : vector<16x10x64xbf16> to vector<1x16x10x64xbf16>
    tpu.vector_store %arg10[%c0_42, %c0_43, %c0_44, %c320], %31 {strides = array<i32>} : memref<1x16x16x1152xbf16, #tpu.memory_space<vmem>>, vector<1x16x10x64xbf16>,
    %c0_45 = arith.constant 0 : index
    %c6_46 = arith.constant 6 : index
    %c0_47 = arith.constant 0 : index
    %c0_48 = arith.constant 0 : index
    %32 = vector.load %arg1[%c0_45, %c6_46, %c0_47, %c0_48] : memref<1x16x16x64xbf16, #tpu.memory_space<vmem>>, vector<1x10x10x64xbf16>
    %33 = vector.shape_cast %32 : vector<1x10x10x64xbf16> to vector<10x10x64xbf16>
    %c0_49 = arith.constant 0 : index
    %c0_50 = arith.constant 0 : index
    %c6_51 = arith.constant 6 : index
    %c384 = arith.constant 384 : index
    %34 = vector.load %arg10[%c0_49, %c0_50, %c6_51, %c384] : memref<1x16x16x1152xbf16, #tpu.memory_space<vmem>>, vector<1x10x10x64xbf16>
    %35 = vector.shape_cast %34 : vector<1x10x10x64xbf16> to vector<10x10x64xbf16>
    %36 = vector.shape_cast %33 : vector<10x10x64xbf16> to vector<1x10x10x64xbf16>
    tpu.vector_store %arg10[%c0_49, %c0_50, %c6_51, %c384], %36 {strides = array<i32>} : memref<1x16x16x1152xbf16, #tpu.memory_space<vmem>>, vector<1x10x10x64xbf16>,
    %c0_52 = arith.constant 0 : index
    %c6_53 = arith.constant 6 : index
    %c0_54 = arith.constant 0 : index
    %c0_55 = arith.constant 0 : index
    %37 = vector.load %arg1[%c0_52, %c6_53, %c0_54, %c0_55] : memref<1x16x16x64xbf16, #tpu.memory_space<vmem>>, vector<1x10x16x64xbf16>
    %38 = vector.shape_cast %37 : vector<1x10x16x64xbf16> to vector<10x16x64xbf16>
    %c0_56 = arith.constant 0 : index
    %c0_57 = arith.constant 0 : index
    %c0_58 = arith.constant 0 : index
    %c448 = arith.constant 448 : index
    %39 = vector.load %arg10[%c0_56, %c0_57, %c0_58, %c448] : memref<1x16x16x1152xbf16, #tpu.memory_space<vmem>>, vector<1x10x16x64xbf16>
    %40 = vector.shape_cast %39 : vector<1x10x16x64xbf16> to vector<10x16x64xbf16>
    %41 = vector.shape_cast %38 : vector<10x16x64xbf16> to vector<1x10x16x64xbf16>
    tpu.vector_store %arg10[%c0_56, %c0_57, %c0_58, %c448], %41 {strides = array<i32>} : memref<1x16x16x1152xbf16, #tpu.memory_space<vmem>>, vector<1x10x16x64xbf16>,
    %c0_59 = arith.constant 0 : index
    %c6_60 = arith.constant 6 : index
    %c6_61 = arith.constant 6 : index
    %c0_62 = arith.constant 0 : index
    %42 = vector.load %arg1[%c0_59, %c6_60, %c6_61, %c0_62] : memref<1x16x16x64xbf16, #tpu.memory_space<vmem>>, vector<1x10x10x64xbf16>
    %43 = vector.shape_cast %42 : vector<1x10x10x64xbf16> to vector<10x10x64xbf16>
    %c0_63 = arith.constant 0 : index
    %c0_64 = arith.constant 0 : index
    %c0_65 = arith.constant 0 : index
    %c512 = arith.constant 512 : index
    %44 = vector.load %arg10[%c0_63, %c0_64, %c0_65, %c512] : memref<1x16x16x1152xbf16, #tpu.memory_space<vmem>>, vector<1x10x10x64xbf16>
    %45 = vector.shape_cast %44 : vector<1x10x10x64xbf16> to vector<10x10x64xbf16>
    %46 = vector.shape_cast %43 : vector<10x10x64xbf16> to vector<1x10x10x64xbf16>
    tpu.vector_store %arg10[%c0_63, %c0_64, %c0_65, %c512], %46 {strides = array<i32>} : memref<1x16x16x1152xbf16, #tpu.memory_space<vmem>>, vector<1x10x10x64xbf16>,
    %c0_66 = arith.constant 0 : index
    %c0_67 = arith.constant 0 : index
    %c0_68 = arith.constant 0 : index
    %c0_69 = arith.constant 0 : index
    %47 = vector.load %arg1[%c0_66, %c0_67, %c0_68, %c0_69] : memref<1x16x16x64xbf16, #tpu.memory_space<vmem>>, vector<1x4x4x64xbf16>
    %48 = vector.shape_cast %47 : vector<1x4x4x64xbf16> to vector<4x4x64xbf16>
    %c0_70 = arith.constant 0 : index
    %c12 = arith.constant 12 : index
    %c12_71 = arith.constant 12 : index
    %c576 = arith.constant 576 : index
    %49 = vector.load %arg10[%c0_70, %c12, %c12_71, %c576] : memref<1x16x16x1152xbf16, #tpu.memory_space<vmem>>, vector<1x4x4x64xbf16>
    %50 = vector.shape_cast %49 : vector<1x4x4x64xbf16> to vector<4x4x64xbf16>
    %51 = vector.shape_cast %48 : vector<4x4x64xbf16> to vector<1x4x4x64xbf16>
    tpu.vector_store %arg10[%c0_70, %c12, %c12_71, %c576], %51 {strides = array<i32>} : memref<1x16x16x1152xbf16, #tpu.memory_space<vmem>>, vector<1x4x4x64xbf16>,
    %c0_72 = arith.constant 0 : index
    %c0_73 = arith.constant 0 : index
    %c0_74 = arith.constant 0 : index
    %c0_75 = arith.constant 0 : index
    %52 = vector.load %arg1[%c0_72, %c0_73, %c0_74, %c0_75] : memref<1x16x16x64xbf16, #tpu.memory_space<vmem>>, vector<1x4x16x64xbf16>
    %53 = vector.shape_cast %52 : vector<1x4x16x64xbf16> to vector<4x16x64xbf16>
    %c0_76 = arith.constant 0 : index
    %c12_77 = arith.constant 12 : index
    %c0_78 = arith.constant 0 : index
    %c640 = arith.constant 640 : index
    %54 = vector.load %arg10[%c0_76, %c12_77, %c0_78, %c640] : memref<1x16x16x1152xbf16, #tpu.memory_space<vmem>>, vector<1x4x16x64xbf16>
    %55 = vector.shape_cast %54 : vector<1x4x16x64xbf16> to vector<4x16x64xbf16>
    %56 = vector.shape_cast %53 : vector<4x16x64xbf16> to vector<1x4x16x64xbf16>
    tpu.vector_store %arg10[%c0_76, %c12_77, %c0_78, %c640], %56 {strides = array<i32>} : memref<1x16x16x1152xbf16, #tpu.memory_space<vmem>>, vector<1x4x16x64xbf16>,
    %c0_79 = arith.constant 0 : index
    %c0_80 = arith.constant 0 : index
    %c12_81 = arith.constant 12 : index
    %c0_82 = arith.constant 0 : index
    %57 = vector.load %arg1[%c0_79, %c0_80, %c12_81, %c0_82] : memref<1x16x16x64xbf16, #tpu.memory_space<vmem>>, vector<1x4x4x64xbf16>
    %58 = vector.shape_cast %57 : vector<1x4x4x64xbf16> to vector<4x4x64xbf16>
    %c0_83 = arith.constant 0 : index
    %c12_84 = arith.constant 12 : index
    %c0_85 = arith.constant 0 : index
    %c704 = arith.constant 704 : index
    %59 = vector.load %arg10[%c0_83, %c12_84, %c0_85, %c704] : memref<1x16x16x1152xbf16, #tpu.memory_space<vmem>>, vector<1x4x4x64xbf16>
    %60 = vector.shape_cast %59 : vector<1x4x4x64xbf16> to vector<4x4x64xbf16>
    %61 = vector.shape_cast %58 : vector<4x4x64xbf16> to vector<1x4x4x64xbf16>
    tpu.vector_store %arg10[%c0_83, %c12_84, %c0_85, %c704], %61 {strides = array<i32>} : memref<1x16x16x1152xbf16, #tpu.memory_space<vmem>>, vector<1x4x4x64xbf16>,
    %c0_86 = arith.constant 0 : index
    %c0_87 = arith.constant 0 : index
    %c0_88 = arith.constant 0 : index
    %c0_89 = arith.constant 0 : index
    %62 = vector.load %arg1[%c0_86, %c0_87, %c0_88, %c0_89] : memref<1x16x16x64xbf16, #tpu.memory_space<vmem>>, vector<1x16x4x64xbf16>
    %63 = vector.shape_cast %62 : vector<1x16x4x64xbf16> to vector<16x4x64xbf16>
    %c0_90 = arith.constant 0 : index
    %c0_91 = arith.constant 0 : index
    %c12_92 = arith.constant 12 : index
    %c768 = arith.constant 768 : index
    %64 = vector.load %arg10[%c0_90, %c0_91, %c12_92, %c768] : memref<1x16x16x1152xbf16, #tpu.memory_space<vmem>>, vector<1x16x4x64xbf16>
    %65 = vector.shape_cast %64 : vector<1x16x4x64xbf16> to vector<16x4x64xbf16>
    %66 = vector.shape_cast %63 : vector<16x4x64xbf16> to vector<1x16x4x64xbf16>
    tpu.vector_store %arg10[%c0_90, %c0_91, %c12_92, %c768], %66 {strides = array<i32>} : memref<1x16x16x1152xbf16, #tpu.memory_space<vmem>>, vector<1x16x4x64xbf16>,
    %c0_93 = arith.constant 0 : index
    %c0_94 = arith.constant 0 : index
    %c12_95 = arith.constant 12 : index
    %c0_96 = arith.constant 0 : index
    %67 = vector.load %arg1[%c0_93, %c0_94, %c12_95, %c0_96] : memref<1x16x16x64xbf16, #tpu.memory_space<vmem>>, vector<1x16x4x64xbf16>
    %68 = vector.shape_cast %67 : vector<1x16x4x64xbf16> to vector<16x4x64xbf16>
    %c0_97 = arith.constant 0 : index
    %c0_98 = arith.constant 0 : index
    %c0_99 = arith.constant 0 : index
    %c832 = arith.constant 832 : index
    %69 = vector.load %arg10[%c0_97, %c0_98, %c0_99, %c832] : memref<1x16x16x1152xbf16, #tpu.memory_space<vmem>>, vector<1x16x4x64xbf16>
    %70 = vector.shape_cast %69 : vector<1x16x4x64xbf16> to vector<16x4x64xbf16>
    %71 = vector.shape_cast %68 : vector<16x4x64xbf16> to vector<1x16x4x64xbf16>
    tpu.vector_store %arg10[%c0_97, %c0_98, %c0_99, %c832], %71 {strides = array<i32>} : memref<1x16x16x1152xbf16, #tpu.memory_space<vmem>>, vector<1x16x4x64xbf16>,
    %c0_100 = arith.constant 0 : index
    %c12_101 = arith.constant 12 : index
    %c0_102 = arith.constant 0 : index
    %c0_103 = arith.constant 0 : index
    %72 = vector.load %arg1[%c0_100, %c12_101, %c0_102, %c0_103] : memref<1x16x16x64xbf16, #tpu.memory_space<vmem>>, vector<1x4x4x64xbf16>
    %73 = vector.shape_cast %72 : vector<1x4x4x64xbf16> to vector<4x4x64xbf16>
    %c0_104 = arith.constant 0 : index
    %c0_105 = arith.constant 0 : index
    %c12_106 = arith.constant 12 : index
    %c896 = arith.constant 896 : index
    %74 = vector.load %arg10[%c0_104, %c0_105, %c12_106, %c896] : memref<1x16x16x1152xbf16, #tpu.memory_space<vmem>>, vector<1x4x4x64xbf16>
    %75 = vector.shape_cast %74 : vector<1x4x4x64xbf16> to vector<4x4x64xbf16>
    %76 = vector.shape_cast %73 : vector<4x4x64xbf16> to vector<1x4x4x64xbf16>
    tpu.vector_store %arg10[%c0_104, %c0_105, %c12_106, %c896], %76 {strides = array<i32>} : memref<1x16x16x1152xbf16, #tpu.memory_space<vmem>>, vector<1x4x4x64xbf16>,
    %c0_107 = arith.constant 0 : index
    %c12_108 = arith.constant 12 : index
    %c0_109 = arith.constant 0 : index
    %c0_110 = arith.constant 0 : index
    %77 = vector.load %arg1[%c0_107, %c12_108, %c0_109, %c0_110] : memref<1x16x16x64xbf16, #tpu.memory_space<vmem>>, vector<1x4x16x64xbf16>
    %78 = vector.shape_cast %77 : vector<1x4x16x64xbf16> to vector<4x16x64xbf16>
    %c0_111 = arith.constant 0 : index
    %c0_112 = arith.constant 0 : index
    %c0_113 = arith.constant 0 : index
    %c960 = arith.constant 960 : index
    %79 = vector.load %arg10[%c0_111, %c0_112, %c0_113, %c960] : memref<1x16x16x1152xbf16, #tpu.memory_space<vmem>>, vector<1x4x16x64xbf16>
    %80 = vector.shape_cast %79 : vector<1x4x16x64xbf16> to vector<4x16x64xbf16>
    %81 = vector.shape_cast %78 : vector<4x16x64xbf16> to vector<1x4x16x64xbf16>
    tpu.vector_store %arg10[%c0_111, %c0_112, %c0_113, %c960], %81 {strides = array<i32>} : memref<1x16x16x1152xbf16, #tpu.memory_space<vmem>>, vector<1x4x16x64xbf16>,
    %c0_114 = arith.constant 0 : index
    %c12_115 = arith.constant 12 : index
    %c12_116 = arith.constant 12 : index
    %c0_117 = arith.constant 0 : index
    %82 = vector.load %arg1[%c0_114, %c12_115, %c12_116, %c0_117] : memref<1x16x16x64xbf16, #tpu.memory_space<vmem>>, vector<1x4x4x64xbf16>
    %83 = vector.shape_cast %82 : vector<1x4x4x64xbf16> to vector<4x4x64xbf16>
    %c0_118 = arith.constant 0 : index
    %c0_119 = arith.constant 0 : index
    %c0_120 = arith.constant 0 : index
    %c1024 = arith.constant 1024 : index
    %84 = vector.load %arg10[%c0_118, %c0_119, %c0_120, %c1024] : memref<1x16x16x1152xbf16, #tpu.memory_space<vmem>>, vector<1x4x4x64xbf16>
    %85 = vector.shape_cast %84 : vector<1x4x4x64xbf16> to vector<4x4x64xbf16>
    %86 = vector.shape_cast %83 : vector<4x4x64xbf16> to vector<1x4x4x64xbf16>
    tpu.vector_store %arg10[%c0_118, %c0_119, %c0_120, %c1024], %86 {strides = array<i32>} : memref<1x16x16x1152xbf16, #tpu.memory_space<vmem>>, vector<1x4x4x64xbf16>,
    %c0_121 = arith.constant 0 : index
    %c0_122 = arith.constant 0 : index
    %c0_123 = arith.constant 0 : index
    %c0_124 = arith.constant 0 : index
    %87 = vector.load %arg10[%c0_121, %c0_122, %c0_123, %c0_124] : memref<1x16x16x1152xbf16, #tpu.memory_space<vmem>>, vector<1x16x16x1152xbf16>
    %88 = vector.shape_cast %87 : vector<1x16x16x1152xbf16> to vector<256x1152xbf16>
    %c0_125 = arith.constant 0 : index
    %c0_126 = arith.constant 0 : index
    %89 = vector.load %arg2[%c0_125, %c0_126] : memref<1152x32xbf16, #tpu.memory_space<vmem>>, vector<1152x32xbf16>
    %cst_127 = arith.constant dense<0.000000e+00> : vector<256x32xf32>
    %90 = tpu.matmul %88, %89, %cst_127 {dimension_numbers = #tpu.dot_dimension_numbers<[1], [0], [0], [1], [0, 0, 1, 1], [], []>} : vector<256x1152xbf16>, vector<1152x32xbf16>, vector<256x32xf32> -> vector<256x32xf32>
    %c0_128 = arith.constant 0 : index
    %c0_129 = arith.constant 0 : index
    %91 = vector.load %arg6[%c0_128, %c0_129] : memref<2x32xf32, #tpu.memory_space<vmem>>, vector<1x32xf32>
    %92 = vector.broadcast %91 : vector<1x32xf32> to vector<256x32xf32>
    %93 = arith.mulf %90, %92 : vector<256x32xf32>
    %c1 = arith.constant 1 : index
    %c0_130 = arith.constant 0 : index
    %94 = vector.load %arg6[%c1, %c0_130] : memref<2x32xf32, #tpu.memory_space<vmem>>, vector<1x32xf32>
    %95 = vector.broadcast %94 : vector<1x32xf32> to vector<256x32xf32>
    %96 = arith.addf %93, %95 : vector<256x32xf32>
    %cst_131 = arith.constant 0.000000e+00 : f32
    %97 = vector.broadcast %cst_131 : f32 to vector<256x32xf32>
    %98 = arith.maximumf %96, %97 : vector<256x32xf32>
    %99 = arith.truncf %98 : vector<256x32xf32> to vector<256x32xbf16>
    %c0_132 = arith.constant 0 : index
    %c0_133 = arith.constant 0 : index
    %100 = vector.load %arg4[%c0_132, %c0_133] : memref<8x32xbf16, #tpu.memory_space<vmem>>, vector<8x32xbf16>
    %cst_134 = arith.constant dense<0.000000e+00> : vector<8x256xf32>
    %101 = tpu.matmul %100, %99, %cst_134 {dimension_numbers = #tpu.dot_dimension_numbers<[1], [1], [0], [0], [0, 0, 1, 0], [], []>} : vector<8x32xbf16>, vector<256x32xbf16>, vector<8x256xf32> -> vector<8x256xf32>
    %c0_135 = arith.constant 0 : index
    %c0_136 = arith.constant 0 : index
    %c0_137 = arith.constant 0 : index
    %c0_138 = arith.constant 0 : index
    %102 = vector.load %arg1[%c0_135, %c0_136, %c0_137, %c0_138] : memref<1x16x16x64xbf16, #tpu.memory_space<vmem>>, vector<1x16x16x64xbf16>
    %103 = vector.shape_cast %102 : vector<1x16x16x64xbf16> to vector<16x16x64xbf16>
    %104 = arith.extf %103 : vector<16x16x64xbf16> to vector<16x16x64xf32>
    %105 = vector.shape_cast %104 : vector<16x16x64xf32> to vector<256x64xf32>
    %cst_139 = arith.constant dense<0.000000e+00> : vector<64xf32>
    %106 = vector.multi_reduction <add>, %105, %cst_139 [0] : vector<256x64xf32> to vector<64xf32>
    %107 = vector.shape_cast %106 : vector<64xf32> to vector<1x64xf32>
    %cst_140 = arith.constant 2.560000e+02 : f32
    %108 = vector.broadcast %cst_140 : f32 to vector<1x64xf32>
    %109 = arith.divf %107, %108 : vector<1x64xf32>
    %110 = arith.truncf %109 : vector<1x64xf32> to vector<1x64xbf16>
    %c0_141 = arith.constant 0 : index
    %c0_142 = arith.constant 0 : index
    %111 = vector.load %arg3[%c0_141, %c0_142] : memref<64x8xbf16, #tpu.memory_space<vmem>>, vector<64x8xbf16>
    %cst_143 = arith.constant dense<0.000000e+00> : vector<1x8xf32>
    %112 = tpu.matmul %110, %111, %cst_143 {dimension_numbers = #tpu.dot_dimension_numbers<[1], [0], [0], [1], [0, 0, 1, 1], [], []>} : vector<1x64xbf16>, vector<64x8xbf16>, vector<1x8xf32> -> vector<1x8xf32>
    %c0_144 = arith.constant 0 : index
    %c0_145 = arith.constant 0 : index
    %113 = vector.load %arg7[%c0_144, %c0_145] : memref<2x8xf32, #tpu.memory_space<vmem>>, vector<1x8xf32>
    %114 = arith.mulf %112, %113 : vector<1x8xf32>
    %c1_146 = arith.constant 1 : index
    %c0_147 = arith.constant 0 : index
    %115 = vector.load %arg7[%c1_146, %c0_147] : memref<2x8xf32, #tpu.memory_space<vmem>>, vector<1x8xf32>
    %116 = arith.addf %114, %115 : vector<1x8xf32>
    %cst_148 = arith.constant 0.000000e+00 : f32
    %117 = vector.broadcast %cst_148 : f32 to vector<1x8xf32>
    %118 = arith.maximumf %116, %117 : vector<1x8xf32>
    %c0_149 = arith.constant 0 : index
    %c0_150 = arith.constant 0 : index
    %119 = vector.load %arg5[%c0_149, %c0_150] : memref<8x8xf32, #tpu.memory_space<vmem>>, vector<8x8xf32>
    %cst_151 = arith.constant dense<0.000000e+00> : vector<8x1xf32>
    %120 = tpu.matmul %119, %118, %cst_151 {dimension_numbers = #tpu.dot_dimension_numbers<[1], [1], [0], [0], [0, 0, 1, 0], [], []>} : vector<8x8xf32>, vector<1x8xf32>, vector<8x1xf32> -> vector<8x1xf32>
    %121 = vector.broadcast %120 : vector<8x1xf32> to vector<8x256xf32>
    %122 = arith.addf %101, %121 : vector<8x256xf32>
    %c0_152 = arith.constant 0 : index
    %c0_153 = arith.constant 0 : index
    %123 = vector.load %arg8[%c0_152, %c0_153] : memref<8x2xf32, #tpu.memory_space<vmem>>, vector<8x1xf32>
    %124 = vector.broadcast %123 : vector<8x1xf32> to vector<8x256xf32>
    %125 = arith.mulf %122, %124 : vector<8x256xf32>
    %c0_154 = arith.constant 0 : index
    %c1_155 = arith.constant 1 : index
    %126 = vector.load %arg8[%c0_154, %c1_155] : memref<8x2xf32, #tpu.memory_space<vmem>>, vector<8x1xf32>
    %127 = vector.broadcast %126 : vector<8x1xf32> to vector<8x256xf32>
    %128 = arith.addf %125, %127 : vector<8x256xf32>
    %cst_156 = arith.constant 0.000000e+00 : f32
    %129 = vector.broadcast %cst_156 : f32 to vector<8x256xf32>
    %130 = arith.maximumf %128, %129 : vector<8x256xf32>
    %c0_157 = arith.constant 0 : index
    %c0_158 = arith.constant 0 : index
    %c0_159 = arith.constant 0 : index
    %131 = vector.load %arg9[%c0_157, %c0_158, %c0_159] : memref<1x8x256xf32, #tpu.memory_space<vmem>>, vector<1x8x256xf32>
    %132 = vector.shape_cast %131 : vector<1x8x256xf32> to vector<8x256xf32>
    %133 = vector.shape_cast %130 : vector<8x256xf32> to vector<1x8x256xf32>
    tpu.vector_store %arg9[%c0_157, %c0_158, %c0_159], %133 {strides = array<i32>} : memref<1x8x256xf32, #tpu.memory_space<vmem>>, vector<1x8x256xf32>,
    return
  }
  func.func @transform_0(%arg0: i32) -> (i32, i32, i32, i32) {
    %c0_i32 = arith.constant 0 : i32
    %c0_i32_0 = arith.constant 0 : i32
    %c0_i32_1 = arith.constant 0 : i32
    %c0_i32_2 = arith.constant 0 : i32
    return %arg0, %c0_i32, %c0_i32_0, %c0_i32_1 : i32, i32, i32, i32
  }
  func.func @transform_1(%arg0: i32) -> (i32, i32) {
    %c0_i32 = arith.constant 0 : i32
    %c0_i32_0 = arith.constant 0 : i32
    %c0_i32_1 = arith.constant 0 : i32
    return %c0_i32, %c0_i32_0 : i32, i32
  }
  func.func @transform_2(%arg0: i32) -> (i32, i32) {
    %c0_i32 = arith.constant 0 : i32
    %c0_i32_0 = arith.constant 0 : i32
    %c0_i32_1 = arith.constant 0 : i32
    return %c0_i32, %c0_i32_0 : i32, i32
  }
  func.func @transform_3(%arg0: i32) -> (i32, i32) {
    %c0_i32 = arith.constant 0 : i32
    %c0_i32_0 = arith.constant 0 : i32
    %c0_i32_1 = arith.constant 0 : i32
    return %c0_i32, %c0_i32_0 : i32, i32
  }
  func.func @transform_4(%arg0: i32) -> (i32, i32) {
    %c0_i32 = arith.constant 0 : i32
    %c0_i32_0 = arith.constant 0 : i32
    %c0_i32_1 = arith.constant 0 : i32
    return %c0_i32, %c0_i32_0 : i32, i32
  }
  func.func @transform_5(%arg0: i32) -> (i32, i32) {
    %c0_i32 = arith.constant 0 : i32
    %c0_i32_0 = arith.constant 0 : i32
    %c0_i32_1 = arith.constant 0 : i32
    return %c0_i32, %c0_i32_0 : i32, i32
  }
  func.func @transform_6(%arg0: i32) -> (i32, i32) {
    %c0_i32 = arith.constant 0 : i32
    %c0_i32_0 = arith.constant 0 : i32
    %c0_i32_1 = arith.constant 0 : i32
    return %c0_i32, %c0_i32_0 : i32, i32
  }
  func.func @transform_7(%arg0: i32) -> (i32, i32) {
    %c0_i32 = arith.constant 0 : i32
    %c0_i32_0 = arith.constant 0 : i32
    %c0_i32_1 = arith.constant 0 : i32
    return %c0_i32, %c0_i32_0 : i32, i32
  }
  func.func @transform_8(%arg0: i32) -> (i32, i32, i32) {
    %c0_i32 = arith.constant 0 : i32
    %c0_i32_0 = arith.constant 0 : i32
    %c0_i32_1 = arith.constant 0 : i32
    return %arg0, %c0_i32, %c0_i32_0 : i32, i32, i32
  }
}

</mosaic_0001>

<llo_original>
// kernel: aspp_forward.1
$region0: #{aspp_forward.1}
  #allocation0 [shape = 'u32[]', space=smem, size = 0x4, offset = 0x4, fixed_abs, tag = 'smem constant byte address 0x4 - core index']
  #allocation1 [shape = 'u32[144,128]{1,0:T(1,128)}', space=vmem, size = 0x12000, scoped, tag = 'internal scratch']
  #allocation2 [shape = 'bf16[1,16,16,1152]{3,2,1,0:T(8,128)(2,1)}', space=vmem, size = 0x90000, scoped, tag = 'scratch operand']
  %s0 = inlined_call_operand.vmem [shape: bf16[2,16,16,64], index: 0, kind: input, shape index: {}]
  %s1 = inlined_call_operand.vmem [shape: bf16[1152,32], index: 1, kind: input, shape index: {}]
  %s2 = inlined_call_operand.vmem [shape: bf16[64,8], index: 2, kind: input, shape index: {}]
  %s3 = inlined_call_operand.vmem [shape: bf16[8,32], index: 3, kind: input, shape index: {}]
  %s4 = inlined_call_operand.vmem [shape: f32[8,8], index: 4, kind: input, shape index: {}]
  %s5 = inlined_call_operand.vmem [shape: f32[2,32], index: 5, kind: input, shape index: {}]
  %s6 = inlined_call_operand.vmem [shape: f32[2,8], index: 6, kind: input, shape index: {}]
  %s7 = inlined_call_operand.vmem [shape: f32[8,2], index: 7, kind: input, shape index: {}]
  %s8 = inlined_call_operand.vmem [shape: f32[2,8,256], index: 8, kind: output, shape index: {}]
  %s9 = sld [smem:[#allocation0]]
  $region65: #{aspp_forward.1} parent=0
    _
  %s11 = ssub.s32 1, %s9
  %s12 = scalar_select 0, %s11, %s9
  loop: start=0, step=1, limit=4
  $region2: #{aspp_forward.1} parent=0 // loop_pre_header
    _
  $region3: #{aspp_forward.1} parent=0 // loop_header
    %s14 = sphi 0, %s18
    %p15 = scmp.ge.s32.totalorder %s14, 4
    %s24 = sphi 0, %s26
    %s27 = sphi 0, %s24
    %s28 = sphi 0, %s27
    %s44 = sphi 0, %s28
    %s48 = sphi 0, %s48
    %s50 = sphi 0, %s48
    %s51 = sphi 0, %s50
    %s65 = sphi 0, %s51
    %s69 = sphi 0, %s69
    %s71 = sphi 0, %s69
    %s72 = sphi 0, %s71
    %s86 = sphi 0, %s72
    %s90 = sphi 0, %s90
    %s92 = sphi 0, %s90
    %s93 = sphi 0, %s92
    %s107 = sphi 0, %s93
    %s111 = sphi 0, %s111
    %s113 = sphi 0, %s111
    %s114 = sphi 0, %s113
    %s128 = sphi 0, %s114
    %s132 = sphi 0, %s132
    %s134 = sphi 0, %s132
    %s135 = sphi 0, %s134
    %s149 = sphi 0, %s135
    %s153 = sphi 0, %s153
    %s155 = sphi 0, %s153
    %s156 = sphi 0, %s155
    %s170 = sphi 0, %s156
    %s174 = sphi 0, %s174
    %s176 = sphi 0, %s174
    %s177 = sphi 0, %s176
    %s191 = sphi 0, %s177
    %s197 = sphi 0, %s199
    %s200 = sphi 0, %s197
    %s201 = sphi 0, %s200
    %s217 = sphi 0, %s201
  $region4: #{aspp_forward.1} parent=0 // loop_header_branch
    %17 = sbr.rel (%p15) target = $region8
  $region5: #{aspp_forward.1} parent=0 // loop_body
    %s19 = ssub.s32 %s14, 1
    %s20 = ssub.s32 %s14, 2
    %s21 = sadd.s32 %s14, 1
    %s22 = ssub.s32 %s14, %s21
    %p23 = scmp.eq.s32.totalorder %s22, 0
    %s25 = sadd.s32 %s24, 1
    %s26 = scalar_select %p23, %s24, %s25
    %p29 = pneg %p23
    %p30 = scmp.eq.s32.totalorder %s14, 1
    %p31 = por %p29, %p30
    %p32 = scmp.ne.s32.totalorder %s24, %s27
    %p33 = scmp.eq.s32.totalorder %s14, 0
    %p34 = por %p32, %p33
    %p35 = scmp.ne.s32.totalorder %s24, %s27
    %p36 = scmp.eq.s32.totalorder %s19, 1
    %p37 = por %p35, %p36
    %p38 = scmp.ne.s32.totalorder %s27, %s28
    %p39 = scmp.eq.s32.totalorder %s19, 0
    %p40 = por %p38, %p39
    %p41 = scmp.ne.s32.totalorder %s27, %s28
    %p42 = scmp.eq.s32.totalorder %s20, 1
    %p43 = por %p41, %p42
    %p45 = scmp.ne.s32.totalorder %s28, %s44
    %p46 = scmp.eq.s32.totalorder %s20, 0
    %p47 = por %p45, %p46
    %s49 = sadd.s32 %s48, 1
    %p52 = scmp.eq.s32.totalorder %s14, 1
    %p53 = scmp.ne.s32.totalorder %s48, %s50
    %p54 = scmp.eq.s32.totalorder %s14, 0
    %p55 = por %p53, %p54
    %p56 = scmp.ne.s32.totalorder %s48, %s50
    %p57 = scmp.eq.s32.totalorder %s19, 1
    %p58 = por %p56, %p57
    %p59 = scmp.ne.s32.totalorder %s50, %s51
    %p60 = scmp.eq.s32.totalorder %s19, 0
    %p61 = por %p59, %p60
    %p62 = scmp.ne.s32.totalorder %s50, %s51
    %p63 = scmp.eq.s32.totalorder %s20, 1
    %p64 = por %p62, %p63
    %p66 = scmp.ne.s32.totalorder %s51, %s65
    %p67 = scmp.eq.s32.totalorder %s20, 0
    %p68 = por %p66, %p67
    %s70 = sadd.s32 %s69, 1
    %p73 = scmp.eq.s32.totalorder %s14, 1
    %p74 = scmp.ne.s32.totalorder %s69, %s71
    %p75 = scmp.eq.s32.totalorder %s14, 0
    %p76 = por %p74, %p75
    %p77 = scmp.ne.s32.totalorder %s69, %s71
    %p78 = scmp.eq.s32.totalorder %s19, 1
    %p79 = por %p77, %p78
    %p80 = scmp.ne.s32.totalorder %s71, %s72
    %p81 = scmp.eq.s32.totalorder %s19, 0
    %p82 = por %p80, %p81
    %p83 = scmp.ne.s32.totalorder %s71, %s72
    %p84 = scmp.eq.s32.totalorder %s20, 1
    %p85 = por %p83, %p84
    %p87 = scmp.ne.s32.totalorder %s72, %s86
    %p88 = scmp.eq.s32.totalorder %s20, 0
    %p89 = por %p87, %p88
    %s91 = sadd.s32 %s90, 1
    %p94 = scmp.eq.s32.totalorder %s14, 1
    %p95 = scmp.ne.s32.totalorder %s90, %s92
    %p96 = scmp.eq.s32.totalorder %s14, 0
    %p97 = por %p95, %p96
    %p98 = scmp.ne.s32.totalorder %s90, %s92
    %p99 = scmp.eq.s32.totalorder %s19, 1
    %p100 = por %p98, %p99
    %p101 = scmp.ne.s32.totalorder %s92, %s93
    %p102 = scmp.eq.s32.totalorder %s19, 0
    %p103 = por %p101, %p102
    %p104 = scmp.ne.s32.totalorder %s92, %s93
    %p105 = scmp.eq.s32.totalorder %s20, 1
    %p106 = por %p104, %p105
    %p108 = scmp.ne.s32.totalorder %s93, %s107
    %p109 = scmp.eq.s32.totalorder %s20, 0
    %p110 = por %p108, %p109
    %s112 = sadd.s32 %s111, 1
    %p115 = scmp.eq.s32.totalorder %s14, 1
    %p116 = scmp.ne.s32.totalorder %s111, %s113
    %p117 = scmp.eq.s32.totalorder %s14, 0
    %p118 = por %p116, %p117
    %p119 = scmp.ne.s32.totalorder %s111, %s113
    %p120 = scmp.eq.s32.totalorder %s19, 1
    %p121 = por %p119, %p120
    %p122 = scmp.ne.s32.totalorder %s113, %s114
    %p123 = scmp.eq.s32.totalorder %s19, 0
    %p124 = por %p122, %p123
    %p125 = scmp.ne.s32.totalorder %s113, %s114
    %p126 = scmp.eq.s32.totalorder %s20, 1
    %p127 = por %p125, %p126
    %p129 = scmp.ne.s32.totalorder %s114, %s128
    %p130 = scmp.eq.s32.totalorder %s20, 0
    %p131 = por %p129, %p130
    %s133 = sadd.s32 %s132, 1
    %p136 = scmp.eq.s32.totalorder %s14, 1
    %p137 = scmp.ne.s32.totalorder %s132, %s134
    %p138 = scmp.eq.s32.totalorder %s14, 0
    %p139 = por %p137, %p138
    %p140 = scmp.ne.s32.totalorder %s132, %s134
    %p141 = scmp.eq.s32.totalorder %s19, 1
    %p142 = por %p140, %p141
    %p143 = scmp.ne.s32.totalorder %s134, %s135
    %p144 = scmp.eq.s32.totalorder %s19, 0
    %p145 = por %p143, %p144
    %p146 = scmp.ne.s32.totalorder %s134, %s135
    %p147 = scmp.eq.s32.totalorder %s20, 1
    %p148 = por %p146, %p147
    %p150 = scmp.ne.s32.totalorder %s135, %s149
    %p151 = scmp.eq.s32.totalorder %s20, 0
    %p152 = por %p150, %p151
    %s154 = sadd.s32 %s153, 1
    %p157 = scmp.eq.s32.totalorder %s14, 1
    %p158 = scmp.ne.s32.totalorder %s153, %s155
    %p159 = scmp.eq.s32.totalorder %s14, 0
    %p160 = por %p158, %p159
    %p161 = scmp.ne.s32.totalorder %s153, %s155
    %p162 = scmp.eq.s32.totalorder %s19, 1
    %p163 = por %p161, %p162
    %p164 = scmp.ne.s32.totalorder %s155, %s156
    %p165 = scmp.eq.s32.totalorder %s19, 0
    %p166 = por %p164, %p165
    %p167 = scmp.ne.s32.totalorder %s155, %s156
    %p168 = scmp.eq.s32.totalorder %s20, 1
    %p169 = por %p167, %p168
    %p171 = scmp.ne.s32.totalorder %s156, %s170
    %p172 = scmp.eq.s32.totalorder %s20, 0
    %p173 = por %p171, %p172
    %s175 = sadd.s32 %s174, 1
    %p178 = scmp.eq.s32.totalorder %s14, 1
    %p179 = scmp.ne.s32.totalorder %s174, %s176
    %p180 = scmp.eq.s32.totalorder %s14, 0
    %p181 = por %p179, %p180
    %p182 = scmp.ne.s32.totalorder %s174, %s176
    %p183 = scmp.eq.s32.totalorder %s19, 1
    %p184 = por %p182, %p183
    %p185 = scmp.ne.s32.totalorder %s176, %s177
    %p186 = scmp.eq.s32.totalorder %s19, 0
    %p187 = por %p185, %p186
    %p188 = scmp.ne.s32.totalorder %s176, %s177
    %p189 = scmp.eq.s32.totalorder %s20, 1
    %p190 = por %p188, %p189
    %p192 = scmp.ne.s32.totalorder %s177, %s191
    %p193 = scmp.eq.s32.totalorder %s20, 0
    %p194 = por %p192, %p193
    %s195 = ssub.s32 %s14, %s21
    %p196 = scmp.eq.s32.totalorder %s195, 0
    %s198 = sadd.s32 %s197, 1
    %s199 = scalar_select %p196, %s197, %s198
    %p202 = pneg %p196
    %p203 = scmp.eq.s32.totalorder %s14, 1
    %p204 = por %p202, %p203
    %p205 = scmp.ne.s32.totalorder %s197, %s200
    %p206 = scmp.eq.s32.totalorder %s14, 0
    %p207 = por %p205, %p206
    %p208 = scmp.ne.s32.totalorder %s197, %s200
    %p209 = scmp.eq.s32.totalorder %s19, 1
    %p210 = por %p208, %p209
    %p211 = scmp.ne.s32.totalorder %s200, %s201
    %p212 = scmp.eq.s32.totalorder %s19, 0
    %p213 = por %p211, %p212
    %p214 = scmp.ne.s32.totalorder %s200, %s201
    %p215 = scmp.eq.s32.totalorder %s20, 1
    %p216 = por %p214, %p215
    %p218 = scmp.ne.s32.totalorder %s201, %s217
    %p219 = scmp.eq.s32.totalorder %s20, 0
    %p220 = por %p218, %p219
    %p221 = scmp.le.s32.totalorder 1, %s14
    %p222 = scmp.lt.s32.totalorder %s14, 3
    %p223 = pnand %p221, %p222
    %p224 = pneg %p223
    // Predicated region
    $region9: #{aspp_forward.1} parent=5 // pred_check
      _
    $region10: #{aspp_forward.1} parent=5 // pred_check_branch
      %226 = sbr.rel (%p223) target = $region12
    $region11: #{aspp_forward.1} parent=5 // pred_region
      %s227 = ssub.s32 %s14, 1
      // Predicated region
      $region13: #{aspp_forward.1} parent=11 // pred_check
        %p228 = pneg %p61
      $region14: #{aspp_forward.1} parent=11 // pred_check_branch
        %230 = sbr.rel (%p228) target = $region16
      $region15: #{aspp_forward.1} parent=11 // pred_region
        _
      $region16: #{aspp_forward.1} parent=11 // pred_fallthru
        _
      // Predicated region
      $region17: #{aspp_forward.1} parent=11 // pred_check
        %p231 = pneg %p82
      $region18: #{aspp_forward.1} parent=11 // pred_check_branch
        %233 = sbr.rel (%p231) target = $region20
      $region19: #{aspp_forward.1} parent=11 // pred_region
        _
      $region20: #{aspp_forward.1} parent=11 // pred_fallthru
        _
      // Predicated region
      $region21: #{aspp_forward.1} parent=11 // pred_check
        %p234 = pneg %p103
      $region22: #{aspp_forward.1} parent=11 // pred_check_branch
        %236 = sbr.rel (%p234) target = $region24
      $region23: #{aspp_forward.1} parent=11 // pred_region
        _
      $region24: #{aspp_forward.1} parent=11 // pred_fallthru
        _
      // Predicated region
      $region25: #{aspp_forward.1} parent=11 // pred_check
        %p237 = pneg %p124
      $region26: #{aspp_forward.1} parent=11 // pred_check_branch
        %239 = sbr.rel (%p237) target = $region28
      $region27: #{aspp_forward.1} parent=11 // pred_region
        _
      $region28: #{aspp_forward.1} parent=11 // pred_fallthru
        _
      // Predicated region
      $region29: #{aspp_forward.1} parent=11 // pred_check
        %p240 = pneg %p145
      $region30: #{aspp_forward.1} parent=11 // pred_check_branch
        %242 = sbr.rel (%p240) target = $region32
      $region31: #{aspp_forward.1} parent=11 // pred_region
        _
      $region32: #{aspp_forward.1} parent=11 // pred_fallthru
        _
      // Predicated region
      $region33: #{aspp_forward.1} parent=11 // pred_check
        %p243 = pneg %p166
      $region34: #{aspp_forward.1} parent=11 // pred_check_branch
        %245 = sbr.rel (%p243) target = $region36
      $region35: #{aspp_forward.1} parent=11 // pred_region
        _
      $region36: #{aspp_forward.1} parent=11 // pred_fallthru
        _
      // Predicated region
      $region37: #{aspp_forward.1} parent=11 // pred_check
        %p246 = pneg %p187
      $region38: #{aspp_forward.1} parent=11 // pred_check_branch
        %248 = sbr.rel (%p246) target = $region40
      $region39: #{aspp_forward.1} parent=11 // pred_region
        _
      $region40: #{aspp_forward.1} parent=11 // pred_fallthru
        _
    $region12: #{aspp_forward.1} parent=5 // pred_fallthru
      _
    %p249 = scmp.lt.s32.totalorder %s14, 2
    // Predicated region
    $region41: #{aspp_forward.1} parent=5 // pred_check
      %p250 = pneg %p249
    $region42: #{aspp_forward.1} parent=5 // pred_check_branch
      %252 = sbr.rel (%p250) target = $region44
    $region43: #{aspp_forward.1} parent=5 // pred_region
      // Predicated region
      $region45: #{aspp_forward.1} parent=43 // pred_check
        %p253 = pneg %p34
      $region46: #{aspp_forward.1} parent=43 // pred_check_branch
        %255 = sbr.rel (%p253) target = $region48
      $region47: #{aspp_forward.1} parent=43 // pred_region
        %p256 = scmp.lt.s32.totalorder %s14, 1
        %s257 = scalar_select %p256, %s14, 1
        %s258 = smul.addr %s257, 32
        %s259 = smul.addr %s258, 4
        %s260 = scalar_lea.vmem %s0, %s259
      $region48: #{aspp_forward.1} parent=43 // pred_fallthru
        _
    $region44: #{aspp_forward.1} parent=5 // pred_fallthru
      _
    %p261 = scmp.le.s32.totalorder 1, %s14
    %p262 = scmp.lt.s32.totalorder %s14, 3
    %p263 = pnand %p261, %p262
    %p264 = pneg %p263
    // Predicated region
    $region49: #{aspp_forward.1} parent=5 // pred_check
      _
    $region50: #{aspp_forward.1} parent=5 // pred_check_branch
      %266 = sbr.rel (%p263) target = $region52
    $region51: #{aspp_forward.1} parent=5 // pred_region
      %s267 = ssub.s32 %s14, 1
      %p268 = scmp.lt.s32.totalorder %s19, 1
      %s269 = scalar_select %p268, %s19, 1
      %s270 = smul.addr %s269, 32
      %s271 = smul.addr %s270, 4
      %s272 = scalar_lea.vmem %s0, %s271
      %p273 = pneg %p40
      %p274 = pneg %p37
      %p275 = pneg %p61
      %p276 = pneg %p58
      %p277 = pneg %p82
      %p278 = pneg %p79
      %p279 = pneg %p103
      %p280 = pneg %p100
      %p281 = pneg %p124
      %p282 = pneg %p121
      %p283 = pneg %p145
      %p284 = pneg %p142
      %p285 = pneg %p166
      %p286 = pneg %p163
      %p287 = pneg %p187
      %p288 = pneg %p184
      %p289 = pneg %p213
      %p290 = pneg %p210
      %p291 = scmp.lt.s32.totalorder %s19, 1
      %s292 = scalar_select %p291, %s19, 1
      %s293 = smul.addr %s292, 2
      %s294 = smul.addr %s293, 8
      %s295 = scalar_lea.vmem %s8, %s294
      %p296 = scmp.lt.s32.totalorder %s19, 1
      %s297 = scalar_select %p296, %s19, 1
      %s298 = smul.addr %s297, 32
      %s299 = smul.addr %s298, 4
      %s300 = scalar_lea.vmem %s0, %s299
      %p301 = scmp.lt.s32.totalorder %s19, 1
      %s302 = scalar_select %p301, %s19, 1
      %s303 = smul.addr %s302, 2
      %s304 = smul.addr %s303, 8
      %s305 = scalar_lea.vmem %s8, %s304
      %307 = vst [vmem:[#allocation2] sm:$0xff] 0
      %308 = vst [vmem:[#allocation2 + $0x8] sm:$0xff] 0
      %309 = vst [vmem:[#allocation2 + $0x10] sm:$0xff] 0
      %310 = vst [vmem:[#allocation2 + $0x18] sm:$0xff] 0
      %311 = vst [vmem:[#allocation2 + $0x20] sm:$0xf] 0
      %312 = vst [vmem:[#allocation2 + $0x24] sm:$0xff] 0
      %313 = vst [vmem:[#allocation2 + $0x2c] sm:$0xff] 0
      %314 = vst [vmem:[#allocation2 + $0x34] sm:$0xff] 0
      %315 = vst [vmem:[#allocation2 + $0x3c] sm:$0xff] 0
      %316 = vst [vmem:[#allocation2 + $0x44] sm:$0xf] 0
      %317 = vst [vmem:[#allocation2 + $0x48] sm:$0xff] 0
      %318 = vst [vmem:[#allocation2 + $0x50] sm:$0xff] 0
      %319 = vst [vmem:[#allocation2 + $0x58] sm:$0xff] 0
      %320 = vst [vmem:[#allocation2 + $0x60] sm:$0xff] 0
      %321 = vst [vmem:[#allocation2 + $0x68] sm:$0xf] 0
      %322 = vst [vmem:[#allocation2 + $0x6c] sm:$0xff] 0
      %323 = vst [vmem:[#allocation2 + $0x74] sm:$0xff] 0
      %324 = vst [vmem:[#allocation2 + $0x7c] sm:$0xff] 0
      %325 = vst [vmem:[#allocation2 + $0x84] sm:$0xff] 0
      %326 = vst [vmem:[#allocation2 + $0x8c] sm:$0xf] 0
      %327 = vst [vmem:[#allocation2 + $0x90] sm:$0xff] 0
      %328 = vst [vmem:[#allocation2 + $0x98] sm:$0xff] 0
      %329 = vst [vmem:[#allocation2 + $0xa0] sm:$0xff] 0
      %330 = vst [vmem:[#allocation2 + $0xa8] sm:$0xff] 0
      %331 = vst [vmem:[#allocation2 + $0xb0] sm:$0xf] 0
      %332 = vst [vmem:[#allocation2 + $0xb4] sm:$0xff] 0
      %333 = vst [vmem:[#allocation2 + $0xbc] sm:$0xff] 0
      %334 = vst [vmem:[#allocation2 + $0xc4] sm:$0xff] 0
      %335 = vst [vmem:[#allocation2 + $0xcc] sm:$0xff] 0
      %336 = vst [vmem:[#allocation2 + $0xd4] sm:$0xf] 0
      %337 = vst [vmem:[#allocation2 + $0xd8] sm:$0xff] 0
      %338 = vst [vmem:[#allocation2 + $0xe0] sm:$0xff] 0
      %339 = vst [vmem:[#allocation2 + $0xe8] sm:$0xff] 0
      %340 = vst [vmem:[#allocation2 + $0xf0] sm:$0xff] 0
      %341 = vst [vmem:[#allocation2 + $0xf8] sm:$0xf] 0
      %342 = vst [vmem:[#allocation2 + $0xfc] sm:$0xff] 0
      %343 = vst [vmem:[#allocation2 + $0x104] sm:$0xff] 0
      %344 = vst [vmem:[#allocation2 + $0x10c] sm:$0xff] 0
      %345 = vst [vmem:[#allocation2 + $0x114] sm:$0xff] 0
      %346 = vst [vmem:[#allocation2 + $0x11c] sm:$0xf] 0
      %347 = vst [vmem:[#allocation2 + $0x120] sm:$0xff] 0
      %348 = vst [vmem:[#allocation2 + $0x128] sm:$0xff] 0
      %349 = vst [vmem:[#allocation2 + $0x130] sm:$0xff] 0
      %350 = vst [vmem:[#allocation2 + $0x138] sm:$0xff] 0
      %351 = vst [vmem:[#allocation2 + $0x140] sm:$0xf] 0
      %352 = vst [vmem:[#allocation2 + $0x144] sm:$0xff] 0
      %353 = vst [vmem:[#allocation2 + $0x14c] sm:$0xff] 0
      %354 = vst [vmem:[#allocation2 + $0x154] sm:$0xff] 0
      %355 = vst [vmem:[#allocation2 + $0x15c] sm:$0xff] 0
      %356 = vst [vmem:[#allocation2 + $0x164] sm:$0xf] 0
      %357 = vst [vmem:[#allocation2 + $0x168] sm:$0xff] 0
      %358 = vst [vmem:[#allocation2 + $0x170] sm:$0xff] 0
      %359 = vst [vmem:[#allocation2 + $0x178] sm:$0xff] 0
      %360 = vst [vmem:[#allocation2 + $0x180] sm:$0xff] 0
      %361 = vst [vmem:[#allocation2 + $0x188] sm:$0xf] 0
      %362 = vst [vmem:[#allocation2 + $0x18c] sm:$0xff] 0
      %363 = vst [vmem:[#allocation2 + $0x194] sm:$0xff] 0
      %364 = vst [vmem:[#allocation2 + $0x19c] sm:$0xff] 0
      %365 = vst [vmem:[#allocation2 + $0x1a4] sm:$0xff] 0
      %366 = vst [vmem:[#allocation2 + $0x1ac] sm:$0xf] 0
      %367 = vst [vmem:[#allocation2 + $0x1b0] sm:$0xff] 0
      %368 = vst [vmem:[#allocation2 + $0x1b8] sm:$0xff] 0
      %369 = vst [vmem:[#allocation2 + $0x1c0] sm:$0xff] 0
      %370 = vst [vmem:[#allocation2 + $0x1c8] sm:$0xff] 0
      %371 = vst [vmem:[#allocation2 + $0x1d0] sm:$0xf] 0
      %372 = vst [vmem:[#allocation2 + $0x1d4] sm:$0xff] 0
      %373 = vst [vmem:[#allocation2 + $0x1dc] sm:$0xff] 0
      %374 = vst [vmem:[#allocation2 + $0x1e4] sm:$0xff] 0
      %375 = vst [vmem:[#allocation2 + $0x1ec] sm:$0xff] 0
      %376 = vst [vmem:[#allocation2 + $0x1f4] sm:$0xf] 0
      %377 = vst [vmem:[#allocation2 + $0x1f8] sm:$0xff] 0
      %378 = vst [vmem:[#allocation2 + $0x200] sm:$0xff] 0
      %379 = vst [vmem:[#allocation2 + $0x208] sm:$0xff] 0
      %380 = vst [vmem:[#allocation2 + $0x210] sm:$0xff] 0
      %381 = vst [vmem:[#allocation2 + $0x218] sm:$0xf] 0
      %382 = vst [vmem:[#allocation2 + $0x21c] sm:$0xff] 0
      %383 = vst [vmem:[#allocation2 + $0x224] sm:$0xff] 0
      %384 = vst [vmem:[#allocation2 + $0x22c] sm:$0xff] 0
      %385 = vst [vmem:[#allocation2 + $0x234] sm:$0xff] 0
      %386 = vst [vmem:[#allocation2 + $0x23c] sm:$0xf] 0
      %387 = vst [vmem:[#allocation2 + $0x240] sm:$0xff] 0
      %388 = vst [vmem:[#allocation2 + $0x248] sm:$0xff] 0
      %389 = vst [vmem:[#allocation2 + $0x250] sm:$0xff] 0
      %390 = vst [vmem:[#allocation2 + $0x258] sm:$0xff] 0
      %391 = vst [vmem:[#allocation2 + $0x260] sm:$0xf] 0
      %392 = vst [vmem:[#allocation2 + $0x264] sm:$0xff] 0
      %393 = vst [vmem:[#allocation2 + $0x26c] sm:$0xff] 0
      %394 = vst [vmem:[#allocation2 + $0x274] sm:$0xff] 0
      %395 = vst [vmem:[#allocation2 + $0x27c] sm:$0xff] 0
      %396 = vst [vmem:[#allocation2 + $0x284] sm:$0xf] 0
      %397 = vst [vmem:[#allocation2 + $0x288] sm:$0xff] 0
      %398 = vst [vmem:[#allocation2 + $0x290] sm:$0xff] 0
      %399 = vst [vmem:[#allocation2 + $0x298] sm:$0xff] 0
      %400 = vst [vmem:[#allocation2 + $0x2a0] sm:$0xff] 0
      %401 = vst [vmem:[#allocation2 + $0x2a8] sm:$0xf] 0
      %402 = vst [vmem:[#allocation2 + $0x2ac] sm:$0xff] 0
      %403 = vst [vmem:[#allocation2 + $0x2b4] sm:$0xff] 0
      %404 = vst [vmem:[#allocation2 + $0x2bc] sm:$0xff] 0
      %405 = vst [vmem:[#allocation2 + $0x2c4] sm:$0xff] 0
      %406 = vst [vmem:[#allocation2 + $0x2cc] sm:$0xf] 0
      %407 = vst [vmem:[#allocation2 + $0x2d0] sm:$0xff] 0
      %408 = vst [vmem:[#allocation2 + $0x2d8] sm:$0xff] 0
      %409 = vst [vmem:[#allocation2 + $0x2e0] sm:$0xff] 0
      %410 = vst [vmem:[#allocation2 + $0x2e8] sm:$0xff] 0
      %411 = vst [vmem:[#allocation2 + $0x2f0] sm:$0xf] 0
      %412 = vst [vmem:[#allocation2 + $0x2f4] sm:$0xff] 0
      %413 = vst [vmem:[#allocation2 + $0x2fc] sm:$0xff] 0
      %414 = vst [vmem:[#allocation2 + $0x304] sm:$0xff] 0
      %415 = vst [vmem:[#allocation2 + $0x30c] sm:$0xff] 0
      %416 = vst [vmem:[#allocation2 + $0x314] sm:$0xf] 0
      %417 = vst [vmem:[#allocation2 + $0x318] sm:$0xff] 0
      %418 = vst [vmem:[#allocation2 + $0x320] sm:$0xff] 0
      %419 = vst [vmem:[#allocation2 + $0x328] sm:$0xff] 0
      %420 = vst [vmem:[#allocation2 + $0x330] sm:$0xff] 0
      %421 = vst [vmem:[#allocation2 + $0x338] sm:$0xf] 0
      %422 = vst [vmem:[#allocation2 + $0x33c] sm:$0xff] 0
      %423 = vst [vmem:[#allocation2 + $0x344] sm:$0xff] 0
      %424 = vst [vmem:[#allocation2 + $0x34c] sm:$0xff] 0
      %425 = vst [vmem:[#allocation2 + $0x354] sm:$0xff] 0
      %426 = vst [vmem:[#allocation2 + $0x35c] sm:$0xf] 0
      %427 = vst [vmem:[#allocation2 + $0x360] sm:$0xff] 0
      %428 = vst [vmem:[#allocation2 + $0x368] sm:$0xff] 0
      %429 = vst [vmem:[#allocation2 + $0x370] sm:$0xff] 0
      %430 = vst [vmem:[#allocation2 + $0x378] sm:$0xff] 0
      %431 = vst [vmem:[#allocation2 + $0x380] sm:$0xf] 0
      %432 = vst [vmem:[#allocation2 + $0x384] sm:$0xff] 0
      %433 = vst [vmem:[#allocation2 + $0x38c] sm:$0xff] 0
      %434 = vst [vmem:[#allocation2 + $0x394] sm:$0xff] 0
      %435 = vst [vmem:[#allocation2 + $0x39c] sm:$0xff] 0
      %436 = vst [vmem:[#allocation2 + $0x3a4] sm:$0xf] 0
      %437 = vst [vmem:[#allocation2 + $0x3a8] sm:$0xff] 0
      %438 = vst [vmem:[#allocation2 + $0x3b0] sm:$0xff] 0
      %439 = vst [vmem:[#allocation2 + $0x3b8] sm:$0xff] 0
      %440 = vst [vmem:[#allocation2 + $0x3c0] sm:$0xff] 0
      %441 = vst [vmem:[#allocation2 + $0x3c8] sm:$0xf] 0
      %442 = vst [vmem:[#allocation2 + $0x3cc] sm:$0xff] 0
      %443 = vst [vmem:[#allocation2 + $0x3d4] sm:$0xff] 0
      %444 = vst [vmem:[#allocation2 + $0x3dc] sm:$0xff] 0
      %445 = vst [vmem:[#allocation2 + $0x3e4] sm:$0xff] 0
      %446 = vst [vmem:[#allocation2 + $0x3ec] sm:$0xf] 0
      %447 = vst [vmem:[#allocation2 + $0x3f0] sm:$0xff] 0
      %448 = vst [vmem:[#allocation2 + $0x3f8] sm:$0xff] 0
      %449 = vst [vmem:[#allocation2 + $0x400] sm:$0xff] 0
      %450 = vst [vmem:[#allocation2 + $0x408] sm:$0xff] 0
      %451 = vst [vmem:[#allocation2 + $0x410] sm:$0xf] 0
      %452 = vst [vmem:[#allocation2 + $0x414] sm:$0xff] 0
      %453 = vst [vmem:[#allocation2 + $0x41c] sm:$0xff] 0
      %454 = vst [vmem:[#allocation2 + $0x424] sm:$0xff] 0
      %455 = vst [vmem:[#allocation2 + $0x42c] sm:$0xff] 0
      %456 = vst [vmem:[#allocation2 + $0x434] sm:$0xf] 0
      %457 = vst [vmem:[#allocation2 + $0x438] sm:$0xff] 0
      %458 = vst [vmem:[#allocation2 + $0x440] sm:$0xff] 0
      %459 = vst [vmem:[#allocation2 + $0x448] sm:$0xff] 0
      %460 = vst [vmem:[#allocation2 + $0x450] sm:$0xff] 0
      %461 = vst [vmem:[#allocation2 + $0x458] sm:$0xf] 0
      %462 = vst [vmem:[#allocation2 + $0x45c] sm:$0xff] 0
      %463 = vst [vmem:[#allocation2 + $0x464] sm:$0xff] 0
      %464 = vst [vmem:[#allocation2 + $0x46c] sm:$0xff] 0
      %465 = vst [vmem:[#allocation2 + $0x474] sm:$0xff] 0
      %466 = vst [vmem:[#allocation2 + $0x47c] sm:$0xf] 0
      %v467 = vld [vmem:[%s300] sm:$0xf]
      %v468 = vld [vmem:[%s300 + $0x4] sm:$0xf]
      %v469 = vld [vmem:[%s300 + $0x8] sm:$0xf]
      %v470 = vld [vmem:[%s300 + $0xc] sm:$0xf]
      %v471 = vld [vmem:[%s300 + $0x10] sm:$0xf]
      %v472 = vld [vmem:[%s300 + $0x14] sm:$0xf]
      %v473 = vld [vmem:[%s300 + $0x18] sm:$0xf]
      %v474 = vld [vmem:[%s300 + $0x1c] sm:$0xf]
      %v475 = vld [vmem:[%s300 + $0x20] sm:$0xf]
      %v476 = vld [vmem:[%s300 + $0x24] sm:$0xf]
      %v477 = vld [vmem:[%s300 + $0x28] sm:$0xf]
      %v478 = vld [vmem:[%s300 + $0x2c] sm:$0xf]
      %v479 = vld [vmem:[%s300 + $0x30] sm:$0xf]
      %v480 = vld [vmem:[%s300 + $0x34] sm:$0xf]
      %v481 = vld [vmem:[%s300 + $0x38] sm:$0xf]
      %v482 = vld [vmem:[%s300 + $0x3c] sm:$0xf]
      %v483 = vld [vmem:[%s300 + $0x40] sm:$0xf]
      %v484 = vld [vmem:[%s300 + $0x44] sm:$0xf]
      %v485 = vld [vmem:[%s300 + $0x48] sm:$0xf]
      %v486 = vld [vmem:[%s300 + $0x4c] sm:$0xf]
      %v487 = vld [vmem:[%s300 + $0x50] sm:$0xf]
      %v488 = vld [vmem:[%s300 + $0x54] sm:$0xf]
      %v489 = vld [vmem:[%s300 + $0x58] sm:$0xf]
      %v490 = vld [vmem:[%s300 + $0x5c] sm:$0xf]
      %v491 = vld [vmem:[%s300 + $0x60] sm:$0xf]
      %v492 = vld [vmem:[%s300 + $0x64] sm:$0xf]
      %v493 = vld [vmem:[%s300 + $0x68] sm:$0xf]
      %v494 = vld [vmem:[%s300 + $0x6c] sm:$0xf]
      %v495 = vld [vmem:[%s300 + $0x70] sm:$0xf]
      %v496 = vld [vmem:[%s300 + $0x74] sm:$0xf]
      %v497 = vld [vmem:[%s300 + $0x78] sm:$0xf]
      %v498 = vld [vmem:[%s300 + $0x7c] sm:$0xf]
      %vm499 = vcmask 519168
      %500 = vst.msk [vmem:[#allocation2] sm:$0xf] %vm499, %v467
      %501 = vst.msk [vmem:[#allocation2 + $0x24] sm:$0xf] %vm499, %v468
      %502 = vst.msk [vmem:[#allocation2 + $0x48] sm:$0xf] %vm499, %v469
      %503 = vst.msk [vmem:[#allocation2 + $0x6c] sm:$0xf] %vm499, %v470
      %504 = vst.msk [vmem:[#allocation2 + $0x90] sm:$0xf] %vm499, %v471
      %505 = vst.msk [vmem:[#allocation2 + $0xb4] sm:$0xf] %vm499, %v472
      %506 = vst.msk [vmem:[#allocation2 + $0xd8] sm:$0xf] %vm499, %v473
      %507 = vst.msk [vmem:[#allocation2 + $0xfc] sm:$0xf] %vm499, %v474
      %508 = vst.msk [vmem:[#allocation2 + $0x120] sm:$0xf] %vm499, %v475
      %509 = vst.msk [vmem:[#allocation2 + $0x144] sm:$0xf] %vm499, %v476
      %510 = vst.msk [vmem:[#allocation2 + $0x168] sm:$0xf] %vm499, %v477
      %511 = vst.msk [vmem:[#allocation2 + $0x18c] sm:$0xf] %vm499, %v478
      %512 = vst.msk [vmem:[#allocation2 + $0x1b0] sm:$0xf] %vm499, %v479
      %513 = vst.msk [vmem:[#allocation2 + $0x1d4] sm:$0xf] %vm499, %v480
      %514 = vst.msk [vmem:[#allocation2 + $0x1f8] sm:$0xf] %vm499, %v481
      %515 = vst.msk [vmem:[#allocation2 + $0x21c] sm:$0xf] %vm499, %v482
      %516 = vst.msk [vmem:[#allocation2 + $0x240] sm:$0xf] %vm499, %v483
      %517 = vst.msk [vmem:[#allocation2 + $0x264] sm:$0xf] %vm499, %v484
      %518 = vst.msk [vmem:[#allocation2 + $0x288] sm:$0xf] %vm499, %v485
      %519 = vst.msk [vmem:[#allocation2 + $0x2ac] sm:$0xf] %vm499, %v486
      %520 = vst.msk [vmem:[#allocation2 + $0x2d0] sm:$0xf] %vm499, %v487
      %521 = vst.msk [vmem:[#allocation2 + $0x2f4] sm:$0xf] %vm499, %v488
      %522 = vst.msk [vmem:[#allocation2 + $0x318] sm:$0xf] %vm499, %v489
      %523 = vst.msk [vmem:[#allocation2 + $0x33c] sm:$0xf] %vm499, %v490
      %524 = vst.msk [vmem:[#allocation2 + $0x360] sm:$0xf] %vm499, %v491
      %525 = vst.msk [vmem:[#allocation2 + $0x384] sm:$0xf] %vm499, %v492
      %526 = vst.msk [vmem:[#allocation2 + $0x3a8] sm:$0xf] %vm499, %v493
      %527 = vst.msk [vmem:[#allocation2 + $0x3cc] sm:$0xf] %vm499, %v494
      %528 = vst.msk [vmem:[#allocation2 + $0x3f0] sm:$0xf] %vm499, %v495
      %529 = vst.msk [vmem:[#allocation2 + $0x414] sm:$0xf] %vm499, %v496
      %530 = vst.msk [vmem:[#allocation2 + $0x438] sm:$0xf] %vm499, %v497
      %531 = vst.msk [vmem:[#allocation2 + $0x45c] sm:$0xf] %vm499, %v498
      %v532 = vld [vmem:[%s300] sm:$0xf]
      %v533 = vld [vmem:[%s300 + $0x4] sm:$0x1]
      %v534 = vld [vmem:[%s300 + $0x8] sm:$0xf]
      %v535 = vld [vmem:[%s300 + $0xc] sm:$0x1]
      %v536 = vld [vmem:[%s300 + $0x10] sm:$0xf]
      %v537 = vld [vmem:[%s300 + $0x14] sm:$0x1]
      %v538 = vld [vmem:[%s300 + $0x18] sm:$0xf]
      %v539 = vld [vmem:[%s300 + $0x1c] sm:$0x1]
      %v540 = vld [vmem:[%s300 + $0x20] sm:$0xf]
      %v541 = vld [vmem:[%s300 + $0x24] sm:$0x1]
      %v542 = vld [vmem:[%s300 + $0x28] sm:$0xf]
      %v543 = vld [vmem:[%s300 + $0x2c] sm:$0x1]
      %v544 = vld [vmem:[%s300 + $0x30] sm:$0xf]
      %v545 = vld [vmem:[%s300 + $0x34] sm:$0x1]
      %v546 = vld [vmem:[%s300 + $0x38] sm:$0xf]
      %v547 = vld [vmem:[%s300 + $0x3c] sm:$0x1]
      %v548 = vld [vmem:[%s300 + $0x40] sm:$0xf]
      %v549 = vld [vmem:[%s300 + $0x44] sm:$0x1]
      %v550 = vld [vmem:[%s300 + $0x48] sm:$0xf]
      %v551 = vld [vmem:[%s300 + $0x4c] sm:$0x1]
      %vm572 = vcmask 1042432
      %vm573 = vcmask 1046532
      %vm574 = vmor %vm572, %vm573
      %v575 = vrot.slane %v532, 5
      %v576 = vrot.slane %v575, 4
      %v577 = vrot.slane %v533, 5
      %v578 = vsel %vm574, %v576, %v577
      %v579 = vrot.slane %v534, 5
      %v580 = vrot.slane %v579, 4
      %v581 = vrot.slane %v535, 5
      %v582 = vsel %vm574, %v580, %v581
      %v583 = vrot.slane %v536, 5
      %v584 = vrot.slane %v583, 4
      %v585 = vrot.slane %v537, 5
      %v586 = vsel %vm574, %v584, %v585
      %v587 = vrot.slane %v538, 5
      %v588 = vrot.slane %v587, 4
      %v589 = vrot.slane %v539, 5
      %v590 = vsel %vm574, %v588, %v589
      %v591 = vrot.slane %v540, 5
      %v592 = vrot.slane %v591, 4
      %v593 = vrot.slane %v541, 5
      %v594 = vsel %vm574, %v592, %v593
      %v595 = vrot.slane %v542, 5
      %v596 = vrot.slane %v595, 4
      %v597 = vrot.slane %v543, 5
      %v598 = vsel %vm574, %v596, %v597
      %v599 = vrot.slane %v544, 5
      %v600 = vrot.slane %v599, 4
      %v601 = vrot.slane %v545, 5
      %v602 = vsel %vm574, %v600, %v601
      %v603 = vrot.slane %v546, 5
      %v604 = vrot.slane %v603, 4
      %v605 = vrot.slane %v547, 5
      %v606 = vsel %vm574, %v604, %v605
      %v607 = vrot.slane %v548, 5
      %v608 = vrot.slane %v607, 4
      %v609 = vrot.slane %v549, 5
      %v610 = vsel %vm574, %v608, %v609
      %v611 = vrot.slane %v550, 5
      %v612 = vrot.slane %v611, 4
      %v613 = vrot.slane %v551, 5
      %v614 = vsel %vm574, %v612, %v613
      %615 = vrot.lane.b32.xlu0 %v575, 64
      %v616 = vpop.permute.xlu0 %615
      %617 = vrot.lane.b32.xlu0 %v578, 64
      %v618 = vpop.permute.xlu0 %617
      %619 = vrot.lane.b32.xlu0 %v579, 64
      %v620 = vpop.permute.xlu0 %619
      %621 = vrot.lane.b32.xlu0 %v582, 64
      %v622 = vpop.permute.xlu0 %621
      %623 = vrot.lane.b32.xlu0 %v583, 64
      %v624 = vpop.permute.xlu0 %623
      %625 = vrot.lane.b32.xlu0 %v586, 64
      %v626 = vpop.permute.xlu0 %625
      %627 = vrot.lane.b32.xlu0 %v587, 64
      %v628 = vpop.permute.xlu0 %627
      %629 = vrot.lane.b32.xlu0 %v590, 64
      %v630 = vpop.permute.xlu0 %629
      %631 = vrot.lane.b32.xlu0 %v591, 64
      %v632 = vpop.permute.xlu0 %631
      %633 = vrot.lane.b32.xlu0 %v594, 64
      %v634 = vpop.permute.xlu0 %633
      %635 = vrot.lane.b32.xlu0 %v595, 64
      %v636 = vpop.permute.xlu0 %635
      %637 = vrot.lane.b32.xlu0 %v598, 64
      %v638 = vpop.permute.xlu0 %637
      %639 = vrot.lane.b32.xlu0 %v599, 64
      %v640 = vpop.permute.xlu0 %639
      %641 = vrot.lane.b32.xlu0 %v602, 64
      %v642 = vpop.permute.xlu0 %641
      %643 = vrot.lane.b32.xlu0 %v603, 64
      %v644 = vpop.permute.xlu0 %643
      %645 = vrot.lane.b32.xlu0 %v606, 64
      %v646 = vpop.permute.xlu0 %645
      %647 = vrot.lane.b32.xlu0 %v607, 64
      %v648 = vpop.permute.xlu0 %647
      %649 = vrot.lane.b32.xlu0 %v610, 64
      %v650 = vpop.permute.xlu0 %649
      %651 = vrot.lane.b32.xlu0 %v611, 64
      %v652 = vpop.permute.xlu0 %651
      %653 = vrot.lane.b32.xlu0 %v614, 64
      %v654 = vpop.permute.xlu0 %653
      %s675 = scalar_lea.vmem [#allocation2], 432
      %vm676 = vcmask 1043971
      %677 = vst.msk [vmem:[%s675] sm:$0x8] %vm676, %v616
      %vm678 = vcmask 1043968
      %679 = vst.msk [vmem:[%s675 + $0x24] sm:$0xf] %vm678, %v618
      %680 = vst.msk [vmem:[%s675 + $0x48] sm:$0x8] %vm676, %v620
      %681 = vst.msk [vmem:[%s675 + $0x6c] sm:$0xf] %vm678, %v622
      %682 = vst.msk [vmem:[%s675 + $0x90] sm:$0x8] %vm676, %v624
      %683 = vst.msk [vmem:[%s675 + $0xb4] sm:$0xf] %vm678, %v626
      %684 = vst.msk [vmem:[%s675 + $0xd8] sm:$0x8] %vm676, %v628
      %685 = vst.msk [vmem:[%s675 + $0xfc] sm:$0xf] %vm678, %v630
      %686 = vst.msk [vmem:[%s675 + $0x120] sm:$0x8] %vm676, %v632
      %687 = vst.msk [vmem:[%s675 + $0x144] sm:$0xf] %vm678, %v634
      %688 = vst.msk [vmem:[%s675 + $0x168] sm:$0x8] %vm676, %v636
      %689 = vst.msk [vmem:[%s675 + $0x18c] sm:$0xf] %vm678, %v638
      %690 = vst.msk [vmem:[%s675 + $0x1b0] sm:$0x8] %vm676, %v640
      %691 = vst.msk [vmem:[%s675 + $0x1d4] sm:$0xf] %vm678, %v642
      %692 = vst.msk [vmem:[%s675 + $0x1f8] sm:$0x8] %vm676, %v644
      %693 = vst.msk [vmem:[%s675 + $0x21c] sm:$0xf] %vm678, %v646
      %694 = vst.msk [vmem:[%s675 + $0x240] sm:$0x8] %vm676, %v648
      %695 = vst.msk [vmem:[%s675 + $0x264] sm:$0xf] %vm678, %v650
      %696 = vst.msk [vmem:[%s675 + $0x288] sm:$0x8] %vm676, %v652
      %697 = vst.msk [vmem:[%s675 + $0x2ac] sm:$0xf] %vm678, %v654
      %v698 = vld [vmem:[%s300] sm:$0xf]
      %v699 = vld [vmem:[%s300 + $0x4] sm:$0xf]
      %v700 = vld [vmem:[%s300 + $0x8] sm:$0xf]
      %v701 = vld [vmem:[%s300 + $0xc] sm:$0xf]
      %v702 = vld [vmem:[%s300 + $0x10] sm:$0xf]
      %v703 = vld [vmem:[%s300 + $0x14] sm:$0xf]
      %v704 = vld [vmem:[%s300 + $0x18] sm:$0xf]
      %v705 = vld [vmem:[%s300 + $0x1c] sm:$0xf]
      %v706 = vld [vmem:[%s300 + $0x20] sm:$0xf]
      %v707 = vld [vmem:[%s300 + $0x24] sm:$0xf]
      %v708 = vld [vmem:[%s300 + $0x28] sm:$0xf]
      %v709 = vld [vmem:[%s300 + $0x2c] sm:$0xf]
      %v710 = vld [vmem:[%s300 + $0x30] sm:$0xf]
      %v711 = vld [vmem:[%s300 + $0x34] sm:$0xf]
      %v712 = vld [vmem:[%s300 + $0x38] sm:$0xf]
      %v713 = vld [vmem:[%s300 + $0x3c] sm:$0xf]
      %v714 = vld [vmem:[%s300 + $0x40] sm:$0xf]
      %v715 = vld [vmem:[%s300 + $0x44] sm:$0xf]
      %v716 = vld [vmem:[%s300 + $0x48] sm:$0xf]
      %v717 = vld [vmem:[%s300 + $0x4c] sm:$0xf]
      %718 = vst.msk [vmem:[%s675 + $0x4] sm:$0xf] %vm499, %v698
      %719 = vst.msk [vmem:[%s675 + $0x28] sm:$0xf] %vm499, %v699
      %720 = vst.msk [vmem:[%s675 + $0x4c] sm:$0xf] %vm499, %v700
      %721 = vst.msk [vmem:[%s675 + $0x70] sm:$0xf] %vm499, %v701
      %722 = vst.msk [vmem:[%s675 + $0x94] sm:$0xf] %vm499, %v702
      %723 = vst.msk [vmem:[%s675 + $0xb8] sm:$0xf] %vm499, %v703
      %724 = vst.msk [vmem:[%s675 + $0xdc] sm:$0xf] %vm499, %v704
      %725 = vst.msk [vmem:[%s675 + $0x100] sm:$0xf] %vm499, %v705
      %726 = vst.msk [vmem:[%s675 + $0x124] sm:$0xf] %vm499, %v706
      %727 = vst.msk [vmem:[%s675 + $0x148] sm:$0xf] %vm499, %v707
      %728 = vst.msk [vmem:[%s675 + $0x16c] sm:$0xf] %vm499, %v708
      %729 = vst.msk [vmem:[%s675 + $0x190] sm:$0xf] %vm499, %v709
      %730 = vst.msk [vmem:[%s675 + $0x1b4] sm:$0xf] %vm499, %v710
      %731 = vst.msk [vmem:[%s675 + $0x1d8] sm:$0xf] %vm499, %v711
      %732 = vst.msk [vmem:[%s675 + $0x1fc] sm:$0xf] %vm499, %v712
      %733 = vst.msk [vmem:[%s675 + $0x220] sm:$0xf] %vm499, %v713
      %734 = vst.msk [vmem:[%s675 + $0x244] sm:$0xf] %vm499, %v714
      %735 = vst.msk [vmem:[%s675 + $0x268] sm:$0xf] %vm499, %v715
      %736 = vst.msk [vmem:[%s675 + $0x28c] sm:$0xf] %vm499, %v716
      %737 = vst.msk [vmem:[%s675 + $0x2b0] sm:$0xf] %vm499, %v717
      %v738 = vld [vmem:[%s300] sm:$0x8]
      %v739 = vld [vmem:[%s300 + $0x4] sm:$0xf]
      %v740 = vld [vmem:[%s300 + $0x8] sm:$0x8]
      %v741 = vld [vmem:[%s300 + $0xc] sm:$0xf]
      %v742 = vld [vmem:[%s300 + $0x10] sm:$0x8]
      %v743 = vld [vmem:[%s300 + $0x14] sm:$0xf]
      %v744 = vld [vmem:[%s300 + $0x18] sm:$0x8]
      %v745 = vld [vmem:[%s300 + $0x1c] sm:$0xf]
      %v746 = vld [vmem:[%s300 + $0x20] sm:$0x8]
      %v747 = vld [vmem:[%s300 + $0x24] sm:$0xf]
      %v748 = vld [vmem:[%s300 + $0x28] sm:$0x8]
      %v749 = vld [vmem:[%s300 + $0x2c] sm:$0xf]
      %v750 = vld [vmem:[%s300 + $0x30] sm:$0x8]
      %v751 = vld [vmem:[%s300 + $0x34] sm:$0xf]
      %v752 = vld [vmem:[%s300 + $0x38] sm:$0x8]
      %v753 = vld [vmem:[%s300 + $0x3c] sm:$0xf]
      %v754 = vld [vmem:[%s300 + $0x40] sm:$0x8]
      %v755 = vld [vmem:[%s300 + $0x44] sm:$0xf]
      %v756 = vld [vmem:[%s300 + $0x48] sm:$0x8]
      %v757 = vld [vmem:[%s300 + $0x4c] sm:$0xf]
      %vm778 = vcmask 1040384
      %vm779 = vcmask 1044484
      %vm780 = vmor %vm778, %vm779
      %v781 = vrot.slane %v738, 7
      %v782 = vrot.slane %v781, 4
      %v783 = vrot.slane %v739, 7
      %v784 = vsel %vm780, %v782, %v783
      %v785 = vrot.slane %v783, 4
      %v786 = vrot.slane %v740, 7
      %v787 = vrot.slane %v786, 4
      %v788 = vrot.slane %v741, 7
      %v789 = vsel %vm780, %v787, %v788
      %v790 = vrot.slane %v788, 4
      %v791 = vrot.slane %v742, 7
      %v792 = vrot.slane %v791, 4
      %v793 = vrot.slane %v743, 7
      %v794 = vsel %vm780, %v792, %v793
      %v795 = vrot.slane %v793, 4
      %v796 = vrot.slane %v744, 7
      %v797 = vrot.slane %v796, 4
      %v798 = vrot.slane %v745, 7
      %v799 = vsel %vm780, %v797, %v798
      %v800 = vrot.slane %v798, 4
      %v801 = vrot.slane %v746, 7
      %v802 = vrot.slane %v801, 4
      %v803 = vrot.slane %v747, 7
      %v804 = vsel %vm780, %v802, %v803
      %v805 = vrot.slane %v803, 4
      %v806 = vrot.slane %v748, 7
      %v807 = vrot.slane %v806, 4
      %v808 = vrot.slane %v749, 7
      %v809 = vsel %vm780, %v807, %v808
      %v810 = vrot.slane %v808, 4
      %v811 = vrot.slane %v750, 7
      %v812 = vrot.slane %v811, 4
      %v813 = vrot.slane %v751, 7
      %v814 = vsel %vm780, %v812, %v813
      %v815 = vrot.slane %v813, 4
      %v816 = vrot.slane %v752, 7
      %v817 = vrot.slane %v816, 4
      %v818 = vrot.slane %v753, 7
      %v819 = vsel %vm780, %v817, %v818
      %v820 = vrot.slane %v818, 4
      %v821 = vrot.slane %v754, 7
      %v822 = vrot.slane %v821, 4
      %v823 = vrot.slane %v755, 7
      %v824 = vsel %vm780, %v822, %v823
      %v825 = vrot.slane %v823, 4
      %v826 = vrot.slane %v756, 7
      %v827 = vrot.slane %v826, 4
      %v828 = vrot.slane %v757, 7
      %v829 = vsel %vm780, %v827, %v828
      %v830 = vrot.slane %v828, 4
      %831 = vrot.lane.b32.xlu0 %v784, 64
      %v832 = vpop.permute.xlu0 %831
      %833 = vrot.lane.b32.xlu0 %v785, 64
      %v834 = vpop.permute.xlu0 %833
      %835 = vrot.lane.b32.xlu0 %v789, 64
      %v836 = vpop.permute.xlu0 %835
      %837 = vrot.lane.b32.xlu0 %v790, 64
      %v838 = vpop.permute.xlu0 %837
      %839 = vrot.lane.b32.xlu0 %v794, 64
      %v840 = vpop.permute.xlu0 %839
      %841 = vrot.lane.b32.xlu0 %v795, 64
      %v842 = vpop.permute.xlu0 %841
      %843 = vrot.lane.b32.xlu0 %v799, 64
      %v844 = vpop.permute.xlu0 %843
      %845 = vrot.lane.b32.xlu0 %v800, 64
      %v846 = vpop.permute.xlu0 %845
      %847 = vrot.lane.b32.xlu0 %v804, 64
      %v848 = vpop.permute.xlu0 %847
      %849 = vrot.lane.b32.xlu0 %v805, 64
      %v850 = vpop.permute.xlu0 %849
      %851 = vrot.lane.b32.xlu0 %v809, 64
      %v852 = vpop.permute.xlu0 %851
      %853 = vrot.lane.b32.xlu0 %v810, 64
      %v854 = vpop.permute.xlu0 %853
      %855 = vrot.lane.b32.xlu0 %v814, 64
      %v856 = vpop.permute.xlu0 %855
      %857 = vrot.lane.b32.xlu0 %v815, 64
      %v858 = vpop.permute.xlu0 %857
      %859 = vrot.lane.b32.xlu0 %v819, 64
      %v860 = vpop.permute.xlu0 %859
      %861 = vrot.lane.b32.xlu0 %v820, 64
      %v862 = vpop.permute.xlu0 %861
      %863 = vrot.lane.b32.xlu0 %v824, 64
      %v864 = vpop.permute.xlu0 %863
      %865 = vrot.lane.b32.xlu0 %v825, 64
      %v866 = vpop.permute.xlu0 %865
      %867 = vrot.lane.b32.xlu0 %v829, 64
      %v868 = vpop.permute.xlu0 %867
      %869 = vrot.lane.b32.xlu0 %v830, 64
      %v870 = vpop.permute.xlu0 %869
      %891 = vst.msk [vmem:[%s675 + $0x4] sm:$0xf] %vm678, %v832
      %vm892 = vcmask 1040896
      %893 = vst.msk [vmem:[%s675 + $0x28] sm:$0x1] %vm892, %v834
      %894 = vst.msk [vmem:[%s675 + $0x4c] sm:$0xf] %vm678, %v836
      %895 = vst.msk [vmem:[%s675 + $0x70] sm:$0x1] %vm892, %v838
      %896 = vst.msk [vmem:[%s675 + $0x94] sm:$0xf] %vm678, %v840
      %897 = vst.msk [vmem:[%s675 + $0xb8] sm:$0x1] %vm892, %v842
      %898 = vst.msk [vmem:[%s675 + $0xdc] sm:$0xf] %vm678, %v844
      %899 = vst.msk [vmem:[%s675 + $0x100] sm:$0x1] %vm892, %v846
      %900 = vst.msk [vmem:[%s675 + $0x124] sm:$0xf] %vm678, %v848
      %901 = vst.msk [vmem:[%s675 + $0x148] sm:$0x1] %vm892, %v850
      %902 = vst.msk [vmem:[%s675 + $0x16c] sm:$0xf] %vm678, %v852
      %903 = vst.msk [vmem:[%s675 + $0x190] sm:$0x1] %vm892, %v854
      %904 = vst.msk [vmem:[%s675 + $0x1b4] sm:$0xf] %vm678, %v856
      %905 = vst.msk [vmem:[%s675 + $0x1d8] sm:$0x1] %vm892, %v858
      %906 = vst.msk [vmem:[%s675 + $0x1fc] sm:$0xf] %vm678, %v860
      %907 = vst.msk [vmem:[%s675 + $0x220] sm:$0x1] %vm892, %v862
      %908 = vst.msk [vmem:[%s675 + $0x244] sm:$0xf] %vm678, %v864
      %909 = vst.msk [vmem:[%s675 + $0x268] sm:$0x1] %vm892, %v866
      %910 = vst.msk [vmem:[%s675 + $0x28c] sm:$0xf] %vm678, %v868
      %911 = vst.msk [vmem:[%s675 + $0x2b0] sm:$0x1] %vm892, %v870
      %v912 = vld [vmem:[%s300] sm:$0xf]
      %v913 = vld [vmem:[%s300 + $0x4] sm:$0x1]
      %v914 = vld [vmem:[%s300 + $0x8] sm:$0xf]
      %v915 = vld [vmem:[%s300 + $0xc] sm:$0x1]
      %v916 = vld [vmem:[%s300 + $0x10] sm:$0xf]
      %v917 = vld [vmem:[%s300 + $0x14] sm:$0x1]
      %v918 = vld [vmem:[%s300 + $0x18] sm:$0xf]
      %v919 = vld [vmem:[%s300 + $0x1c] sm:$0x1]
      %v920 = vld [vmem:[%s300 + $0x20] sm:$0xf]
      %v921 = vld [vmem:[%s300 + $0x24] sm:$0x1]
      %v922 = vld [vmem:[%s300 + $0x28] sm:$0xf]
      %v923 = vld [vmem:[%s300 + $0x2c] sm:$0x1]
      %v924 = vld [vmem:[%s300 + $0x30] sm:$0xf]
      %v925 = vld [vmem:[%s300 + $0x34] sm:$0x1]
      %v926 = vld [vmem:[%s300 + $0x38] sm:$0xf]
      %v927 = vld [vmem:[%s300 + $0x3c] sm:$0x1]
      %v928 = vld [vmem:[%s300 + $0x40] sm:$0xf]
      %v929 = vld [vmem:[%s300 + $0x44] sm:$0x1]
      %v930 = vld [vmem:[%s300 + $0x48] sm:$0xf]
      %v931 = vld [vmem:[%s300 + $0x4c] sm:$0x1]
      %v932 = vld [vmem:[%s300 + $0x50] sm:$0xf]
      %v933 = vld [vmem:[%s300 + $0x54] sm:$0x1]
      %v934 = vld [vmem:[%s300 + $0x58] sm:$0xf]
      %v935 = vld [vmem:[%s300 + $0x5c] sm:$0x1]
      %v936 = vld [vmem:[%s300 + $0x60] sm:$0xf]
      %v937 = vld [vmem:[%s300 + $0x64] sm:$0x1]
      %v938 = vld [vmem:[%s300 + $0x68] sm:$0xf]
      %v939 = vld [vmem:[%s300 + $0x6c] sm:$0x1]
      %v940 = vld [vmem:[%s300 + $0x70] sm:$0xf]
      %v941 = vld [vmem:[%s300 + $0x74] sm:$0x1]
      %v942 = vld [vmem:[%s300 + $0x78] sm:$0xf]
      %v943 = vld [vmem:[%s300 + $0x7c] sm:$0x1]
      %v976 = vrot.slane %v912, 5
      %v977 = vrot.slane %v976, 4
      %v978 = vrot.slane %v913, 5
      %v979 = vsel %vm574, %v977, %v978
      %v980 = vrot.slane %v914, 5
      %v981 = vrot.slane %v980, 4
      %v982 = vrot.slane %v915, 5
      %v983 = vsel %vm574, %v981, %v982
      %v984 = vrot.slane %v916, 5
      %v985 = vrot.slane %v984, 4
      %v986 = vrot.slane %v917, 5
      %v987 = vsel %vm574, %v985, %v986
      %v988 = vrot.slane %v918, 5
      %v989 = vrot.slane %v988, 4
      %v990 = vrot.slane %v919, 5
      %v991 = vsel %vm574, %v989, %v990
      %v992 = vrot.slane %v920, 5
      %v993 = vrot.slane %v992, 4
      %v994 = vrot.slane %v921, 5
      %v995 = vsel %vm574, %v993, %v994
      %v996 = vrot.slane %v922, 5
      %v997 = vrot.slane %v996, 4
      %v998 = vrot.slane %v923, 5
      %v999 = vsel %vm574, %v997, %v998
      %v1000 = vrot.slane %v924, 5
      %v1001 = vrot.slane %v1000, 4
      %v1002 = vrot.slane %v925, 5
      %v1003 = vsel %vm574, %v1001, %v1002
      %v1004 = vrot.slane %v926, 5
      %v1005 = vrot.slane %v1004, 4
      %v1006 = vrot.slane %v927, 5
      %v1007 = vsel %vm574, %v1005, %v1006
      %v1008 = vrot.slane %v928, 5
      %v1009 = vrot.slane %v1008, 4
      %v1010 = vrot.slane %v929, 5
      %v1011 = vsel %vm574, %v1009, %v1010
      %v1012 = vrot.slane %v930, 5
      %v1013 = vrot.slane %v1012, 4
      %v1014 = vrot.slane %v931, 5
      %v1015 = vsel %vm574, %v1013, %v1014
      %v1016 = vrot.slane %v932, 5
      %v1017 = vrot.slane %v1016, 4
      %v1018 = vrot.slane %v933, 5
      %v1019 = vsel %vm574, %v1017, %v1018
      %v1020 = vrot.slane %v934, 5
      %v1021 = vrot.slane %v1020, 4
      %v1022 = vrot.slane %v935, 5
      %v1023 = vsel %vm574, %v1021, %v1022
      %v1024 = vrot.slane %v936, 5
      %v1025 = vrot.slane %v1024, 4
      %v1026 = vrot.slane %v937, 5
      %v1027 = vsel %vm574, %v1025, %v1026
      %v1028 = vrot.slane %v938, 5
      %v1029 = vrot.slane %v1028, 4
      %v1030 = vrot.slane %v939, 5
      %v1031 = vsel %vm574, %v1029, %v1030
      %v1032 = vrot.slane %v940, 5
      %v1033 = vrot.slane %v1032, 4
      %v1034 = vrot.slane %v941, 5
      %v1035 = vsel %vm574, %v1033, %v1034
      %v1036 = vrot.slane %v942, 5
      %v1037 = vrot.slane %v1036, 4
      %v1038 = vrot.slane %v943, 5
      %v1039 = vsel %vm574, %v1037, %v1038
      %vm1072 = vcmask 519171
      %1073 = vst.msk [vmem:[#allocation2 + $0x8] sm:$0x8] %vm1072, %v976
      %1074 = vst.msk [vmem:[#allocation2 + $0x2c] sm:$0xf] %vm499, %v979
      %1075 = vst.msk [vmem:[#allocation2 + $0x50] sm:$0x8] %vm1072, %v980
      %1076 = vst.msk [vmem:[#allocation2 + $0x74] sm:$0xf] %vm499, %v983
      %1077 = vst.msk [vmem:[#allocation2 + $0x98] sm:$0x8] %vm1072, %v984
      %1078 = vst.msk [vmem:[#allocation2 + $0xbc] sm:$0xf] %vm499, %v987
      %1079 = vst.msk [vmem:[#allocation2 + $0xe0] sm:$0x8] %vm1072, %v988
      %1080 = vst.msk [vmem:[#allocation2 + $0x104] sm:$0xf] %vm499, %v991
      %1081 = vst.msk [vmem:[#allocation2 + $0x128] sm:$0x8] %vm1072, %v992
      %1082 = vst.msk [vmem:[#allocation2 + $0x14c] sm:$0xf] %vm499, %v995
      %1083 = vst.msk [vmem:[#allocation2 + $0x170] sm:$0x8] %vm1072, %v996
      %1084 = vst.msk [vmem:[#allocation2 + $0x194] sm:$0xf] %vm499, %v999
      %1085 = vst.msk [vmem:[#allocation2 + $0x1b8] sm:$0x8] %vm1072, %v1000
      %1086 = vst.msk [vmem:[#allocation2 + $0x1dc] sm:$0xf] %vm499, %v1003
      %1087 = vst.msk [vmem:[#allocation2 + $0x200] sm:$0x8] %vm1072, %v1004
      %1088 = vst.msk [vmem:[#allocation2 + $0x224] sm:$0xf] %vm499, %v1007
      %1089 = vst.msk [vmem:[#allocation2 + $0x248] sm:$0x8] %vm1072, %v1008
      %1090 = vst.msk [vmem:[#allocation2 + $0x26c] sm:$0xf] %vm499, %v1011
      %1091 = vst.msk [vmem:[#allocation2 + $0x290] sm:$0x8] %vm1072, %v1012
      %1092 = vst.msk [vmem:[#allocation2 + $0x2b4] sm:$0xf] %vm499, %v1015
      %1093 = vst.msk [vmem:[#allocation2 + $0x2d8] sm:$0x8] %vm1072, %v1016
      %1094 = vst.msk [vmem:[#allocation2 + $0x2fc] sm:$0xf] %vm499, %v1019
      %1095 = vst.msk [vmem:[#allocation2 + $0x320] sm:$0x8] %vm1072, %v1020
      %1096 = vst.msk [vmem:[#allocation2 + $0x344] sm:$0xf] %vm499, %v1023
      %1097 = vst.msk [vmem:[#allocation2 + $0x368] sm:$0x8] %vm1072, %v1024
      %1098 = vst.msk [vmem:[#allocation2 + $0x38c] sm:$0xf] %vm499, %v1027
      %1099 = vst.msk [vmem:[#allocation2 + $0x3b0] sm:$0x8] %vm1072, %v1028
      %1100 = vst.msk [vmem:[#allocation2 + $0x3d4] sm:$0xf] %vm499, %v1031
      %1101 = vst.msk [vmem:[#allocation2 + $0x3f8] sm:$0x8] %vm1072, %v1032
      %1102 = vst.msk [vmem:[#allocation2 + $0x41c] sm:$0xf] %vm499, %v1035
      %1103 = vst.msk [vmem:[#allocation2 + $0x440] sm:$0x8] %vm1072, %v1036
      %1104 = vst.msk [vmem:[#allocation2 + $0x464] sm:$0xf] %vm499, %v1039
      %v1105 = vld [vmem:[%s300] sm:$0x8]
      %v1106 = vld [vmem:[%s300 + $0x4] sm:$0xf]
      %v1107 = vld [vmem:[%s300 + $0x8] sm:$0x8]
      %v1108 = vld [vmem:[%s300 + $0xc] sm:$0xf]
      %v1109 = vld [vmem:[%s300 + $0x10] sm:$0x8]
      %v1110 = vld [vmem:[%s300 + $0x14] sm:$0xf]
      %v1111 = vld [vmem:[%s300 + $0x18] sm:$0x8]
      %v1112 = vld [vmem:[%s300 + $0x1c] sm:$0xf]
      %v1113 = vld [vmem:[%s300 + $0x20] sm:$0x8]
      %v1114 = vld [vmem:[%s300 + $0x24] sm:$0xf]
      %v1115 = vld [vmem:[%s300 + $0x28] sm:$0x8]
      %v1116 = vld [vmem:[%s300 + $0x2c] sm:$0xf]
      %v1117 = vld [vmem:[%s300 + $0x30] sm:$0x8]
      %v1118 = vld [vmem:[%s300 + $0x34] sm:$0xf]
      %v1119 = vld [vmem:[%s300 + $0x38] sm:$0x8]
      %v1120 = vld [vmem:[%s300 + $0x3c] sm:$0xf]
      %v1121 = vld [vmem:[%s300 + $0x40] sm:$0x8]
      %v1122 = vld [vmem:[%s300 + $0x44] sm:$0xf]
      %v1123 = vld [vmem:[%s300 + $0x48] sm:$0x8]
      %v1124 = vld [vmem:[%s300 + $0x4c] sm:$0xf]
      %v1125 = vld [vmem:[%s300 + $0x50] sm:$0x8]
      %v1126 = vld [vmem:[%s300 + $0x54] sm:$0xf]
      %v1127 = vld [vmem:[%s300 + $0x58] sm:$0x8]
      %v1128 = vld [vmem:[%s300 + $0x5c] sm:$0xf]
      %v1129 = vld [vmem:[%s300 + $0x60] sm:$0x8]
      %v1130 = vld [vmem:[%s300 + $0x64] sm:$0xf]
      %v1131 = vld [vmem:[%s300 + $0x68] sm:$0x8]
      %v1132 = vld [vmem:[%s300 + $0x6c] sm:$0xf]
      %v1133 = vld [vmem:[%s300 + $0x70] sm:$0x8]
      %v1134 = vld [vmem:[%s300 + $0x74] sm:$0xf]
      %v1135 = vld [vmem:[%s300 + $0x78] sm:$0x8]
      %v1136 = vld [vmem:[%s300 + $0x7c] sm:$0xf]
      %v1169 = vrot.slane %v1105, 7
      %v1170 = vrot.slane %v1169, 4
      %v1171 = vrot.slane %v1106, 7
      %v1172 = vsel %vm780, %v1170, %v1171
      %v1173 = vrot.slane %v1171, 4
      %v1174 = vrot.slane %v1107, 7
      %v1175 = vrot.slane %v1174, 4
      %v1176 = vrot.slane %v1108, 7
      %v1177 = vsel %vm780, %v1175, %v1176
      %v1178 = vrot.slane %v1176, 4
      %v1179 = vrot.slane %v1109, 7
      %v1180 = vrot.slane %v1179, 4
      %v1181 = vrot.slane %v1110, 7
      %v1182 = vsel %vm780, %v1180, %v1181
      %v1183 = vrot.slane %v1181, 4
      %v1184 = vrot.slane %v1111, 7
      %v1185 = vrot.slane %v1184, 4
      %v1186 = vrot.slane %v1112, 7
      %v1187 = vsel %vm780, %v1185, %v1186
      %v1188 = vrot.slane %v1186, 4
      %v1189 = vrot.slane %v1113, 7
      %v1190 = vrot.slane %v1189, 4
      %v1191 = vrot.slane %v1114, 7
      %v1192 = vsel %vm780, %v1190, %v1191
      %v1193 = vrot.slane %v1191, 4
      %v1194 = vrot.slane %v1115, 7
      %v1195 = vrot.slane %v1194, 4
      %v1196 = vrot.slane %v1116, 7
      %v1197 = vsel %vm780, %v1195, %v1196
      %v1198 = vrot.slane %v1196, 4
      %v1199 = vrot.slane %v1117, 7
      %v1200 = vrot.slane %v1199, 4
      %v1201 = vrot.slane %v1118, 7
      %v1202 = vsel %vm780, %v1200, %v1201
      %v1203 = vrot.slane %v1201, 4
      %v1204 = vrot.slane %v1119, 7
      %v1205 = vrot.slane %v1204, 4
      %v1206 = vrot.slane %v1120, 7
      %v1207 = vsel %vm780, %v1205, %v1206
      %v1208 = vrot.slane %v1206, 4
      %v1209 = vrot.slane %v1121, 7
      %v1210 = vrot.slane %v1209, 4
      %v1211 = vrot.slane %v1122, 7
      %v1212 = vsel %vm780, %v1210, %v1211
      %v1213 = vrot.slane %v1211, 4
      %v1214 = vrot.slane %v1123, 7
      %v1215 = vrot.slane %v1214, 4
      %v1216 = vrot.slane %v1124, 7
      %v1217 = vsel %vm780, %v1215, %v1216
      %v1218 = vrot.slane %v1216, 4
      %v1219 = vrot.slane %v1125, 7
      %v1220 = vrot.slane %v1219, 4
      %v1221 = vrot.slane %v1126, 7
      %v1222 = vsel %vm780, %v1220, %v1221
      %v1223 = vrot.slane %v1221, 4
      %v1224 = vrot.slane %v1127, 7
      %v1225 = vrot.slane %v1224, 4
      %v1226 = vrot.slane %v1128, 7
      %v1227 = vsel %vm780, %v1225, %v1226
      %v1228 = vrot.slane %v1226, 4
      %v1229 = vrot.slane %v1129, 7
      %v1230 = vrot.slane %v1229, 4
      %v1231 = vrot.slane %v1130, 7
      %v1232 = vsel %vm780, %v1230, %v1231
      %v1233 = vrot.slane %v1231, 4
      %v1234 = vrot.slane %v1131, 7
      %v1235 = vrot.slane %v1234, 4
      %v1236 = vrot.slane %v1132, 7
      %v1237 = vsel %vm780, %v1235, %v1236
      %v1238 = vrot.slane %v1236, 4
      %v1239 = vrot.slane %v1133, 7
      %v1240 = vrot.slane %v1239, 4
      %v1241 = vrot.slane %v1134, 7
      %v1242 = vsel %vm780, %v1240, %v1241
      %v1243 = vrot.slane %v1241, 4
      %v1244 = vrot.slane %v1135, 7
      %v1245 = vrot.slane %v1244, 4
      %v1246 = vrot.slane %v1136, 7
      %v1247 = vsel %vm780, %v1245, %v1246
      %v1248 = vrot.slane %v1246, 4
      %1249 = vrot.lane.b32.xlu0 %v1172, 64
      %v1250 = vpop.permute.xlu0 %1249
      %1251 = vrot.lane.b32.xlu0 %v1173, 64
      %v1252 = vpop.permute.xlu0 %1251
      %1253 = vrot.lane.b32.xlu0 %v1177, 64
      %v1254 = vpop.permute.xlu0 %1253
      %1255 = vrot.lane.b32.xlu0 %v1178, 64
      %v1256 = vpop.permute.xlu0 %1255
      %1257 = vrot.lane.b32.xlu0 %v1182, 64
      %v1258 = vpop.permute.xlu0 %1257
      %1259 = vrot.lane.b32.xlu0 %v1183, 64
      %v1260 = vpop.permute.xlu0 %1259
      %1261 = vrot.lane.b32.xlu0 %v1187, 64
      %v1262 = vpop.permute.xlu0 %1261
      %1263 = vrot.lane.b32.xlu0 %v1188, 64
      %v1264 = vpop.permute.xlu0 %1263
      %1265 = vrot.lane.b32.xlu0 %v1192, 64
      %v1266 = vpop.permute.xlu0 %1265
      %1267 = vrot.lane.b32.xlu0 %v1193, 64
      %v1268 = vpop.permute.xlu0 %1267
      %1269 = vrot.lane.b32.xlu0 %v1197, 64
      %v1270 = vpop.permute.xlu0 %1269
      %1271 = vrot.lane.b32.xlu0 %v1198, 64
      %v1272 = vpop.permute.xlu0 %1271
      %1273 = vrot.lane.b32.xlu0 %v1202, 64
      %v1274 = vpop.permute.xlu0 %1273
      %1275 = vrot.lane.b32.xlu0 %v1203, 64
      %v1276 = vpop.permute.xlu0 %1275
      %1277 = vrot.lane.b32.xlu0 %v1207, 64
      %v1278 = vpop.permute.xlu0 %1277
      %1279 = vrot.lane.b32.xlu0 %v1208, 64
      %v1280 = vpop.permute.xlu0 %1279
      %1281 = vrot.lane.b32.xlu0 %v1212, 64
      %v1282 = vpop.permute.xlu0 %1281
      %1283 = vrot.lane.b32.xlu0 %v1213, 64
      %v1284 = vpop.permute.xlu0 %1283
      %1285 = vrot.lane.b32.xlu0 %v1217, 64
      %v1286 = vpop.permute.xlu0 %1285
      %1287 = vrot.lane.b32.xlu0 %v1218, 64
      %v1288 = vpop.permute.xlu0 %1287
      %1289 = vrot.lane.b32.xlu0 %v1222, 64
      %v1290 = vpop.permute.xlu0 %1289
      %1291 = vrot.lane.b32.xlu0 %v1223, 64
      %v1292 = vpop.permute.xlu0 %1291
      %1293 = vrot.lane.b32.xlu0 %v1227, 64
      %v1294 = vpop.permute.xlu0 %1293
      %1295 = vrot.lane.b32.xlu0 %v1228, 64
      %v1296 = vpop.permute.xlu0 %1295
      %1297 = vrot.lane.b32.xlu0 %v1232, 64
      %v1298 = vpop.permute.xlu0 %1297
      %1299 = vrot.lane.b32.xlu0 %v1233, 64
      %v1300 = vpop.permute.xlu0 %1299
      %1301 = vrot.lane.b32.xlu0 %v1237, 64
      %v1302 = vpop.permute.xlu0 %1301
      %1303 = vrot.lane.b32.xlu0 %v1238, 64
      %v1304 = vpop.permute.xlu0 %1303
      %1305 = vrot.lane.b32.xlu0 %v1242, 64
      %v1306 = vpop.permute.xlu0 %1305
      %1307 = vrot.lane.b32.xlu0 %v1243, 64
      %v1308 = vpop.permute.xlu0 %1307
      %1309 = vrot.lane.b32.xlu0 %v1247, 64
      %v1310 = vpop.permute.xlu0 %1309
      %1311 = vrot.lane.b32.xlu0 %v1248, 64
      %v1312 = vpop.permute.xlu0 %1311
      %1345 = vst.msk [vmem:[#allocation2 + $0x8] sm:$0xf] %vm678, %v1250
      %1346 = vst.msk [vmem:[#allocation2 + $0x2c] sm:$0x1] %vm892, %v1252
      %1347 = vst.msk [vmem:[#allocation2 + $0x50] sm:$0xf] %vm678, %v1254
      %1348 = vst.msk [vmem:[#allocation2 + $0x74] sm:$0x1] %vm892, %v1256
      %1349 = vst.msk [vmem:[#allocation2 + $0x98] sm:$0xf] %vm678, %v1258
      %1350 = vst.msk [vmem:[#allocation2 + $0xbc] sm:$0x1] %vm892, %v1260
      %1351 = vst.msk [vmem:[#allocation2 + $0xe0] sm:$0xf] %vm678, %v1262
      %1352 = vst.msk [vmem:[#allocation2 + $0x104] sm:$0x1] %vm892, %v1264
      %1353 = vst.msk [vmem:[#allocation2 + $0x128] sm:$0xf] %vm678, %v1266
      %1354 = vst.msk [vmem:[#allocation2 + $0x14c] sm:$0x1] %vm892, %v1268
      %1355 = vst.msk [vmem:[#allocation2 + $0x170] sm:$0xf] %vm678, %v1270
      %1356 = vst.msk [vmem:[#allocation2 + $0x194] sm:$0x1] %vm892, %v1272
      %1357 = vst.msk [vmem:[#allocation2 + $0x1b8] sm:$0xf] %vm678, %v1274
      %1358 = vst.msk [vmem:[#allocation2 + $0x1dc] sm:$0x1] %vm892, %v1276
      %1359 = vst.msk [vmem:[#allocation2 + $0x200] sm:$0xf] %vm678, %v1278
      %1360 = vst.msk [vmem:[#allocation2 + $0x224] sm:$0x1] %vm892, %v1280
      %1361 = vst.msk [vmem:[#allocation2 + $0x248] sm:$0xf] %vm678, %v1282
      %1362 = vst.msk [vmem:[#allocation2 + $0x26c] sm:$0x1] %vm892, %v1284
      %1363 = vst.msk [vmem:[#allocation2 + $0x290] sm:$0xf] %vm678, %v1286
      %1364 = vst.msk [vmem:[#allocation2 + $0x2b4] sm:$0x1] %vm892, %v1288
      %1365 = vst.msk [vmem:[#allocation2 + $0x2d8] sm:$0xf] %vm678, %v1290
      %1366 = vst.msk [vmem:[#allocation2 + $0x2fc] sm:$0x1] %vm892, %v1292
      %1367 = vst.msk [vmem:[#allocation2 + $0x320] sm:$0xf] %vm678, %v1294
      %1368 = vst.msk [vmem:[#allocation2 + $0x344] sm:$0x1] %vm892, %v1296
      %1369 = vst.msk [vmem:[#allocation2 + $0x368] sm:$0xf] %vm678, %v1298
      %1370 = vst.msk [vmem:[#allocation2 + $0x38c] sm:$0x1] %vm892, %v1300
      %1371 = vst.msk [vmem:[#allocation2 + $0x3b0] sm:$0xf] %vm678, %v1302
      %1372 = vst.msk [vmem:[#allocation2 + $0x3d4] sm:$0x1] %vm892, %v1304
      %1373 = vst.msk [vmem:[#allocation2 + $0x3f8] sm:$0xf] %vm678, %v1306
      %1374 = vst.msk [vmem:[#allocation2 + $0x41c] sm:$0x1] %vm892, %v1308
      %1375 = vst.msk [vmem:[#allocation2 + $0x440] sm:$0xf] %vm678, %v1310
      %1376 = vst.msk [vmem:[#allocation2 + $0x464] sm:$0x1] %vm892, %v1312
      %s1377 = scalar_lea.vmem %s300, 48
      %v1378 = vld [vmem:[%s1377] sm:$0xf]
      %v1379 = vld [vmem:[%s1377 + $0x4] sm:$0x1]
      %v1380 = vld [vmem:[%s1377 + $0x8] sm:$0xf]
      %v1381 = vld [vmem:[%s1377 + $0xc] sm:$0x1]
      %v1382 = vld [vmem:[%s1377 + $0x10] sm:$0xf]
      %v1383 = vld [vmem:[%s1377 + $0x14] sm:$0x1]
      %v1384 = vld [vmem:[%s1377 + $0x18] sm:$0xf]
      %v1385 = vld [vmem:[%s1377 + $0x1c] sm:$0x1]
      %v1386 = vld [vmem:[%s1377 + $0x20] sm:$0xf]
      %v1387 = vld [vmem:[%s1377 + $0x24] sm:$0x1]
      %v1388 = vld [vmem:[%s1377 + $0x28] sm:$0xf]
      %v1389 = vld [vmem:[%s1377 + $0x2c] sm:$0x1]
      %v1390 = vld [vmem:[%s1377 + $0x30] sm:$0xf]
      %v1391 = vld [vmem:[%s1377 + $0x34] sm:$0x1]
      %v1392 = vld [vmem:[%s1377 + $0x38] sm:$0xf]
      %v1393 = vld [vmem:[%s1377 + $0x3c] sm:$0x1]
      %v1394 = vld [vmem:[%s1377 + $0x40] sm:$0xf]
      %v1395 = vld [vmem:[%s1377 + $0x44] sm:$0x1]
      %v1396 = vld [vmem:[%s1377 + $0x48] sm:$0xf]
      %v1397 = vld [vmem:[%s1377 + $0x4c] sm:$0x1]
      %v1418 = vrot.slane %v1378, 5
      %v1419 = vrot.slane %v1418, 4
      %v1420 = vrot.slane %v1379, 5
      %v1421 = vsel %vm574, %v1419, %v1420
      %v1422 = vrot.slane %v1380, 5
      %v1423 = vrot.slane %v1422, 4
      %v1424 = vrot.slane %v1381, 5
      %v1425 = vsel %vm574, %v1423, %v1424
      %v1426 = vrot.slane %v1382, 5
      %v1427 = vrot.slane %v1426, 4
      %v1428 = vrot.slane %v1383, 5
      %v1429 = vsel %vm574, %v1427, %v1428
      %v1430 = vrot.slane %v1384, 5
      %v1431 = vrot.slane %v1430, 4
      %v1432 = vrot.slane %v1385, 5
      %v1433 = vsel %vm574, %v1431, %v1432
      %v1434 = vrot.slane %v1386, 5
      %v1435 = vrot.slane %v1434, 4
      %v1436 = vrot.slane %v1387, 5
      %v1437 = vsel %vm574, %v1435, %v1436
      %v1438 = vrot.slane %v1388, 5
      %v1439 = vrot.slane %v1438, 4
      %v1440 = vrot.slane %v1389, 5
      %v1441 = vsel %vm574, %v1439, %v1440
      %v1442 = vrot.slane %v1390, 5
      %v1443 = vrot.slane %v1442, 4
      %v1444 = vrot.slane %v1391, 5
      %v1445 = vsel %vm574, %v1443, %v1444
      %v1446 = vrot.slane %v1392, 5
      %v1447 = vrot.slane %v1446, 4
      %v1448 = vrot.slane %v1393, 5
      %v1449 = vsel %vm574, %v1447, %v1448
      %v1450 = vrot.slane %v1394, 5
      %v1451 = vrot.slane %v1450, 4
      %v1452 = vrot.slane %v1395, 5
      %v1453 = vsel %vm574, %v1451, %v1452
      %v1454 = vrot.slane %v1396, 5
      %v1455 = vrot.slane %v1454, 4
      %v1456 = vrot.slane %v1397, 5
      %v1457 = vsel %vm574, %v1455, %v1456
      %1478 = vst.msk [vmem:[#allocation2 + $0xc] sm:$0x8] %vm1072, %v1418
      %1479 = vst.msk [vmem:[#allocation2 + $0x30] sm:$0xf] %vm499, %v1421
      %1480 = vst.msk [vmem:[#allocation2 + $0x54] sm:$0x8] %vm1072, %v1422
      %1481 = vst.msk [vmem:[#allocation2 + $0x78] sm:$0xf] %vm499, %v1425
      %1482 = vst.msk [vmem:[#allocation2 + $0x9c] sm:$0x8] %vm1072, %v1426
      %1483 = vst.msk [vmem:[#allocation2 + $0xc0] sm:$0xf] %vm499, %v1429
      %1484 = vst.msk [vmem:[#allocation2 + $0xe4] sm:$0x8] %vm1072, %v1430
      %1485 = vst.msk [vmem:[#allocation2 + $0x108] sm:$0xf] %vm499, %v1433
      %1486 = vst.msk [vmem:[#allocation2 + $0x12c] sm:$0x8] %vm1072, %v1434
      %1487 = vst.msk [vmem:[#allocation2 + $0x150] sm:$0xf] %vm499, %v1437
      %1488 = vst.msk [vmem:[#allocation2 + $0x174] sm:$0x8] %vm1072, %v1438
      %1489 = vst.msk [vmem:[#allocation2 + $0x198] sm:$0xf] %vm499, %v1441
      %1490 = vst.msk [vmem:[#allocation2 + $0x1bc] sm:$0x8] %vm1072, %v1442
      %1491 = vst.msk [vmem:[#allocation2 + $0x1e0] sm:$0xf] %vm499, %v1445
      %1492 = vst.msk [vmem:[#allocation2 + $0x204] sm:$0x8] %vm1072, %v1446
      %1493 = vst.msk [vmem:[#allocation2 + $0x228] sm:$0xf] %vm499, %v1449
      %1494 = vst.msk [vmem:[#allocation2 + $0x24c] sm:$0x8] %vm1072, %v1450
      %1495 = vst.msk [vmem:[#allocation2 + $0x270] sm:$0xf] %vm499, %v1453
      %1496 = vst.msk [vmem:[#allocation2 + $0x294] sm:$0x8] %vm1072, %v1454
      %1497 = vst.msk [vmem:[#allocation2 + $0x2b8] sm:$0xf] %vm499, %v1457
      %v1498 = vld [vmem:[%s1377] sm:$0xf]
      %v1499 = vld [vmem:[%s1377 + $0x4] sm:$0xf]
      %v1500 = vld [vmem:[%s1377 + $0x8] sm:$0xf]
      %v1501 = vld [vmem:[%s1377 + $0xc] sm:$0xf]
      %v1502 = vld [vmem:[%s1377 + $0x10] sm:$0xf]
      %v1503 = vld [vmem:[%s1377 + $0x14] sm:$0xf]
      %v1504 = vld [vmem:[%s1377 + $0x18] sm:$0xf]
      %v1505 = vld [vmem:[%s1377 + $0x1c] sm:$0xf]
      %v1506 = vld [vmem:[%s1377 + $0x20] sm:$0xf]
      %v1507 = vld [vmem:[%s1377 + $0x24] sm:$0xf]
      %v1508 = vld [vmem:[%s1377 + $0x28] sm:$0xf]
      %v1509 = vld [vmem:[%s1377 + $0x2c] sm:$0xf]
      %v1510 = vld [vmem:[%s1377 + $0x30] sm:$0xf]
      %v1511 = vld [vmem:[%s1377 + $0x34] sm:$0xf]
      %v1512 = vld [vmem:[%s1377 + $0x38] sm:$0xf]
      %v1513 = vld [vmem:[%s1377 + $0x3c] sm:$0xf]
      %v1514 = vld [vmem:[%s1377 + $0x40] sm:$0xf]
      %v1515 = vld [vmem:[%s1377 + $0x44] sm:$0xf]
      %v1516 = vld [vmem:[%s1377 + $0x48] sm:$0xf]
      %v1517 = vld [vmem:[%s1377 + $0x4c] sm:$0xf]
      %1538 = vrot.lane.b32.xlu0 %v1498, 64
      %v1539 = vpop.permute.xlu0 %1538
      %1540 = vrot.lane.b32.xlu0 %v1499, 64
      %v1541 = vpop.permute.xlu0 %1540
      %1542 = vrot.lane.b32.xlu0 %v1500, 64
      %v1543 = vpop.permute.xlu0 %1542
      %1544 = vrot.lane.b32.xlu0 %v1501, 64
      %v1545 = vpop.permute.xlu0 %1544
      %1546 = vrot.lane.b32.xlu0 %v1502, 64
      %v1547 = vpop.permute.xlu0 %1546
      %1548 = vrot.lane.b32.xlu0 %v1503, 64
      %v1549 = vpop.permute.xlu0 %1548
      %1550 = vrot.lane.b32.xlu0 %v1504, 64
      %v1551 = vpop.permute.xlu0 %1550
      %1552 = vrot.lane.b32.xlu0 %v1505, 64
      %v1553 = vpop.permute.xlu0 %1552
      %1554 = vrot.lane.b32.xlu0 %v1506, 64
      %v1555 = vpop.permute.xlu0 %1554
      %1556 = vrot.lane.b32.xlu0 %v1507, 64
      %v1557 = vpop.permute.xlu0 %1556
      %1558 = vrot.lane.b32.xlu0 %v1508, 64
      %v1559 = vpop.permute.xlu0 %1558
      %1560 = vrot.lane.b32.xlu0 %v1509, 64
      %v1561 = vpop.permute.xlu0 %1560
      %1562 = vrot.lane.b32.xlu0 %v1510, 64
      %v1563 = vpop.permute.xlu0 %1562
      %1564 = vrot.lane.b32.xlu0 %v1511, 64
      %v1565 = vpop.permute.xlu0 %1564
      %1566 = vrot.lane.b32.xlu0 %v1512, 64
      %v1567 = vpop.permute.xlu0 %1566
      %1568 = vrot.lane.b32.xlu0 %v1513, 64
      %v1569 = vpop.permute.xlu0 %1568
      %1570 = vrot.lane.b32.xlu0 %v1514, 64
      %v1571 = vpop.permute.xlu0 %1570
      %1572 = vrot.lane.b32.xlu0 %v1515, 64
      %v1573 = vpop.permute.xlu0 %1572
      %1574 = vrot.lane.b32.xlu0 %v1516, 64
      %v1575 = vpop.permute.xlu0 %1574
      %1576 = vrot.lane.b32.xlu0 %v1517, 64
      %v1577 = vpop.permute.xlu0 %1576
      %1598 = vst.msk [vmem:[#allocation2 + $0xc] sm:$0xf] %vm678, %v1539
      %1599 = vst.msk [vmem:[#allocation2 + $0x30] sm:$0xf] %vm678, %v1541
      %1600 = vst.msk [vmem:[#allocation2 + $0x54] sm:$0xf] %vm678, %v1543
      %1601 = vst.msk [vmem:[#allocation2 + $0x78] sm:$0xf] %vm678, %v1545
      %1602 = vst.msk [vmem:[#allocation2 + $0x9c] sm:$0xf] %vm678, %v1547
      %1603 = vst.msk [vmem:[#allocation2 + $0xc0] sm:$0xf] %vm678, %v1549
      %1604 = vst.msk [vmem:[#allocation2 + $0xe4] sm:$0xf] %vm678, %v1551
      %1605 = vst.msk [vmem:[#allocation2 + $0x108] sm:$0xf] %vm678, %v1553
      %1606 = vst.msk [vmem:[#allocation2 + $0x12c] sm:$0xf] %vm678, %v1555
      %1607 = vst.msk [vmem:[#allocation2 + $0x150] sm:$0xf] %vm678, %v1557
      %1608 = vst.msk [vmem:[#allocation2 + $0x174] sm:$0xf] %vm678, %v1559
      %1609 = vst.msk [vmem:[#allocation2 + $0x198] sm:$0xf] %vm678, %v1561
      %1610 = vst.msk [vmem:[#allocation2 + $0x1bc] sm:$0xf] %vm678, %v1563
      %1611 = vst.msk [vmem:[#allocation2 + $0x1e0] sm:$0xf] %vm678, %v1565
      %1612 = vst.msk [vmem:[#allocation2 + $0x204] sm:$0xf] %vm678, %v1567
      %1613 = vst.msk [vmem:[#allocation2 + $0x228] sm:$0xf] %vm678, %v1569
      %1614 = vst.msk [vmem:[#allocation2 + $0x24c] sm:$0xf] %vm678, %v1571
      %1615 = vst.msk [vmem:[#allocation2 + $0x270] sm:$0xf] %vm678, %v1573
      %1616 = vst.msk [vmem:[#allocation2 + $0x294] sm:$0xf] %vm678, %v1575
      %1617 = vst.msk [vmem:[#allocation2 + $0x2b8] sm:$0xf] %vm678, %v1577
      %v1618 = vld [vmem:[%s1377] sm:$0x8]
      %v1619 = vld [vmem:[%s1377 + $0x4] sm:$0xf]
      %v1620 = vld [vmem:[%s1377 + $0x8] sm:$0x8]
      %v1621 = vld [vmem:[%s1377 + $0xc] sm:$0xf]
      %v1622 = vld [vmem:[%s1377 + $0x10] sm:$0x8]
      %v1623 = vld [vmem:[%s1377 + $0x14] sm:$0xf]
      %v1624 = vld [vmem:[%s1377 + $0x18] sm:$0x8]
      %v1625 = vld [vmem:[%s1377 + $0x1c] sm:$0xf]
      %v1626 = vld [vmem:[%s1377 + $0x20] sm:$0x8]
      %v1627 = vld [vmem:[%s1377 + $0x24] sm:$0xf]
      %v1628 = vld [vmem:[%s1377 + $0x28] sm:$0x8]
      %v1629 = vld [vmem:[%s1377 + $0x2c] sm:$0xf]
      %v1630 = vld [vmem:[%s1377 + $0x30] sm:$0x8]
      %v1631 = vld [vmem:[%s1377 + $0x34] sm:$0xf]
      %v1632 = vld [vmem:[%s1377 + $0x38] sm:$0x8]
      %v1633 = vld [vmem:[%s1377 + $0x3c] sm:$0xf]
      %v1634 = vld [vmem:[%s1377 + $0x40] sm:$0x8]
      %v1635 = vld [vmem:[%s1377 + $0x44] sm:$0xf]
      %v1636 = vld [vmem:[%s1377 + $0x48] sm:$0x8]
      %v1637 = vld [vmem:[%s1377 + $0x4c] sm:$0xf]
      %v1658 = vrot.slane %v1618, 7
      %v1659 = vrot.slane %v1658, 4
      %v1660 = vrot.slane %v1619, 7
      %v1661 = vsel %vm780, %v1659, %v1660
      %v1662 = vrot.slane %v1660, 4
      %v1663 = vrot.slane %v1620, 7
      %v1664 = vrot.slane %v1663, 4
      %v1665 = vrot.slane %v1621, 7
      %v1666 = vsel %vm780, %v1664, %v1665
      %v1667 = vrot.slane %v1665, 4
      %v1668 = vrot.slane %v1622, 7
      %v1669 = vrot.slane %v1668, 4
      %v1670 = vrot.slane %v1623, 7
      %v1671 = vsel %vm780, %v1669, %v1670
      %v1672 = vrot.slane %v1670, 4
      %v1673 = vrot.slane %v1624, 7
      %v1674 = vrot.slane %v1673, 4
      %v1675 = vrot.slane %v1625, 7
      %v1676 = vsel %vm780, %v1674, %v1675
      %v1677 = vrot.slane %v1675, 4
      %v1678 = vrot.slane %v1626, 7
      %v1679 = vrot.slane %v1678, 4
      %v1680 = vrot.slane %v1627, 7
      %v1681 = vsel %vm780, %v1679, %v1680
      %v1682 = vrot.slane %v1680, 4
      %v1683 = vrot.slane %v1628, 7
      %v1684 = vrot.slane %v1683, 4
      %v1685 = vrot.slane %v1629, 7
      %v1686 = vsel %vm780, %v1684, %v1685
      %v1687 = vrot.slane %v1685, 4
      %v1688 = vrot.slane %v1630, 7
      %v1689 = vrot.slane %v1688, 4
      %v1690 = vrot.slane %v1631, 7
      %v1691 = vsel %vm780, %v1689, %v1690
      %v1692 = vrot.slane %v1690, 4
      %v1693 = vrot.slane %v1632, 7
      %v1694 = vrot.slane %v1693, 4
      %v1695 = vrot.slane %v1633, 7
      %v1696 = vsel %vm780, %v1694, %v1695
      %v1697 = vrot.slane %v1695, 4
      %v1698 = vrot.slane %v1634, 7
      %v1699 = vrot.slane %v1698, 4
      %v1700 = vrot.slane %v1635, 7
      %v1701 = vsel %vm780, %v1699, %v1700
      %v1702 = vrot.slane %v1700, 4
      %v1703 = vrot.slane %v1636, 7
      %v1704 = vrot.slane %v1703, 4
      %v1705 = vrot.slane %v1637, 7
      %v1706 = vsel %vm780, %v1704, %v1705
      %v1707 = vrot.slane %v1705, 4
      %1728 = vst.msk [vmem:[#allocation2 + $0x10] sm:$0xf] %vm499, %v1661
      %vm1729 = vcmask 516096
      %1730 = vst.msk [vmem:[#allocation2 + $0x34] sm:$0x1] %vm1729, %v1662
      %1731 = vst.msk [vmem:[#allocation2 + $0x58] sm:$0xf] %vm499, %v1666
      %1732 = vst.msk [vmem:[#allocation2 + $0x7c] sm:$0x1] %vm1729, %v1667
      %1733 = vst.msk [vmem:[#allocation2 + $0xa0] sm:$0xf] %vm499, %v1671
      %1734 = vst.msk [vmem:[#allocation2 + $0xc4] sm:$0x1] %vm1729, %v1672
      %1735 = vst.msk [vmem:[#allocation2 + $0xe8] sm:$0xf] %vm499, %v1676
      %1736 = vst.msk [vmem:[#allocation2 + $0x10c] sm:$0x1] %vm1729, %v1677
      %1737 = vst.msk [vmem:[#allocation2 + $0x130] sm:$0xf] %vm499, %v1681
      %1738 = vst.msk [vmem:[#allocation2 + $0x154] sm:$0x1] %vm1729, %v1682
      %1739 = vst.msk [vmem:[#allocation2 + $0x178] sm:$0xf] %vm499, %v1686
      %1740 = vst.msk [vmem:[#allocation2 + $0x19c] sm:$0x1] %vm1729, %v1687
      %1741 = vst.msk [vmem:[#allocation2 + $0x1c0] sm:$0xf] %vm499, %v1691
      %1742 = vst.msk [vmem:[#allocation2 + $0x1e4] sm:$0x1] %vm1729, %v1692
      %1743 = vst.msk [vmem:[#allocation2 + $0x208] sm:$0xf] %vm499, %v1696
      %1744 = vst.msk [vmem:[#allocation2 + $0x22c] sm:$0x1] %vm1729, %v1697
      %1745 = vst.msk [vmem:[#allocation2 + $0x250] sm:$0xf] %vm499, %v1701
      %1746 = vst.msk [vmem:[#allocation2 + $0x274] sm:$0x1] %vm1729, %v1702
      %1747 = vst.msk [vmem:[#allocation2 + $0x298] sm:$0xf] %vm499, %v1706
      %1748 = vst.msk [vmem:[#allocation2 + $0x2bc] sm:$0x1] %vm1729, %v1707
      %v1749 = vld [vmem:[%s300] sm:$0x3]
      %v1750 = vld [vmem:[%s300 + $0x8] sm:$0x3]
      %v1751 = vld [vmem:[%s300 + $0x10] sm:$0x3]
      %v1752 = vld [vmem:[%s300 + $0x18] sm:$0x3]
      %v1757 = vrot.slane %v1749, 6
      %v1758 = vrot.slane %v1750, 6
      %v1759 = vrot.slane %v1751, 6
      %v1760 = vrot.slane %v1752, 6
      %1761 = vrot.lane.b32.xlu0 %v1757, 64
      %v1762 = vpop.permute.xlu0 %1761
      %1763 = vrot.lane.b32.xlu0 %v1758, 64
      %v1764 = vpop.permute.xlu0 %1763
      %1765 = vrot.lane.b32.xlu0 %v1759, 64
      %v1766 = vpop.permute.xlu0 %1765
      %1767 = vrot.lane.b32.xlu0 %v1760, 64
      %v1768 = vpop.permute.xlu0 %1767
      %s1773 = scalar_lea.vmem [#allocation2], 864
      %vm1774 = vcmask 1043970
      %1775 = vst.msk [vmem:[%s1773 + $0x34] sm:$0xc] %vm1774, %v1762
      %1776 = vst.msk [vmem:[%s1773 + $0x7c] sm:$0xc] %vm1774, %v1764
      %1777 = vst.msk [vmem:[%s1773 + $0xc4] sm:$0xc] %vm1774, %v1766
      %1778 = vst.msk [vmem:[%s1773 + $0x10c] sm:$0xc] %vm1774, %v1768
      %v1779 = vld [vmem:[%s300] sm:$0xf]
      %v1780 = vld [vmem:[%s300 + $0x4] sm:$0xf]
      %v1781 = vld [vmem:[%s300 + $0x8] sm:$0xf]
      %v1782 = vld [vmem:[%s300 + $0xc] sm:$0xf]
      %v1783 = vld [vmem:[%s300 + $0x10] sm:$0xf]
      %v1784 = vld [vmem:[%s300 + $0x14] sm:$0xf]
      %v1785 = vld [vmem:[%s300 + $0x18] sm:$0xf]
      %v1786 = vld [vmem:[%s300 + $0x1c] sm:$0xf]
      %1787 = vst.msk [vmem:[%s1773 + $0x14] sm:$0xf] %vm499, %v1779
      %1788 = vst.msk [vmem:[%s1773 + $0x38] sm:$0xf] %vm499, %v1780
      %1789 = vst.msk [vmem:[%s1773 + $0x5c] sm:$0xf] %vm499, %v1781
      %1790 = vst.msk [vmem:[%s1773 + $0x80] sm:$0xf] %vm499, %v1782
      %1791 = vst.msk [vmem:[%s1773 + $0xa4] sm:$0xf] %vm499, %v1783
      %1792 = vst.msk [vmem:[%s1773 + $0xc8] sm:$0xf] %vm499, %v1784
      %1793 = vst.msk [vmem:[%s1773 + $0xec] sm:$0xf] %vm499, %v1785
      %1794 = vst.msk [vmem:[%s1773 + $0x110] sm:$0xf] %vm499, %v1786
      %v1795 = vld [vmem:[%s300 + $0x4] sm:$0xc]
      %v1796 = vld [vmem:[%s300 + $0xc] sm:$0xc]
      %v1797 = vld [vmem:[%s300 + $0x14] sm:$0xc]
      %v1798 = vld [vmem:[%s300 + $0x1c] sm:$0xc]
      %v1803 = vrot.slane %v1795, 6
      %v1804 = vrot.slane %v1803, 4
      %v1805 = vrot.slane %v1796, 6
      %v1806 = vrot.slane %v1805, 4
      %v1807 = vrot.slane %v1797, 6
      %v1808 = vrot.slane %v1807, 4
      %v1809 = vrot.slane %v1798, 6
      %v1810 = vrot.slane %v1809, 4
      %1811 = vrot.lane.b32.xlu0 %v1804, 64
      %v1812 = vpop.permute.xlu0 %1811
      %1813 = vrot.lane.b32.xlu0 %v1806, 64
      %v1814 = vpop.permute.xlu0 %1813
      %1815 = vrot.lane.b32.xlu0 %v1808, 64
      %v1816 = vpop.permute.xlu0 %1815
      %1817 = vrot.lane.b32.xlu0 %v1810, 64
      %v1818 = vpop.permute.xlu0 %1817
      %vm1823 = vcmask 1041920
      %1824 = vst.msk [vmem:[%s1773 + $0x14] sm:$0x3] %vm1823, %v1812
      %1825 = vst.msk [vmem:[%s1773 + $0x5c] sm:$0x3] %vm1823, %v1814
      %1826 = vst.msk [vmem:[%s1773 + $0xa4] sm:$0x3] %vm1823, %v1816
      %1827 = vst.msk [vmem:[%s1773 + $0xec] sm:$0x3] %vm1823, %v1818
      %v1828 = vld [vmem:[%s300] sm:$0x3]
      %v1829 = vld [vmem:[%s300 + $0x8] sm:$0x3]
      %v1830 = vld [vmem:[%s300 + $0x10] sm:$0x3]
      %v1831 = vld [vmem:[%s300 + $0x18] sm:$0x3]
      %v1832 = vld [vmem:[%s300 + $0x20] sm:$0x3]
      %v1833 = vld [vmem:[%s300 + $0x28] sm:$0x3]
      %v1834 = vld [vmem:[%s300 + $0x30] sm:$0x3]
      %v1835 = vld [vmem:[%s300 + $0x38] sm:$0x3]
      %v1836 = vld [vmem:[%s300 + $0x40] sm:$0x3]
      %v1837 = vld [vmem:[%s300 + $0x48] sm:$0x3]
      %v1838 = vld [vmem:[%s300 + $0x50] sm:$0x3]
      %v1839 = vld [vmem:[%s300 + $0x58] sm:$0x3]
      %v1840 = vld [vmem:[%s300 + $0x60] sm:$0x3]
      %v1841 = vld [vmem:[%s300 + $0x68] sm:$0x3]
      %v1842 = vld [vmem:[%s300 + $0x70] sm:$0x3]
      %v1843 = vld [vmem:[%s300 + $0x78] sm:$0x3]
      %v1860 = vrot.slane %v1828, 6
      %v1861 = vrot.slane %v1829, 6
      %v1862 = vrot.slane %v1830, 6
      %v1863 = vrot.slane %v1831, 6
      %v1864 = vrot.slane %v1832, 6
      %v1865 = vrot.slane %v1833, 6
      %v1866 = vrot.slane %v1834, 6
      %v1867 = vrot.slane %v1835, 6
      %v1868 = vrot.slane %v1836, 6
      %v1869 = vrot.slane %v1837, 6
      %v1870 = vrot.slane %v1838, 6
      %v1871 = vrot.slane %v1839, 6
      %v1872 = vrot.slane %v1840, 6
      %v1873 = vrot.slane %v1841, 6
      %v1874 = vrot.slane %v1842, 6
      %v1875 = vrot.slane %v1843, 6
      %vm1892 = vcmask 519170
      %1893 = vst.msk [vmem:[#allocation2 + $0x3c] sm:$0xc] %vm1892, %v1860
      %1894 = vst.msk [vmem:[#allocation2 + $0x84] sm:$0xc] %vm1892, %v1861
      %1895 = vst.msk [vmem:[#allocation2 + $0xcc] sm:$0xc] %vm1892, %v1862
      %1896 = vst.msk [vmem:[#allocation2 + $0x114] sm:$0xc] %vm1892, %v1863
      %1897 = vst.msk [vmem:[#allocation2 + $0x15c] sm:$0xc] %vm1892, %v1864
      %1898 = vst.msk [vmem:[#allocation2 + $0x1a4] sm:$0xc] %vm1892, %v1865
      %1899 = vst.msk [vmem:[#allocation2 + $0x1ec] sm:$0xc] %vm1892, %v1866
      %1900 = vst.msk [vmem:[#allocation2 + $0x234] sm:$0xc] %vm1892, %v1867
      %1901 = vst.msk [vmem:[#allocation2 + $0x27c] sm:$0xc] %vm1892, %v1868
      %1902 = vst.msk [vmem:[#allocation2 + $0x2c4] sm:$0xc] %vm1892, %v1869
      %1903 = vst.msk [vmem:[#allocation2 + $0x30c] sm:$0xc] %vm1892, %v1870
      %1904 = vst.msk [vmem:[#allocation2 + $0x354] sm:$0xc] %vm1892, %v1871
      %1905 = vst.msk [vmem:[#allocation2 + $0x39c] sm:$0xc] %vm1892, %v1872
      %1906 = vst.msk [vmem:[#allocation2 + $0x3e4] sm:$0xc] %vm1892, %v1873
      %1907 = vst.msk [vmem:[#allocation2 + $0x42c] sm:$0xc] %vm1892, %v1874
      %1908 = vst.msk [vmem:[#allocation2 + $0x474] sm:$0xc] %vm1892, %v1875
      %v1909 = vld [vmem:[%s300 + $0x4] sm:$0xc]
      %v1910 = vld [vmem:[%s300 + $0xc] sm:$0xc]
      %v1911 = vld [vmem:[%s300 + $0x14] sm:$0xc]
      %v1912 = vld [vmem:[%s300 + $0x1c] sm:$0xc]
      %v1913 = vld [vmem:[%s300 + $0x24] sm:$0xc]
      %v1914 = vld [vmem:[%s300 + $0x2c] sm:$0xc]
      %v1915 = vld [vmem:[%s300 + $0x34] sm:$0xc]
      %v1916 = vld [vmem:[%s300 + $0x3c] sm:$0xc]
      %v1917 = vld [vmem:[%s300 + $0x44] sm:$0xc]
      %v1918 = vld [vmem:[%s300 + $0x4c] sm:$0xc]
      %v1919 = vld [vmem:[%s300 + $0x54] sm:$0xc]
      %v1920 = vld [vmem:[%s300 + $0x5c] sm:$0xc]
      %v1921 = vld [vmem:[%s300 + $0x64] sm:$0xc]
      %v1922 = vld [vmem:[%s300 + $0x6c] sm:$0xc]
      %v1923 = vld [vmem:[%s300 + $0x74] sm:$0xc]
      %v1924 = vld [vmem:[%s300 + $0x7c] sm:$0xc]
      %v1941 = vrot.slane %v1909, 6
      %v1942 = vrot.slane %v1941, 4
      %v1943 = vrot.slane %v1910, 6
      %v1944 = vrot.slane %v1943, 4
      %v1945 = vrot.slane %v1911, 6
      %v1946 = vrot.slane %v1945, 4
      %v1947 = vrot.slane %v1912, 6
      %v1948 = vrot.slane %v1947, 4
      %v1949 = vrot.slane %v1913, 6
      %v1950 = vrot.slane %v1949, 4
      %v1951 = vrot.slane %v1914, 6
      %v1952 = vrot.slane %v1951, 4
      %v1953 = vrot.slane %v1915, 6
      %v1954 = vrot.slane %v1953, 4
      %v1955 = vrot.slane %v1916, 6
      %v1956 = vrot.slane %v1955, 4
      %v1957 = vrot.slane %v1917, 6
      %v1958 = vrot.slane %v1957, 4
      %v1959 = vrot.slane %v1918, 6
      %v1960 = vrot.slane %v1959, 4
      %v1961 = vrot.slane %v1919, 6
      %v1962 = vrot.slane %v1961, 4
      %v1963 = vrot.slane %v1920, 6
      %v1964 = vrot.slane %v1963, 4
      %v1965 = vrot.slane %v1921, 6
      %v1966 = vrot.slane %v1965, 4
      %v1967 = vrot.slane %v1922, 6
      %v1968 = vrot.slane %v1967, 4
      %v1969 = vrot.slane %v1923, 6
      %v1970 = vrot.slane %v1969, 4
      %v1971 = vrot.slane %v1924, 6
      %v1972 = vrot.slane %v1971, 4
      %1973 = vrot.lane.b32.xlu0 %v1942, 64
      %v1974 = vpop.permute.xlu0 %1973
      %1975 = vrot.lane.b32.xlu0 %v1944, 64
      %v1976 = vpop.permute.xlu0 %1975
      %1977 = vrot.lane.b32.xlu0 %v1946, 64
      %v1978 = vpop.permute.xlu0 %1977
      %1979 = vrot.lane.b32.xlu0 %v1948, 64
      %v1980 = vpop.permute.xlu0 %1979
      %1981 = vrot.lane.b32.xlu0 %v1950, 64
      %v1982 = vpop.permute.xlu0 %1981
      %1983 = vrot.lane.b32.xlu0 %v1952, 64
      %v1984 = vpop.permute.xlu0 %1983
      %1985 = vrot.lane.b32.xlu0 %v1954, 64
      %v1986 = vpop.permute.xlu0 %1985
      %1987 = vrot.lane.b32.xlu0 %v1956, 64
      %v1988 = vpop.permute.xlu0 %1987
      %1989 = vrot.lane.b32.xlu0 %v1958, 64
      %v1990 = vpop.permute.xlu0 %1989
      %1991 = vrot.lane.b32.xlu0 %v1960, 64
      %v1992 = vpop.permute.xlu0 %1991
      %1993 = vrot.lane.b32.xlu0 %v1962, 64
      %v1994 = vpop.permute.xlu0 %1993
      %1995 = vrot.lane.b32.xlu0 %v1964, 64
      %v1996 = vpop.permute.xlu0 %1995
      %1997 = vrot.lane.b32.xlu0 %v1966, 64
      %v1998 = vpop.permute.xlu0 %1997
      %1999 = vrot.lane.b32.xlu0 %v1968, 64
      %v2000 = vpop.permute.xlu0 %1999
      %2001 = vrot.lane.b32.xlu0 %v1970, 64
      %v2002 = vpop.permute.xlu0 %2001
      %2003 = vrot.lane.b32.xlu0 %v1972, 64
      %v2004 = vpop.permute.xlu0 %2003
      %2021 = vst.msk [vmem:[#allocation2 + $0x18] sm:$0x3] %vm1823, %v1974
      %2022 = vst.msk [vmem:[#allocation2 + $0x60] sm:$0x3] %vm1823, %v1976
      %2023 = vst.msk [vmem:[#allocation2 + $0xa8] sm:$0x3] %vm1823, %v1978
      %2024 = vst.msk [vmem:[#allocation2 + $0xf0] sm:$0x3] %vm1823, %v1980
      %2025 = vst.msk [vmem:[#allocation2 + $0x138] sm:$0x3] %vm1823, %v1982
      %2026 = vst.msk [vmem:[#allocation2 + $0x180] sm:$0x3] %vm1823, %v1984
      %2027 = vst.msk [vmem:[#allocation2 + $0x1c8] sm:$0x3] %vm1823, %v1986
      %2028 = vst.msk [vmem:[#allocation2 + $0x210] sm:$0x3] %vm1823, %v1988
      %2029 = vst.msk [vmem:[#allocation2 + $0x258] sm:$0x3] %vm1823, %v1990
      %2030 = vst.msk [vmem:[#allocation2 + $0x2a0] sm:$0x3] %vm1823, %v1992
      %2031 = vst.msk [vmem:[#allocation2 + $0x2e8] sm:$0x3] %vm1823, %v1994
      %2032 = vst.msk [vmem:[#allocation2 + $0x330] sm:$0x3] %vm1823, %v1996
      %2033 = vst.msk [vmem:[#allocation2 + $0x378] sm:$0x3] %vm1823, %v1998
      %2034 = vst.msk [vmem:[#allocation2 + $0x3c0] sm:$0x3] %vm1823, %v2000
      %2035 = vst.msk [vmem:[#allocation2 + $0x408] sm:$0x3] %vm1823, %v2002
      %2036 = vst.msk [vmem:[#allocation2 + $0x450] sm:$0x3] %vm1823, %v2004
      %s2037 = scalar_lea.vmem %s300, 96
      %v2038 = vld [vmem:[%s2037] sm:$0x3]
      %v2039 = vld [vmem:[%s2037 + $0x8] sm:$0x3]
      %v2040 = vld [vmem:[%s2037 + $0x10] sm:$0x3]
      %v2041 = vld [vmem:[%s2037 + $0x18] sm:$0x3]
      %v2046 = vrot.slane %v2038, 6
      %v2047 = vrot.slane %v2039, 6
      %v2048 = vrot.slane %v2040, 6
      %v2049 = vrot.slane %v2041, 6
      %2054 = vst.msk [vmem:[#allocation2 + $0x40] sm:$0xc] %vm1892, %v2046
      %2055 = vst.msk [vmem:[#allocation2 + $0x88] sm:$0xc] %vm1892, %v2047
      %2056 = vst.msk [vmem:[#allocation2 + $0xd0] sm:$0xc] %vm1892, %v2048
      %2057 = vst.msk [vmem:[#allocation2 + $0x118] sm:$0xc] %vm1892, %v2049
      %v2058 = vld [vmem:[%s2037] sm:$0xf]
      %v2059 = vld [vmem:[%s2037 + $0x4] sm:$0xf]
      %v2060 = vld [vmem:[%s2037 + $0x8] sm:$0xf]
      %v2061 = vld [vmem:[%s2037 + $0xc] sm:$0xf]
      %v2062 = vld [vmem:[%s2037 + $0x10] sm:$0xf]
      %v2063 = vld [vmem:[%s2037 + $0x14] sm:$0xf]
      %v2064 = vld [vmem:[%s2037 + $0x18] sm:$0xf]
      %v2065 = vld [vmem:[%s2037 + $0x1c] sm:$0xf]
      %2074 = vrot.lane.b32.xlu0 %v2058, 64
      %v2075 = vpop.permute.xlu0 %2074
      %2076 = vrot.lane.b32.xlu0 %v2059, 64
      %v2077 = vpop.permute.xlu0 %2076
      %2078 = vrot.lane.b32.xlu0 %v2060, 64
      %v2079 = vpop.permute.xlu0 %2078
      %2080 = vrot.lane.b32.xlu0 %v2061, 64
      %v2081 = vpop.permute.xlu0 %2080
      %2082 = vrot.lane.b32.xlu0 %v2062, 64
      %v2083 = vpop.permute.xlu0 %2082
      %2084 = vrot.lane.b32.xlu0 %v2063, 64
      %v2085 = vpop.permute.xlu0 %2084
      %2086 = vrot.lane.b32.xlu0 %v2064, 64
      %v2087 = vpop.permute.xlu0 %2086
      %2088 = vrot.lane.b32.xlu0 %v2065, 64
      %v2089 = vpop.permute.xlu0 %2088
      %2098 = vst.msk [vmem:[#allocation2 + $0x1c] sm:$0xf] %vm678, %v2075
      %2099 = vst.msk [vmem:[#allocation2 + $0x40] sm:$0xf] %vm678, %v2077
      %2100 = vst.msk [vmem:[#allocation2 + $0x64] sm:$0xf] %vm678, %v2079
      %2101 = vst.msk [vmem:[#allocation2 + $0x88] sm:$0xf] %vm678, %v2081
      %2102 = vst.msk [vmem:[#allocation2 + $0xac] sm:$0xf] %vm678, %v2083
      %2103 = vst.msk [vmem:[#allocation2 + $0xd0] sm:$0xf] %vm678, %v2085
      %2104 = vst.msk [vmem:[#allocation2 + $0xf4] sm:$0xf] %vm678, %v2087
      %2105 = vst.msk [vmem:[#allocation2 + $0x118] sm:$0xf] %vm678, %v2089
      %v2106 = vld [vmem:[%s2037 + $0x4] sm:$0xc]
      %v2107 = vld [vmem:[%s2037 + $0xc] sm:$0xc]
      %v2108 = vld [vmem:[%s2037 + $0x14] sm:$0xc]
      %v2109 = vld [vmem:[%s2037 + $0x1c] sm:$0xc]
      %v2114 = vrot.slane %v2106, 6
      %v2115 = vrot.slane %v2114, 4
      %v2116 = vrot.slane %v2107, 6
      %v2117 = vrot.slane %v2116, 4
      %v2118 = vrot.slane %v2108, 6
      %v2119 = vrot.slane %v2118, 4
      %v2120 = vrot.slane %v2109, 6
      %v2121 = vrot.slane %v2120, 4
      %vm2126 = vcmask 517120
      %2127 = vst.msk [vmem:[#allocation2 + $0x20] sm:$0x3] %vm2126, %v2115
      %2128 = vst.msk [vmem:[#allocation2 + $0x68] sm:$0x3] %vm2126, %v2117
      %2129 = vst.msk [vmem:[#allocation2 + $0xb0] sm:$0x3] %vm2126, %v2119
      %2130 = vst.msk [vmem:[#allocation2 + $0xf8] sm:$0x3] %vm2126, %v2121
      %v2131 = vld [vmem:[#allocation2] sm:$0xff]
      %v2132 = vld [vmem:[#allocation2 + $0x8] sm:$0xff]
      %v2133 = vld [vmem:[#allocation2 + $0x10] sm:$0xff]
      %v2134 = vld [vmem:[#allocation2 + $0x18] sm:$0xff]
      %v2135 = vld [vmem:[#allocation2 + $0x20] sm:$0xf]
      %v2136 = vld [vmem:[#allocation2 + $0x24] sm:$0xff]
      %v2137 = vld [vmem:[#allocation2 + $0x2c] sm:$0xff]
      %v2138 = vld [vmem:[#allocation2 + $0x34] sm:$0xff]
      %v2139 = vld [vmem:[#allocation2 + $0x3c] sm:$0xff]
      %v2140 = vld [vmem:[#allocation2 + $0x44] sm:$0xf]
      %v2141 = vld [vmem:[#allocation2 + $0x48] sm:$0xff]
      %v2142 = vld [vmem:[#allocation2 + $0x50] sm:$0xff]
      %v2143 = vld [vmem:[#allocation2 + $0x58] sm:$0xff]
      %v2144 = vld [vmem:[#allocation2 + $0x60] sm:$0xff]
      %v2145 = vld [vmem:[#allocation2 + $0x68] sm:$0xf]
      %v2146 = vld [vmem:[#allocation2 + $0x6c] sm:$0xff]
      %v2147 = vld [vmem:[#allocation2 + $0x74] sm:$0xff]
      %v2148 = vld [vmem:[#allocation2 + $0x7c] sm:$0xff]
      %v2149 = vld [vmem:[#allocation2 + $0x84] sm:$0xff]
      %v2150 = vld [vmem:[#allocation2 + $0x8c] sm:$0xf]
      %v2151 = vld [vmem:[#allocation2 + $0x90] sm:$0xff]
      %v2152 = vld [vmem:[#allocation2 + $0x98] sm:$0xff]
      %v2153 = vld [vmem:[#allocation2 + $0xa0] sm:$0xff]
      %v2154 = vld [vmem:[#allocation2 + $0xa8] sm:$0xff]
      %v2155 = vld [vmem:[#allocation2 + $0xb0] sm:$0xf]
      %v2156 = vld [vmem:[#allocation2 + $0xb4] sm:$0xff]
      %v2157 = vld [vmem:[#allocation2 + $0xbc] sm:$0xff]
      %v2158 = vld [vmem:[#allocation2 + $0xc4] sm:$0xff]
      %v2159 = vld [vmem:[#allocation2 + $0xcc] sm:$0xff]
      %v2160 = vld [vmem:[#allocation2 + $0xd4] sm:$0xf]
      %v2161 = vld [vmem:[#allocation2 + $0xd8] sm:$0xff]
      %v2162 = vld [vmem:[#allocation2 + $0xe0] sm:$0xff]
      %v2163 = vld [vmem:[#allocation2 + $0xe8] sm:$0xff]
      %v2164 = vld [vmem:[#allocation2 + $0xf0] sm:$0xff]
      %v2165 = vld [vmem:[#allocation2 + $0xf8] sm:$0xf]
      %v2166 = vld [vmem:[#allocation2 + $0xfc] sm:$0xff]
      %v2167 = vld [vmem:[#allocation2 + $0x104] sm:$0xff]
      %v2168 = vld [vmem:[#allocation2 + $0x10c] sm:$0xff]
      %v2169 = vld [vmem:[#allocation2 + $0x114] sm:$0xff]
      %v2170 = vld [vmem:[#allocation2 + $0x11c] sm:$0xf]
      %v2171 = vld [vmem:[#allocation2 + $0x120] sm:$0xff]
      %v2172 = vld [vmem:[#allocation2 + $0x128] sm:$0xff]
      %v2173 = vld [vmem:[#allocation2 + $0x130] sm:$0xff]
      %v2174 = vld [vmem:[#allocation2 + $0x138] sm:$0xff]
      %v2175 = vld [vmem:[#allocation2 + $0x140] sm:$0xf]
      %v2176 = vld [vmem:[#allocation2 + $0x144] sm:$0xff]
      %v2177 = vld [vmem:[#allocation2 + $0x14c] sm:$0xff]
      %v2178 = vld [vmem:[#allocation2 + $0x154] sm:$0xff]
      %v2179 = vld [vmem:[#allocation2 + $0x15c] sm:$0xff]
      %v2180 = vld [vmem:[#allocation2 + $0x164] sm:$0xf]
      %v2181 = vld [vmem:[#allocation2 + $0x168] sm:$0xff]
      %v2182 = vld [vmem:[#allocation2 + $0x170] sm:$0xff]
      %v2183 = vld [vmem:[#allocation2 + $0x178] sm:$0xff]
      %v2184 = vld [vmem:[#allocation2 + $0x180] sm:$0xff]
      %v2185 = vld [vmem:[#allocation2 + $0x188] sm:$0xf]
      %v2186 = vld [vmem:[#allocation2 + $0x18c] sm:$0xff]
      %v2187 = vld [vmem:[#allocation2 + $0x194] sm:$0xff]
      %v2188 = vld [vmem:[#allocation2 + $0x19c] sm:$0xff]
      %v2189 = vld [vmem:[#allocation2 + $0x1a4] sm:$0xff]
      %v2190 = vld [vmem:[#allocation2 + $0x1ac] sm:$0xf]
      %v2191 = vld [vmem:[#allocation2 + $0x1b0] sm:$0xff]
      %v2192 = vld [vmem:[#allocation2 + $0x1b8] sm:$0xff]
      %v2193 = vld [vmem:[#allocation2 + $0x1c0] sm:$0xff]
      %v2194 = vld [vmem:[#allocation2 + $0x1c8] sm:$0xff]
      %v2195 = vld [vmem:[#allocation2 + $0x1d0] sm:$0xf]
      %v2196 = vld [vmem:[#allocation2 + $0x1d4] sm:$0xff]
      %v2197 = vld [vmem:[#allocation2 + $0x1dc] sm:$0xff]
      %v2198 = vld [vmem:[#allocation2 + $0x1e4] sm:$0xff]
      %v2199 = vld [vmem:[#allocation2 + $0x1ec] sm:$0xff]
      %v2200 = vld [vmem:[#allocation2 + $0x1f4] sm:$0xf]
      %v2201 = vld [vmem:[#allocation2 + $0x1f8] sm:$0xff]
      %v2202 = vld [vmem:[#allocation2 + $0x200] sm:$0xff]
      %v2203 = vld [vmem:[#allocation2 + $0x208] sm:$0xff]
      %v2204 = vld [vmem:[#allocation2 + $0x210] sm:$0xff]
      %v2205 = vld [vmem:[#allocation2 + $0x218] sm:$0xf]
      %v2206 = vld [vmem:[#allocation2 + $0x21c] sm:$0xff]
      %v2207 = vld [vmem:[#allocation2 + $0x224] sm:$0xff]
      %v2208 = vld [vmem:[#allocation2 + $0x22c] sm:$0xff]
      %v2209 = vld [vmem:[#allocation2 + $0x234] sm:$0xff]
      %v2210 = vld [vmem:[#allocation2 + $0x23c] sm:$0xf]
      %v2211 = vld [vmem:[#allocation2 + $0x240] sm:$0xff]
      %v2212 = vld [vmem:[#allocation2 + $0x248] sm:$0xff]
      %v2213 = vld [vmem:[#allocation2 + $0x250] sm:$0xff]
      %v2214 = vld [vmem:[#allocation2 + $0x258] sm:$0xff]
      %v2215 = vld [vmem:[#allocation2 + $0x260] sm:$0xf]
      %v2216 = vld [vmem:[#allocation2 + $0x264] sm:$0xff]
      %v2217 = vld [vmem:[#allocation2 + $0x26c] sm:$0xff]
      %v2218 = vld [vmem:[#allocation2 + $0x274] sm:$0xff]
      %v2219 = vld [vmem:[#allocation2 + $0x27c] sm:$0xff]
      %v2220 = vld [vmem:[#allocation2 + $0x284] sm:$0xf]
      %v2221 = vld [vmem:[#allocation2 + $0x288] sm:$0xff]
      %v2222 = vld [vmem:[#allocation2 + $0x290] sm:$0xff]
      %v2223 = vld [vmem:[#allocation2 + $0x298] sm:$0xff]
      %v2224 = vld [vmem:[#allocation2 + $0x2a0] sm:$0xff]
      %v2225 = vld [vmem:[#allocation2 + $0x2a8] sm:$0xf]
      %v2226 = vld [vmem:[#allocation2 + $0x2ac] sm:$0xff]
      %v2227 = vld [vmem:[#allocation2 + $0x2b4] sm:$0xff]
      %v2228 = vld [vmem:[#allocation2 + $0x2bc] sm:$0xff]
      %v2229 = vld [vmem:[#allocation2 + $0x2c4] sm:$0xff]
      %v2230 = vld [vmem:[#allocation2 + $0x2cc] sm:$0xf]
      %v2231 = vld [vmem:[#allocation2 + $0x2d0] sm:$0xff]
      %v2232 = vld [vmem:[#allocation2 + $0x2d8] sm:$0xff]
      %v2233 = vld [vmem:[#allocation2 + $0x2e0] sm:$0xff]
      %v2234 = vld [vmem:[#allocation2 + $0x2e8] sm:$0xff]
      %v2235 = vld [vmem:[#allocation2 + $0x2f0] sm:$0xf]
      %v2236 = vld [vmem:[#allocation2 + $0x2f4] sm:$0xff]
      %v2237 = vld [vmem:[#allocation2 + $0x2fc] sm:$0xff]
      %v2238 = vld [vmem:[#allocation2 + $0x304] sm:$0xff]
      %v2239 = vld [vmem:[#allocation2 + $0x30c] sm:$0xff]
      %v2240 = vld [vmem:[#allocation2 + $0x314] sm:$0xf]
      %v2241 = vld [vmem:[#allocation2 + $0x318] sm:$0xff]
      %v2242 = vld [vmem:[#allocation2 + $0x320] sm:$0xff]
      %v2243 = vld [vmem:[#allocation2 + $0x328] sm:$0xff]
      %v2244 = vld [vmem:[#allocation2 + $0x330] sm:$0xff]
      %v2245 = vld [vmem:[#allocation2 + $0x338] sm:$0xf]
      %v2246 = vld [vmem:[#allocation2 + $0x33c] sm:$0xff]
      %v2247 = vld [vmem:[#allocation2 + $0x344] sm:$0xff]
      %v2248 = vld [vmem:[#allocation2 + $0x34c] sm:$0xff]
      %v2249 = vld [vmem:[#allocation2 + $0x354] sm:$0xff]
      %v2250 = vld [vmem:[#allocation2 + $0x35c] sm:$0xf]
      %v2251 = vld [vmem:[#allocation2 + $0x360] sm:$0xff]
      %v2252 = vld [vmem:[#allocation2 + $0x368] sm:$0xff]
      %v2253 = vld [vmem:[#allocation2 + $0x370] sm:$0xff]
      %v2254 = vld [vmem:[#allocation2 + $0x378] sm:$0xff]
      %v2255 = vld [vmem:[#allocation2 + $0x380] sm:$0xf]
      %v2256 = vld [vmem:[#allocation2 + $0x384] sm:$0xff]
      %v2257 = vld [vmem:[#allocation2 + $0x38c] sm:$0xff]
      %v2258 = vld [vmem:[#allocation2 + $0x394] sm:$0xff]
      %v2259 = vld [vmem:[#allocation2 + $0x39c] sm:$0xff]
      %v2260 = vld [vmem:[#allocation2 + $0x3a4] sm:$0xf]
      %v2261 = vld [vmem:[#allocation2 + $0x3a8] sm:$0xff]
      %v2262 = vld [vmem:[#allocation2 + $0x3b0] sm:$0xff]
      %v2263 = vld [vmem:[#allocation2 + $0x3b8] sm:$0xff]
      %v2264 = vld [vmem:[#allocation2 + $0x3c0] sm:$0xff]
      %v2265 = vld [vmem:[#allocation2 + $0x3c8] sm:$0xf]
      %v2266 = vld [vmem:[#allocation2 + $0x3cc] sm:$0xff]
      %v2267 = vld [vmem:[#allocation2 + $0x3d4] sm:$0xff]
      %v2268 = vld [vmem:[#allocation2 + $0x3dc] sm:$0xff]
      %v2269 = vld [vmem:[#allocation2 + $0x3e4] sm:$0xff]
      %v2270 = vld [vmem:[#allocation2 + $0x3ec] sm:$0xf]
      %v2271 = vld [vmem:[#allocation2 + $0x3f0] sm:$0xff]
      %v2272 = vld [vmem:[#allocation2 + $0x3f8] sm:$0xff]
      %v2273 = vld [vmem:[#allocation2 + $0x400] sm:$0xff]
      %v2274 = vld [vmem:[#allocation2 + $0x408] sm:$0xff]
      %v2275 = vld [vmem:[#allocation2 + $0x410] sm:$0xf]
      %v2276 = vld [vmem:[#allocation2 + $0x414] sm:$0xff]
      %v2277 = vld [vmem:[#allocation2 + $0x41c] sm:$0xff]
      %v2278 = vld [vmem:[#allocation2 + $0x424] sm:$0xff]
      %v2279 = vld [vmem:[#allocation2 + $0x42c] sm:$0xff]
      %v2280 = vld [vmem:[#allocation2 + $0x434] sm:$0xf]
      %v2281 = vld [vmem:[#allocation2 + $0x438] sm:$0xff]
      %v2282 = vld [vmem:[#allocation2 + $0x440] sm:$0xff]
      %v2283 = vld [vmem:[#allocation2 + $0x448] sm:$0xff]
      %v2284 = vld [vmem:[#allocation2 + $0x450] sm:$0xff]
      %v2285 = vld [vmem:[#allocation2 + $0x458] sm:$0xf]
      %v2286 = vld [vmem:[#allocation2 + $0x45c] sm:$0xff]
      %v2287 = vld [vmem:[#allocation2 + $0x464] sm:$0xff]
      %v2288 = vld [vmem:[#allocation2 + $0x46c] sm:$0xff]
      %v2289 = vld [vmem:[#allocation2 + $0x474] sm:$0xff]
      %v2290 = vld [vmem:[#allocation2 + $0x47c] sm:$0xf]
      %v2291 = vld [vmem:[%s1] sm:$0xf]
      %v2292 = vld [vmem:[%s1 + $0x4] sm:$0xf]
      %v2293 = vld [vmem:[%s1 + $0x8] sm:$0xf]
      %v2294 = vld [vmem:[%s1 + $0xc] sm:$0xf]
      %v2295 = vld [vmem:[%s1 + $0x10] sm:$0xf]
      %v2296 = vld [vmem:[%s1 + $0x14] sm:$0xf]
      %v2297 = vld [vmem:[%s1 + $0x18] sm:$0xf]
      %v2298 = vld [vmem:[%s1 + $0x1c] sm:$0xf]
      %v2299 = vld [vmem:[%s1 + $0x20] sm:$0xf]
      %v2300 = vld [vmem:[%s1 + $0x24] sm:$0xf]
      %v2301 = vld [vmem:[%s1 + $0x28] sm:$0xf]
      %v2302 = vld [vmem:[%s1 + $0x2c] sm:$0xf]
      %v2303 = vld [vmem:[%s1 + $0x30] sm:$0xf]
      %v2304 = vld [vmem:[%s1 + $0x34] sm:$0xf]
      %v2305 = vld [vmem:[%s1 + $0x38] sm:$0xf]
      %v2306 = vld [vmem:[%s1 + $0x3c] sm:$0xf]
      %v2307 = vld [vmem:[%s1 + $0x40] sm:$0xf]
      %v2308 = vld [vmem:[%s1 + $0x44] sm:$0xf]
      %v2309 = vld [vmem:[%s1 + $0x48] sm:$0xf]
      %v2310 = vld [vmem:[%s1 + $0x4c] sm:$0xf]
      %v2311 = vld [vmem:[%s1 + $0x50] sm:$0xf]
      %v2312 = vld [vmem:[%s1 + $0x54] sm:$0xf]
      %v2313 = vld [vmem:[%s1 + $0x58] sm:$0xf]
      %v2314 = vld [vmem:[%s1 + $0x5c] sm:$0xf]
      %v2315 = vld [vmem:[%s1 + $0x60] sm:$0xf]
      %v2316 = vld [vmem:[%s1 + $0x64] sm:$0xf]
      %v2317 = vld [vmem:[%s1 + $0x68] sm:$0xf]
      %v2318 = vld [vmem:[%s1 + $0x6c] sm:$0xf]
      %v2319 = vld [vmem:[%s1 + $0x70] sm:$0xf]
      %v2320 = vld [vmem:[%s1 + $0x74] sm:$0xf]
      %v2321 = vld [vmem:[%s1 + $0x78] sm:$0xf]
      %v2322 = vld [vmem:[%s1 + $0x7c] sm:$0xf]
      %v2323 = vld [vmem:[%s1 + $0x80] sm:$0xf]
      %v2324 = vld [vmem:[%s1 + $0x84] sm:$0xf]
      %v2325 = vld [vmem:[%s1 + $0x88] sm:$0xf]
      %v2326 = vld [vmem:[%s1 + $0x8c] sm:$0xf]
      %v2327 = vld [vmem:[%s1 + $0x90] sm:$0xf]
      %v2328 = vld [vmem:[%s1 + $0x94] sm:$0xf]
      %v2329 = vld [vmem:[%s1 + $0x98] sm:$0xf]
      %v2330 = vld [vmem:[%s1 + $0x9c] sm:$0xf]
      %v2331 = vld [vmem:[%s1 + $0xa0] sm:$0xf]
      %v2332 = vld [vmem:[%s1 + $0xa4] sm:$0xf]
      %v2333 = vld [vmem:[%s1 + $0xa8] sm:$0xf]
      %v2334 = vld [vmem:[%s1 + $0xac] sm:$0xf]
      %v2335 = vld [vmem:[%s1 + $0xb0] sm:$0xf]
      %v2336 = vld [vmem:[%s1 + $0xb4] sm:$0xf]
      %v2337 = vld [vmem:[%s1 + $0xb8] sm:$0xf]
      %v2338 = vld [vmem:[%s1 + $0xbc] sm:$0xf]
      %v2339 = vld [vmem:[%s1 + $0xc0] sm:$0xf]
      %v2340 = vld [vmem:[%s1 + $0xc4] sm:$0xf]
      %v2341 = vld [vmem:[%s1 + $0xc8] sm:$0xf]
      %v2342 = vld [vmem:[%s1 + $0xcc] sm:$0xf]
      %v2343 = vld [vmem:[%s1 + $0xd0] sm:$0xf]
      %v2344 = vld [vmem:[%s1 + $0xd4] sm:$0xf]
      %v2345 = vld [vmem:[%s1 + $0xd8] sm:$0xf]
      %v2346 = vld [vmem:[%s1 + $0xdc] sm:$0xf]
      %v2347 = vld [vmem:[%s1 + $0xe0] sm:$0xf]
      %v2348 = vld [vmem:[%s1 + $0xe4] sm:$0xf]
      %v2349 = vld [vmem:[%s1 + $0xe8] sm:$0xf]
      %v2350 = vld [vmem:[%s1 + $0xec] sm:$0xf]
      %v2351 = vld [vmem:[%s1 + $0xf0] sm:$0xf]
      %v2352 = vld [vmem:[%s1 + $0xf4] sm:$0xf]
      %v2353 = vld [vmem:[%s1 + $0xf8] sm:$0xf]
      %v2354 = vld [vmem:[%s1 + $0xfc] sm:$0xf]
      %v2355 = vld [vmem:[%s1 + $0x100] sm:$0xf]
      %v2356 = vld [vmem:[%s1 + $0x104] sm:$0xf]
      %v2357 = vld [vmem:[%s1 + $0x108] sm:$0xf]
      %v2358 = vld [vmem:[%s1 + $0x10c] sm:$0xf]
      %v2359 = vld [vmem:[%s1 + $0x110] sm:$0xf]
      %v2360 = vld [vmem:[%s1 + $0x114] sm:$0xf]
      %v2361 = vld [vmem:[%s1 + $0x118] sm:$0xf]
      %v2362 = vld [vmem:[%s1 + $0x11c] sm:$0xf]
      %v2363 = vld [vmem:[%s1 + $0x120] sm:$0xf]
      %v2364 = vld [vmem:[%s1 + $0x124] sm:$0xf]
      %v2365 = vld [vmem:[%s1 + $0x128] sm:$0xf]
      %v2366 = vld [vmem:[%s1 + $0x12c] sm:$0xf]
      %v2367 = vld [vmem:[%s1 + $0x130] sm:$0xf]
      %v2368 = vld [vmem:[%s1 + $0x134] sm:$0xf]
      %v2369 = vld [vmem:[%s1 + $0x138] sm:$0xf]
      %v2370 = vld [vmem:[%s1 + $0x13c] sm:$0xf]
      %v2371 = vld [vmem:[%s1 + $0x140] sm:$0xf]
      %v2372 = vld [vmem:[%s1 + $0x144] sm:$0xf]
      %v2373 = vld [vmem:[%s1 + $0x148] sm:$0xf]
      %v2374 = vld [vmem:[%s1 + $0x14c] sm:$0xf]
      %v2375 = vld [vmem:[%s1 + $0x150] sm:$0xf]
      %v2376 = vld [vmem:[%s1 + $0x154] sm:$0xf]
      %v2377 = vld [vmem:[%s1 + $0x158] sm:$0xf]
      %v2378 = vld [vmem:[%s1 + $0x15c] sm:$0xf]
      %v2379 = vld [vmem:[%s1 + $0x160] sm:$0xf]
      %v2380 = vld [vmem:[%s1 + $0x164] sm:$0xf]
      %v2381 = vld [vmem:[%s1 + $0x168] sm:$0xf]
      %v2382 = vld [vmem:[%s1 + $0x16c] sm:$0xf]
      %v2383 = vld [vmem:[%s1 + $0x170] sm:$0xf]
      %v2384 = vld [vmem:[%s1 + $0x174] sm:$0xf]
      %v2385 = vld [vmem:[%s1 + $0x178] sm:$0xf]
      %v2386 = vld [vmem:[%s1 + $0x17c] sm:$0xf]
      %v2387 = vld [vmem:[%s1 + $0x180] sm:$0xf]
      %v2388 = vld [vmem:[%s1 + $0x184] sm:$0xf]
      %v2389 = vld [vmem:[%s1 + $0x188] sm:$0xf]
      %v2390 = vld [vmem:[%s1 + $0x18c] sm:$0xf]
      %v2391 = vld [vmem:[%s1 + $0x190] sm:$0xf]
      %v2392 = vld [vmem:[%s1 + $0x194] sm:$0xf]
      %v2393 = vld [vmem:[%s1 + $0x198] sm:$0xf]
      %v2394 = vld [vmem:[%s1 + $0x19c] sm:$0xf]
      %v2395 = vld [vmem:[%s1 + $0x1a0] sm:$0xf]
      %v2396 = vld [vmem:[%s1 + $0x1a4] sm:$0xf]
      %v2397 = vld [vmem:[%s1 + $0x1a8] sm:$0xf]
      %v2398 = vld [vmem:[%s1 + $0x1ac] sm:$0xf]
      %v2399 = vld [vmem:[%s1 + $0x1b0] sm:$0xf]
      %v2400 = vld [vmem:[%s1 + $0x1b4] sm:$0xf]
      %v2401 = vld [vmem:[%s1 + $0x1b8] sm:$0xf]
      %v2402 = vld [vmem:[%s1 + $0x1bc] sm:$0xf]
      %v2403 = vld [vmem:[%s1 + $0x1c0] sm:$0xf]
      %v2404 = vld [vmem:[%s1 + $0x1c4] sm:$0xf]
      %v2405 = vld [vmem:[%s1 + $0x1c8] sm:$0xf]
      %v2406 = vld [vmem:[%s1 + $0x1cc] sm:$0xf]
      %v2407 = vld [vmem:[%s1 + $0x1d0] sm:$0xf]
      %v2408 = vld [vmem:[%s1 + $0x1d4] sm:$0xf]
      %v2409 = vld [vmem:[%s1 + $0x1d8] sm:$0xf]
      %v2410 = vld [vmem:[%s1 + $0x1dc] sm:$0xf]
      %v2411 = vld [vmem:[%s1 + $0x1e0] sm:$0xf]
      %v2412 = vld [vmem:[%s1 + $0x1e4] sm:$0xf]
      %v2413 = vld [vmem:[%s1 + $0x1e8] sm:$0xf]
      %v2414 = vld [vmem:[%s1 + $0x1ec] sm:$0xf]
      %v2415 = vld [vmem:[%s1 + $0x1f0] sm:$0xf]
      %v2416 = vld [vmem:[%s1 + $0x1f4] sm:$0xf]
      %v2417 = vld [vmem:[%s1 + $0x1f8] sm:$0xf]
      %v2418 = vld [vmem:[%s1 + $0x1fc] sm:$0xf]
      %v2419 = vld [vmem:[%s1 + $0x200] sm:$0xf]
      %v2420 = vld [vmem:[%s1 + $0x204] sm:$0xf]
      %v2421 = vld [vmem:[%s1 + $0x208] sm:$0xf]
      %v2422 = vld [vmem:[%s1 + $0x20c] sm:$0xf]
      %v2423 = vld [vmem:[%s1 + $0x210] sm:$0xf]
      %v2424 = vld [vmem:[%s1 + $0x214] sm:$0xf]
      %v2425 = vld [vmem:[%s1 + $0x218] sm:$0xf]
      %v2426 = vld [vmem:[%s1 + $0x21c] sm:$0xf]
      %v2427 = vld [vmem:[%s1 + $0x220] sm:$0xf]
      %v2428 = vld [vmem:[%s1 + $0x224] sm:$0xf]
      %v2429 = vld [vmem:[%s1 + $0x228] sm:$0xf]
      %v2430 = vld [vmem:[%s1 + $0x22c] sm:$0xf]
      %v2431 = vld [vmem:[%s1 + $0x230] sm:$0xf]
      %v2432 = vld [vmem:[%s1 + $0x234] sm:$0xf]
      %v2433 = vld [vmem:[%s1 + $0x238] sm:$0xf]
      %v2434 = vld [vmem:[%s1 + $0x23c] sm:$0xf]
      %v2595 = vunpack.c.l.b16 %v2131
      %v2596 = vunpack.c.h.b16 %v2131
      %v2597 = vunpack.c.l.b16 %v2132
      %v2598 = vunpack.c.h.b16 %v2132
      %v2599 = vunpack.c.l.b16 %v2133
      %v2600 = vunpack.c.h.b16 %v2133
      %v2601 = vunpack.c.l.b16 %v2134
      %v2602 = vunpack.c.h.b16 %v2134
      %v2603 = vunpack.c.l.b16 %v2135
      %v2604 = vunpack.c.l.b16 %v2136
      %v2605 = vunpack.c.h.b16 %v2136
      %v2606 = vunpack.c.l.b16 %v2137
      %v2607 = vunpack.c.h.b16 %v2137
      %v2608 = vunpack.c.l.b16 %v2138
      %v2609 = vunpack.c.h.b16 %v2138
      %v2610 = vunpack.c.l.b16 %v2139
      %v2611 = vunpack.c.h.b16 %v2139
      %v2612 = vunpack.c.l.b16 %v2140
      %v2613 = vunpack.c.l.b16 %v2141
      %v2614 = vunpack.c.h.b16 %v2141
      %v2615 = vunpack.c.l.b16 %v2142
      %v2616 = vunpack.c.h.b16 %v2142
      %v2617 = vunpack.c.l.b16 %v2143
      %v2618 = vunpack.c.h.b16 %v2143
      %v2619 = vunpack.c.l.b16 %v2144
      %v2620 = vunpack.c.h.b16 %v2144
      %v2621 = vunpack.c.l.b16 %v2145
      %v2622 = vunpack.c.l.b16 %v2146
      %v2623 = vunpack.c.h.b16 %v2146
      %v2624 = vunpack.c.l.b16 %v2147
      %v2625 = vunpack.c.h.b16 %v2147
      %v2626 = vunpack.c.l.b16 %v2148
      %v2627 = vunpack.c.h.b16 %v2148
      %v2628 = vunpack.c.l.b16 %v2149
      %v2629 = vunpack.c.h.b16 %v2149
      %v2630 = vunpack.c.l.b16 %v2150
      %v2631 = vunpack.c.l.b16 %v2151
      %v2632 = vunpack.c.h.b16 %v2151
      %v2633 = vunpack.c.l.b16 %v2152
      %v2634 = vunpack.c.h.b16 %v2152
      %v2635 = vunpack.c.l.b16 %v2153
      %v2636 = vunpack.c.h.b16 %v2153
      %v2637 = vunpack.c.l.b16 %v2154
      %v2638 = vunpack.c.h.b16 %v2154
      %v2639 = vunpack.c.l.b16 %v2155
      %v2640 = vunpack.c.l.b16 %v2156
      %v2641 = vunpack.c.h.b16 %v2156
      %v2642 = vunpack.c.l.b16 %v2157
      %v2643 = vunpack.c.h.b16 %v2157
      %v2644 = vunpack.c.l.b16 %v2158
      %v2645 = vunpack.c.h.b16 %v2158
      %v2646 = vunpack.c.l.b16 %v2159
      %v2647 = vunpack.c.h.b16 %v2159
      %v2648 = vunpack.c.l.b16 %v2160
      %v2649 = vunpack.c.l.b16 %v2161
      %v2650 = vunpack.c.h.b16 %v2161
      %v2651 = vunpack.c.l.b16 %v2162
      %v2652 = vunpack.c.h.b16 %v2162
      %v2653 = vunpack.c.l.b16 %v2163
      %v2654 = vunpack.c.h.b16 %v2163
      %v2655 = vunpack.c.l.b16 %v2164
      %v2656 = vunpack.c.h.b16 %v2164
      %v2657 = vunpack.c.l.b16 %v2165
      %v2658 = vunpack.c.l.b16 %v2166
      %v2659 = vunpack.c.h.b16 %v2166
      %v2660 = vunpack.c.l.b16 %v2167
      %v2661 = vunpack.c.h.b16 %v2167
      %v2662 = vunpack.c.l.b16 %v2168
      %v2663 = vunpack.c.h.b16 %v2168
      %v2664 = vunpack.c.l.b16 %v2169
      %v2665 = vunpack.c.h.b16 %v2169
      %v2666 = vunpack.c.l.b16 %v2170
      %v2667 = vunpack.c.l.b16 %v2171
      %v2668 = vunpack.c.h.b16 %v2171
      %v2669 = vunpack.c.l.b16 %v2172
      %v2670 = vunpack.c.h.b16 %v2172
      %v2671 = vunpack.c.l.b16 %v2173
      %v2672 = vunpack.c.h.b16 %v2173
      %v2673 = vunpack.c.l.b16 %v2174
      %v2674 = vunpack.c.h.b16 %v2174
      %v2675 = vunpack.c.l.b16 %v2175
      %v2676 = vunpack.c.l.b16 %v2176
      %v2677 = vunpack.c.h.b16 %v2176
      %v2678 = vunpack.c.l.b16 %v2177
      %v2679 = vunpack.c.h.b16 %v2177
      %v2680 = vunpack.c.l.b16 %v2178
      %v2681 = vunpack.c.h.b16 %v2178
      %v2682 = vunpack.c.l.b16 %v2179
      %v2683 = vunpack.c.h.b16 %v2179
      %v2684 = vunpack.c.l.b16 %v2180
      %v2685 = vunpack.c.l.b16 %v2181
      %v2686 = vunpack.c.h.b16 %v2181
      %v2687 = vunpack.c.l.b16 %v2182
      %v2688 = vunpack.c.h.b16 %v2182
      %v2689 = vunpack.c.l.b16 %v2183
      %v2690 = vunpack.c.h.b16 %v2183
      %v2691 = vunpack.c.l.b16 %v2184
      %v2692 = vunpack.c.h.b16 %v2184
      %v2693 = vunpack.c.l.b16 %v2185
      %v2694 = vunpack.c.l.b16 %v2186
      %v2695 = vunpack.c.h.b16 %v2186
      %v2696 = vunpack.c.l.b16 %v2187
      %v2697 = vunpack.c.h.b16 %v2187
      %v2698 = vunpack.c.l.b16 %v2188
      %v2699 = vunpack.c.h.b16 %v2188
      %v2700 = vunpack.c.l.b16 %v2189
      %v2701 = vunpack.c.h.b16 %v2189
      %v2702 = vunpack.c.l.b16 %v2190
      %v2703 = vunpack.c.l.b16 %v2191
      %v2704 = vunpack.c.h.b16 %v2191
      %v2705 = vunpack.c.l.b16 %v2192
      %v2706 = vunpack.c.h.b16 %v2192
      %v2707 = vunpack.c.l.b16 %v2193
      %v2708 = vunpack.c.h.b16 %v2193
      %v2709 = vunpack.c.l.b16 %v2194
      %v2710 = vunpack.c.h.b16 %v2194
      %v2711 = vunpack.c.l.b16 %v2195
      %v2712 = vunpack.c.l.b16 %v2196
      %v2713 = vunpack.c.h.b16 %v2196
      %v2714 = vunpack.c.l.b16 %v2197
      %v2715 = vunpack.c.h.b16 %v2197
      %v2716 = vunpack.c.l.b16 %v2198
      %v2717 = vunpack.c.h.b16 %v2198
      %v2718 = vunpack.c.l.b16 %v2199
      %v2719 = vunpack.c.h.b16 %v2199
      %v2720 = vunpack.c.l.b16 %v2200
      %v2721 = vunpack.c.l.b16 %v2201
      %v2722 = vunpack.c.h.b16 %v2201
      %v2723 = vunpack.c.l.b16 %v2202
      %v2724 = vunpack.c.h.b16 %v2202
      %v2725 = vunpack.c.l.b16 %v2203
      %v2726 = vunpack.c.h.b16 %v2203
      %v2727 = vunpack.c.l.b16 %v2204
      %v2728 = vunpack.c.h.b16 %v2204
      %v2729 = vunpack.c.l.b16 %v2205
      %v2730 = vunpack.c.l.b16 %v2206
      %v2731 = vunpack.c.h.b16 %v2206
      %v2732 = vunpack.c.l.b16 %v2207
      %v2733 = vunpack.c.h.b16 %v2207
      %v2734 = vunpack.c.l.b16 %v2208
      %v2735 = vunpack.c.h.b16 %v2208
      %v2736 = vunpack.c.l.b16 %v2209
      %v2737 = vunpack.c.h.b16 %v2209
      %v2738 = vunpack.c.l.b16 %v2210
      %v2739 = vunpack.c.l.b16 %v2211
      %v2740 = vunpack.c.h.b16 %v2211
      %v2741 = vunpack.c.l.b16 %v2212
      %v2742 = vunpack.c.h.b16 %v2212
      %v2743 = vunpack.c.l.b16 %v2213
      %v2744 = vunpack.c.h.b16 %v2213
      %v2745 = vunpack.c.l.b16 %v2214
      %v2746 = vunpack.c.h.b16 %v2214
      %v2747 = vunpack.c.l.b16 %v2215
      %v2748 = vunpack.c.l.b16 %v2216
      %v2749 = vunpack.c.h.b16 %v2216
      %v2750 = vunpack.c.l.b16 %v2217
      %v2751 = vunpack.c.h.b16 %v2217
      %v2752 = vunpack.c.l.b16 %v2218
      %v2753 = vunpack.c.h.b16 %v2218
      %v2754 = vunpack.c.l.b16 %v2219
      %v2755 = vunpack.c.h.b16 %v2219
      %v2756 = vunpack.c.l.b16 %v2220
      %v2757 = vunpack.c.l.b16 %v2221
      %v2758 = vunpack.c.h.b16 %v2221
      %v2759 = vunpack.c.l.b16 %v2222
      %v2760 = vunpack.c.h.b16 %v2222
      %v2761 = vunpack.c.l.b16 %v2223
      %v2762 = vunpack.c.h.b16 %v2223
      %v2763 = vunpack.c.l.b16 %v2224
      %v2764 = vunpack.c.h.b16 %v2224
      %v2765 = vunpack.c.l.b16 %v2225
      %v2766 = vunpack.c.l.b16 %v2226
      %v2767 = vunpack.c.h.b16 %v2226
      %v2768 = vunpack.c.l.b16 %v2227
      %v2769 = vunpack.c.h.b16 %v2227
      %v2770 = vunpack.c.l.b16 %v2228
      %v2771 = vunpack.c.h.b16 %v2228
      %v2772 = vunpack.c.l.b16 %v2229
      %v2773 = vunpack.c.h.b16 %v2229
      %v2774 = vunpack.c.l.b16 %v2230
      %v2775 = vunpack.c.l.b16 %v2231
      %v2776 = vunpack.c.h.b16 %v2231
      %v2777 = vunpack.c.l.b16 %v2232
      %v2778 = vunpack.c.h.b16 %v2232
      %v2779 = vunpack.c.l.b16 %v2233
      %v2780 = vunpack.c.h.b16 %v2233
      %v2781 = vunpack.c.l.b16 %v2234
      %v2782 = vunpack.c.h.b16 %v2234
      %v2783 = vunpack.c.l.b16 %v2235
      %v2784 = vunpack.c.l.b16 %v2236
      %v2785 = vunpack.c.h.b16 %v2236
      %v2786 = vunpack.c.l.b16 %v2237
      %v2787 = vunpack.c.h.b16 %v2237
      %v2788 = vunpack.c.l.b16 %v2238
      %v2789 = vunpack.c.h.b16 %v2238
      %v2790 = vunpack.c.l.b16 %v2239
      %v2791 = vunpack.c.h.b16 %v2239
      %v2792 = vunpack.c.l.b16 %v2240
      %v2793 = vunpack.c.l.b16 %v2241
      %v2794 = vunpack.c.h.b16 %v2241
      %v2795 = vunpack.c.l.b16 %v2242
      %v2796 = vunpack.c.h.b16 %v2242
      %v2797 = vunpack.c.l.b16 %v2243
      %v2798 = vunpack.c.h.b16 %v2243
      %v2799 = vunpack.c.l.b16 %v2244
      %v2800 = vunpack.c.h.b16 %v2244
      %v2801 = vunpack.c.l.b16 %v2245
      %v2802 = vunpack.c.l.b16 %v2246
      %v2803 = vunpack.c.h.b16 %v2246
      %v2804 = vunpack.c.l.b16 %v2247
      %v2805 = vunpack.c.h.b16 %v2247
      %v2806 = vunpack.c.l.b16 %v2248
      %v2807 = vunpack.c.h.b16 %v2248
      %v2808 = vunpack.c.l.b16 %v2249
      %v2809 = vunpack.c.h.b16 %v2249
      %v2810 = vunpack.c.l.b16 %v2250
      %v2811 = vunpack.c.l.b16 %v2251
      %v2812 = vunpack.c.h.b16 %v2251
      %v2813 = vunpack.c.l.b16 %v2252
      %v2814 = vunpack.c.h.b16 %v2252
      %v2815 = vunpack.c.l.b16 %v2253
      %v2816 = vunpack.c.h.b16 %v2253
      %v2817 = vunpack.c.l.b16 %v2254
      %v2818 = vunpack.c.h.b16 %v2254
      %v2819 = vunpack.c.l.b16 %v2255
      %v2820 = vunpack.c.l.b16 %v2256
      %v2821 = vunpack.c.h.b16 %v2256
      %v2822 = vunpack.c.l.b16 %v2257
      %v2823 = vunpack.c.h.b16 %v2257
      %v2824 = vunpack.c.l.b16 %v2258
      %v2825 = vunpack.c.h.b16 %v2258
      %v2826 = vunpack.c.l.b16 %v2259
      %v2827 = vunpack.c.h.b16 %v2259
      %v2828 = vunpack.c.l.b16 %v2260
      %v2829 = vunpack.c.l.b16 %v2261
      %v2830 = vunpack.c.h.b16 %v2261
      %v2831 = vunpack.c.l.b16 %v2262
      %v2832 = vunpack.c.h.b16 %v2262
      %v2833 = vunpack.c.l.b16 %v2263
      %v2834 = vunpack.c.h.b16 %v2263
      %v2835 = vunpack.c.l.b16 %v2264
      %v2836 = vunpack.c.h.b16 %v2264
      %v2837 = vunpack.c.l.b16 %v2265
      %v2838 = vunpack.c.l.b16 %v2266
      %v2839 = vunpack.c.h.b16 %v2266
      %v2840 = vunpack.c.l.b16 %v2267
      %v2841 = vunpack.c.h.b16 %v2267
      %v2842 = vunpack.c.l.b16 %v2268
      %v2843 = vunpack.c.h.b16 %v2268
      %v2844 = vunpack.c.l.b16 %v2269
      %v2845 = vunpack.c.h.b16 %v2269
      %v2846 = vunpack.c.l.b16 %v2270
      %v2847 = vunpack.c.l.b16 %v2271
      %v2848 = vunpack.c.h.b16 %v2271
      %v2849 = vunpack.c.l.b16 %v2272
      %v2850 = vunpack.c.h.b16 %v2272
      %v2851 = vunpack.c.l.b16 %v2273
      %v2852 = vunpack.c.h.b16 %v2273
      %v2853 = vunpack.c.l.b16 %v2274
      %v2854 = vunpack.c.h.b16 %v2274
      %v2855 = vunpack.c.l.b16 %v2275
      %v2856 = vunpack.c.l.b16 %v2276
      %v2857 = vunpack.c.h.b16 %v2276
      %v2858 = vunpack.c.l.b16 %v2277
      %v2859 = vunpack.c.h.b16 %v2277
      %v2860 = vunpack.c.l.b16 %v2278
      %v2861 = vunpack.c.h.b16 %v2278
      %v2862 = vunpack.c.l.b16 %v2279
      %v2863 = vunpack.c.h.b16 %v2279
      %v2864 = vunpack.c.l.b16 %v2280
      %v2865 = vunpack.c.l.b16 %v2281
      %v2866 = vunpack.c.h.b16 %v2281
      %v2867 = vunpack.c.l.b16 %v2282
      %v2868 = vunpack.c.h.b16 %v2282
      %v2869 = vunpack.c.l.b16 %v2283
      %v2870 = vunpack.c.h.b16 %v2283
      %v2871 = vunpack.c.l.b16 %v2284
      %v2872 = vunpack.c.h.b16 %v2284
      %v2873 = vunpack.c.l.b16 %v2285
      %v2874 = vunpack.c.l.b16 %v2286
      %v2875 = vunpack.c.h.b16 %v2286
      %v2876 = vunpack.c.l.b16 %v2287
      %v2877 = vunpack.c.h.b16 %v2287
      %v2878 = vunpack.c.l.b16 %v2288
      %v2879 = vunpack.c.h.b16 %v2288
      %v2880 = vunpack.c.l.b16 %v2289
      %v2881 = vunpack.c.h.b16 %v2289
      %v2882 = vunpack.c.l.b16 %v2290
      %v2883 = vpack.c.b16 %v2604, %v2595
      %v2884 = vpack.c.b16 %v2605, %v2596
      %v2885 = vpack.c.b16 %v2606, %v2597
      %v2886 = vpack.c.b16 %v2607, %v2598
      %v2887 = vpack.c.b16 %v2608, %v2599
      %v2888 = vpack.c.b16 %v2609, %v2600
      %v2889 = vpack.c.b16 %v2610, %v2601
      %v2890 = vpack.c.b16 %v2611, %v2602
      %v2891 = vpack.c.b16 %v2612, %v2603
      %v2892 = vpack.c.b16 %v2622, %v2613
      %v2893 = vpack.c.b16 %v2623, %v2614
      %v2894 = vpack.c.b16 %v2624, %v2615
      %v2895 = vpack.c.b16 %v2625, %v2616
      %v2896 = vpack.c.b16 %v2626, %v2617
      %v2897 = vpack.c.b16 %v2627, %v2618
      %v2898 = vpack.c.b16 %v2628, %v2619
      %v2899 = vpack.c.b16 %v2629, %v2620
      %v2900 = vpack.c.b16 %v2630, %v2621
      %v2901 = vpack.c.b16 %v2640, %v2631
      %v2902 = vpack.c.b16 %v2641, %v2632
      %v2903 = vpack.c.b16 %v2642, %v2633
      %v2904 = vpack.c.b16 %v2643, %v2634
      %v2905 = vpack.c.b16 %v2644, %v2635
      %v2906 = vpack.c.b16 %v2645, %v2636
      %v2907 = vpack.c.b16 %v2646, %v2637
      %v2908 = vpack.c.b16 %v2647, %v2638
      %v2909 = vpack.c.b16 %v2648, %v2639
      %v2910 = vpack.c.b16 %v2658, %v2649
      %v2911 = vpack.c.b16 %v2659, %v2650
      %v2912 = vpack.c.b16 %v2660, %v2651
      %v2913 = vpack.c.b16 %v2661, %v2652
      %v2914 = vpack.c.b16 %v2662, %v2653
      %v2915 = vpack.c.b16 %v2663, %v2654
      %v2916 = vpack.c.b16 %v2664, %v2655
      %v2917 = vpack.c.b16 %v2665, %v2656
      %v2918 = vpack.c.b16 %v2666, %v2657
      %v2919 = vpack.c.b16 %v2676, %v2667
      %v2920 = vpack.c.b16 %v2677, %v2668
      %v2921 = vpack.c.b16 %v2678, %v2669
      %v2922 = vpack.c.b16 %v2679, %v2670
      %v2923 = vpack.c.b16 %v2680, %v2671
      %v2924 = vpack.c.b16 %v2681, %v2672
      %v2925 = vpack.c.b16 %v2682, %v2673
      %v2926 = vpack.c.b16 %v2683, %v2674
      %v2927 = vpack.c.b16 %v2684, %v2675
      %v2928 = vpack.c.b16 %v2694, %v2685
      %v2929 = vpack.c.b16 %v2695, %v2686
      %v2930 = vpack.c.b16 %v2696, %v2687
      %v2931 = vpack.c.b16 %v2697, %v2688
      %v2932 = vpack.c.b16 %v2698, %v2689
      %v2933 = vpack.c.b16 %v2699, %v2690
      %v2934 = vpack.c.b16 %v2700, %v2691
      %v2935 = vpack.c.b16 %v2701, %v2692
      %v2936 = vpack.c.b16 %v2702, %v2693
      %v2937 = vpack.c.b16 %v2712, %v2703
      %v2938 = vpack.c.b16 %v2713, %v2704
      %v2939 = vpack.c.b16 %v2714, %v2705
      %v2940 = vpack.c.b16 %v2715, %v2706
      %v2941 = vpack.c.b16 %v2716, %v2707
      %v2942 = vpack.c.b16 %v2717, %v2708
      %v2943 = vpack.c.b16 %v2718, %v2709
      %v2944 = vpack.c.b16 %v2719, %v2710
      %v2945 = vpack.c.b16 %v2720, %v2711
      %v2946 = vpack.c.b16 %v2730, %v2721
      %v2947 = vpack.c.b16 %v2731, %v2722
      %v2948 = vpack.c.b16 %v2732, %v2723
      %v2949 = vpack.c.b16 %v2733, %v2724
      %v2950 = vpack.c.b16 %v2734, %v2725
      %v2951 = vpack.c.b16 %v2735, %v2726
      %v2952 = vpack.c.b16 %v2736, %v2727
      %v2953 = vpack.c.b16 %v2737, %v2728
      %v2954 = vpack.c.b16 %v2738, %v2729
      %v2955 = vpack.c.b16 %v2748, %v2739
      %v2956 = vpack.c.b16 %v2749, %v2740
      %v2957 = vpack.c.b16 %v2750, %v2741
      %v2958 = vpack.c.b16 %v2751, %v2742
      %v2959 = vpack.c.b16 %v2752, %v2743
      %v2960 = vpack.c.b16 %v2753, %v2744
      %v2961 = vpack.c.b16 %v2754, %v2745
      %v2962 = vpack.c.b16 %v2755, %v2746
      %v2963 = vpack.c.b16 %v2756, %v2747
      %v2964 = vpack.c.b16 %v2766, %v2757
      %v2965 = vpack.c.b16 %v2767, %v2758
      %v2966 = vpack.c.b16 %v2768, %v2759
      %v2967 = vpack.c.b16 %v2769, %v2760
      %v2968 = vpack.c.b16 %v2770, %v2761
      %v2969 = vpack.c.b16 %v2771, %v2762
      %v2970 = vpack.c.b16 %v2772, %v2763
      %v2971 = vpack.c.b16 %v2773, %v2764
      %v2972 = vpack.c.b16 %v2774, %v2765
      %v2973 = vpack.c.b16 %v2784, %v2775
      %v2974 = vpack.c.b16 %v2785, %v2776
      %v2975 = vpack.c.b16 %v2786, %v2777
      %v2976 = vpack.c.b16 %v2787, %v2778
      %v2977 = vpack.c.b16 %v2788, %v2779
      %v2978 = vpack.c.b16 %v2789, %v2780
      %v2979 = vpack.c.b16 %v2790, %v2781
      %v2980 = vpack.c.b16 %v2791, %v2782
      %v2981 = vpack.c.b16 %v2792, %v2783
      %v2982 = vpack.c.b16 %v2802, %v2793
      %v2983 = vpack.c.b16 %v2803, %v2794
      %v2984 = vpack.c.b16 %v2804, %v2795
      %v2985 = vpack.c.b16 %v2805, %v2796
      %v2986 = vpack.c.b16 %v2806, %v2797
      %v2987 = vpack.c.b16 %v2807, %v2798
      %v2988 = vpack.c.b16 %v2808, %v2799
      %v2989 = vpack.c.b16 %v2809, %v2800
      %v2990 = vpack.c.b16 %v2810, %v2801
      %v2991 = vpack.c.b16 %v2820, %v2811
      %v2992 = vpack.c.b16 %v2821, %v2812
      %v2993 = vpack.c.b16 %v2822, %v2813
      %v2994 = vpack.c.b16 %v2823, %v2814
      %v2995 = vpack.c.b16 %v2824, %v2815
      %v2996 = vpack.c.b16 %v2825, %v2816
      %v2997 = vpack.c.b16 %v2826, %v2817
      %v2998 = vpack.c.b16 %v2827, %v2818
      %v2999 = vpack.c.b16 %v2828, %v2819
      %v3000 = vpack.c.b16 %v2838, %v2829
      %v3001 = vpack.c.b16 %v2839, %v2830
      %v3002 = vpack.c.b16 %v2840, %v2831
      %v3003 = vpack.c.b16 %v2841, %v2832
      %v3004 = vpack.c.b16 %v2842, %v2833
      %v3005 = vpack.c.b16 %v2843, %v2834
      %v3006 = vpack.c.b16 %v2844, %v2835
      %v3007 = vpack.c.b16 %v2845, %v2836
      %v3008 = vpack.c.b16 %v2846, %v2837
      %v3009 = vpack.c.b16 %v2856, %v2847
      %v3010 = vpack.c.b16 %v2857, %v2848
      %v3011 = vpack.c.b16 %v2858, %v2849
      %v3012 = vpack.c.b16 %v2859, %v2850
      %v3013 = vpack.c.b16 %v2860, %v2851
      %v3014 = vpack.c.b16 %v2861, %v2852
      %v3015 = vpack.c.b16 %v2862, %v2853
      %v3016 = vpack.c.b16 %v2863, %v2854
      %v3017 = vpack.c.b16 %v2864, %v2855
      %v3018 = vpack.c.b16 %v2874, %v2865
      %v3019 = vpack.c.b16 %v2875, %v2866
      %v3020 = vpack.c.b16 %v2876, %v2867
      %v3021 = vpack.c.b16 %v2877, %v2868
      %v3022 = vpack.c.b16 %v2878, %v2869
      %v3023 = vpack.c.b16 %v2879, %v2870
      %v3024 = vpack.c.b16 %v2880, %v2871
      %v3025 = vpack.c.b16 %v2881, %v2872
      %v3026 = vpack.c.b16 %v2882, %v2873
      %v3315 = vunpack.c.l.b16 %v2291
      %v3316 = vunpack.c.l.b16 %v2292
      %v3317 = vunpack.c.l.b16 %v2293
      %v3318 = vunpack.c.l.b16 %v2294
      %v3319 = vunpack.c.l.b16 %v2295
      %v3320 = vunpack.c.l.b16 %v2296
      %v3321 = vunpack.c.l.b16 %v2297
      %v3322 = vunpack.c.l.b16 %v2298
      %v3323 = vunpack.c.l.b16 %v2299
      %v3324 = vunpack.c.l.b16 %v2300
      %v3325 = vunpack.c.l.b16 %v2301
      %v3326 = vunpack.c.l.b16 %v2302
      %v3327 = vunpack.c.l.b16 %v2303
      %v3328 = vunpack.c.l.b16 %v2304
      %v3329 = vunpack.c.l.b16 %v2305
      %v3330 = vunpack.c.l.b16 %v2306
      %v3331 = vunpack.c.l.b16 %v2307
      %v3332 = vunpack.c.l.b16 %v2308
      %v3333 = vunpack.c.l.b16 %v2309
      %v3334 = vunpack.c.l.b16 %v2310
      %v3335 = vunpack.c.l.b16 %v2311
      %v3336 = vunpack.c.l.b16 %v2312
      %v3337 = vunpack.c.l.b16 %v2313
      %v3338 = vunpack.c.l.b16 %v2314
      %v3339 = vunpack.c.l.b16 %v2315
      %v3340 = vunpack.c.l.b16 %v2316
      %v3341 = vunpack.c.l.b16 %v2317
      %v3342 = vunpack.c.l.b16 %v2318
      %v3343 = vunpack.c.l.b16 %v2319
      %v3344 = vunpack.c.l.b16 %v2320
      %v3345 = vunpack.c.l.b16 %v2321
      %v3346 = vunpack.c.l.b16 %v2322
      %v3347 = vunpack.c.l.b16 %v2323
      %v3348 = vunpack.c.l.b16 %v2324
      %v3349 = vunpack.c.l.b16 %v2325
      %v3350 = vunpack.c.l.b16 %v2326
      %v3351 = vunpack.c.l.b16 %v2327
      %v3352 = vunpack.c.l.b16 %v2328
      %v3353 = vunpack.c.l.b16 %v2329
      %v3354 = vunpack.c.l.b16 %v2330
      %v3355 = vunpack.c.l.b16 %v2331
      %v3356 = vunpack.c.l.b16 %v2332
      %v3357 = vunpack.c.l.b16 %v2333
      %v3358 = vunpack.c.l.b16 %v2334
      %v3359 = vunpack.c.l.b16 %v2335
      %v3360 = vunpack.c.l.b16 %v2336
      %v3361 = vunpack.c.l.b16 %v2337
      %v3362 = vunpack.c.l.b16 %v2338
      %v3363 = vunpack.c.l.b16 %v2339
      %v3364 = vunpack.c.l.b16 %v2340
      %v3365 = vunpack.c.l.b16 %v2341
      %v3366 = vunpack.c.l.b16 %v2342
      %v3367 = vunpack.c.l.b16 %v2343
      %v3368 = vunpack.c.l.b16 %v2344
      %v3369 = vunpack.c.l.b16 %v2345
      %v3370 = vunpack.c.l.b16 %v2346
      %v3371 = vunpack.c.l.b16 %v2347
      %v3372 = vunpack.c.l.b16 %v2348
      %v3373 = vunpack.c.l.b16 %v2349
      %v3374 = vunpack.c.l.b16 %v2350
      %v3375 = vunpack.c.l.b16 %v2351
      %v3376 = vunpack.c.l.b16 %v2352
      %v3377 = vunpack.c.l.b16 %v2353
      %v3378 = vunpack.c.l.b16 %v2354
      %v3379 = vunpack.c.l.b16 %v2355
      %v3380 = vunpack.c.l.b16 %v2356
      %v3381 = vunpack.c.l.b16 %v2357
      %v3382 = vunpack.c.l.b16 %v2358
      %v3383 = vunpack.c.l.b16 %v2359
      %v3384 = vunpack.c.l.b16 %v2360
      %v3385 = vunpack.c.l.b16 %v2361
      %v3386 = vunpack.c.l.b16 %v2362
      %v3387 = vunpack.c.l.b16 %v2363
      %v3388 = vunpack.c.l.b16 %v2364
      %v3389 = vunpack.c.l.b16 %v2365
      %v3390 = vunpack.c.l.b16 %v2366
      %v3391 = vunpack.c.l.b16 %v2367
      %v3392 = vunpack.c.l.b16 %v2368
      %v3393 = vunpack.c.l.b16 %v2369
      %v3394 = vunpack.c.l.b16 %v2370
      %v3395 = vunpack.c.l.b16 %v2371
      %v3396 = vunpack.c.l.b16 %v2372
      %v3397 = vunpack.c.l.b16 %v2373
      %v3398 = vunpack.c.l.b16 %v2374
      %v3399 = vunpack.c.l.b16 %v2375
      %v3400 = vunpack.c.l.b16 %v2376
      %v3401 = vunpack.c.l.b16 %v2377
      %v3402 = vunpack.c.l.b16 %v2378
      %v3403 = vunpack.c.l.b16 %v2379
      %v3404 = vunpack.c.l.b16 %v2380
      %v3405 = vunpack.c.l.b16 %v2381
      %v3406 = vunpack.c.l.b16 %v2382
      %v3407 = vunpack.c.l.b16 %v2383
      %v3408 = vunpack.c.l.b16 %v2384
      %v3409 = vunpack.c.l.b16 %v2385
      %v3410 = vunpack.c.l.b16 %v2386
      %v3411 = vunpack.c.l.b16 %v2387
      %v3412 = vunpack.c.l.b16 %v2388
      %v3413 = vunpack.c.l.b16 %v2389
      %v3414 = vunpack.c.l.b16 %v2390
      %v3415 = vunpack.c.l.b16 %v2391
      %v3416 = vunpack.c.l.b16 %v2392
      %v3417 = vunpack.c.l.b16 %v2393
      %v3418 = vunpack.c.l.b16 %v2394
      %v3419 = vunpack.c.l.b16 %v2395
      %v3420 = vunpack.c.l.b16 %v2396
      %v3421 = vunpack.c.l.b16 %v2397
      %v3422 = vunpack.c.l.b16 %v2398
      %v3423 = vunpack.c.l.b16 %v2399
      %v3424 = vunpack.c.l.b16 %v2400
      %v3425 = vunpack.c.l.b16 %v2401
      %v3426 = vunpack.c.l.b16 %v2402
      %v3427 = vunpack.c.l.b16 %v2403
      %v3428 = vunpack.c.l.b16 %v2404
      %v3429 = vunpack.c.l.b16 %v2405
      %v3430 = vunpack.c.l.b16 %v2406
      %v3431 = vunpack.c.l.b16 %v2407
      %v3432 = vunpack.c.l.b16 %v2408
      %v3433 = vunpack.c.l.b16 %v2409
      %v3434 = vunpack.c.l.b16 %v2410
      %v3435 = vunpack.c.l.b16 %v2411
      %v3436 = vunpack.c.l.b16 %v2412
      %v3437 = vunpack.c.l.b16 %v2413
      %v3438 = vunpack.c.l.b16 %v2414
      %v3439 = vunpack.c.l.b16 %v2415
      %v3440 = vunpack.c.l.b16 %v2416
      %v3441 = vunpack.c.l.b16 %v2417
      %v3442 = vunpack.c.l.b16 %v2418
      %v3443 = vunpack.c.l.b16 %v2419
      %v3444 = vunpack.c.l.b16 %v2420
      %v3445 = vunpack.c.l.b16 %v2421
      %v3446 = vunpack.c.l.b16 %v2422
      %v3447 = vunpack.c.l.b16 %v2423
      %v3448 = vunpack.c.l.b16 %v2424
      %v3449 = vunpack.c.l.b16 %v2425
      %v3450 = vunpack.c.l.b16 %v2426
      %v3451 = vunpack.c.l.b16 %v2427
      %v3452 = vunpack.c.l.b16 %v2428
      %v3453 = vunpack.c.l.b16 %v2429
      %v3454 = vunpack.c.l.b16 %v2430
      %v3455 = vunpack.c.l.b16 %v2431
      %v3456 = vunpack.c.l.b16 %v2432
      %v3457 = vunpack.c.l.b16 %v2433
      %v3458 = vunpack.c.l.b16 %v2434
      %v3459 = vpack.c.b16 %v3316, %v3315
      %v3460 = vpack.c.b16 %v3318, %v3317
      %v3461 = vpack.c.b16 %v3320, %v3319
      %v3462 = vpack.c.b16 %v3322, %v3321
      %v3463 = vpack.c.b16 %v3324, %v3323
      %v3464 = vpack.c.b16 %v3326, %v3325
      %v3465 = vpack.c.b16 %v3328, %v3327
      %v3466 = vpack.c.b16 %v3330, %v3329
      %v3467 = vpack.c.b16 %v3332, %v3331
      %v3468 = vpack.c.b16 %v3334, %v3333
      %v3469 = vpack.c.b16 %v3336, %v3335
      %v3470 = vpack.c.b16 %v3338, %v3337
      %v3471 = vpack.c.b16 %v3340, %v3339
      %v3472 = vpack.c.b16 %v3342, %v3341
      %v3473 = vpack.c.b16 %v3344, %v3343
      %v3474 = vpack.c.b16 %v3346, %v3345
      %v3475 = vpack.c.b16 %v3348, %v3347
      %v3476 = vpack.c.b16 %v3350, %v3349
      %v3477 = vpack.c.b16 %v3352, %v3351
      %v3478 = vpack.c.b16 %v3354, %v3353
      %v3479 = vpack.c.b16 %v3356, %v3355
      %v3480 = vpack.c.b16 %v3358, %v3357
      %v3481 = vpack.c.b16 %v3360, %v3359
      %v3482 = vpack.c.b16 %v3362, %v3361
      %v3483 = vpack.c.b16 %v3364, %v3363
      %v3484 = vpack.c.b16 %v3366, %v3365
      %v3485 = vpack.c.b16 %v3368, %v3367
      %v3486 = vpack.c.b16 %v3370, %v3369
      %v3487 = vpack.c.b16 %v3372, %v3371
      %v3488 = vpack.c.b16 %v3374, %v3373
      %v3489 = vpack.c.b16 %v3376, %v3375
      %v3490 = vpack.c.b16 %v3378, %v3377
      %v3491 = vpack.c.b16 %v3380, %v3379
      %v3492 = vpack.c.b16 %v3382, %v3381
      %v3493 = vpack.c.b16 %v3384, %v3383
      %v3494 = vpack.c.b16 %v3386, %v3385
      %v3495 = vpack.c.b16 %v3388, %v3387
      %v3496 = vpack.c.b16 %v3390, %v3389
      %v3497 = vpack.c.b16 %v3392, %v3391
      %v3498 = vpack.c.b16 %v3394, %v3393
      %v3499 = vpack.c.b16 %v3396, %v3395
      %v3500 = vpack.c.b16 %v3398, %v3397
      %v3501 = vpack.c.b16 %v3400, %v3399
      %v3502 = vpack.c.b16 %v3402, %v3401
      %v3503 = vpack.c.b16 %v3404, %v3403
      %v3504 = vpack.c.b16 %v3406, %v3405
      %v3505 = vpack.c.b16 %v3408, %v3407
      %v3506 = vpack.c.b16 %v3410, %v3409
      %v3507 = vpack.c.b16 %v3412, %v3411
      %v3508 = vpack.c.b16 %v3414, %v3413
      %v3509 = vpack.c.b16 %v3416, %v3415
      %v3510 = vpack.c.b16 %v3418, %v3417
      %v3511 = vpack.c.b16 %v3420, %v3419
      %v3512 = vpack.c.b16 %v3422, %v3421
      %v3513 = vpack.c.b16 %v3424, %v3423
      %v3514 = vpack.c.b16 %v3426, %v3425
      %v3515 = vpack.c.b16 %v3428, %v3427
      %v3516 = vpack.c.b16 %v3430, %v3429
      %v3517 = vpack.c.b16 %v3432, %v3431
      %v3518 = vpack.c.b16 %v3434, %v3433
      %v3519 = vpack.c.b16 %v3436, %v3435
      %v3520 = vpack.c.b16 %v3438, %v3437
      %v3521 = vpack.c.b16 %v3440, %v3439
      %v3522 = vpack.c.b16 %v3442, %v3441
      %v3523 = vpack.c.b16 %v3444, %v3443
      %v3524 = vpack.c.b16 %v3446, %v3445
      %v3525 = vpack.c.b16 %v3448, %v3447
      %v3526 = vpack.c.b16 %v3450, %v3449
      %v3527 = vpack.c.b16 %v3452, %v3451
      %v3528 = vpack.c.b16 %v3454, %v3453
      %v3529 = vpack.c.b16 %v3456, %v3455
      %v3530 = vpack.c.b16 %v3458, %v3457
      %3603 = vmatprep.subr.bf16.mxu0 0
      %3604 = vmatpush1.bf16.msra.mxu0 %v3466
      %3605 = vmatprep.subr.bf16.mxu0 0
      %3606 = vmatpush1.bf16.msra.mxu0 %v3465
      %3607 = vmatprep.subr.bf16.mxu0 0
      %3608 = vmatpush1.bf16.msra.mxu0 %v3464
      %3609 = vmatprep.subr.bf16.mxu0 0
      %3610 = vmatpush1.bf16.msra.mxu0 %v3463
      %3611 = vmatprep.subr.bf16.mxu0 0
      %3612 = vmatpush1.bf16.msra.mxu0 %v3462
      %3613 = vmatprep.subr.bf16.mxu0 0
      %3614 = vmatpush1.bf16.msra.mxu0 %v3461
      %3615 = vmatprep.subr.bf16.mxu0 0
      %3616 = vmatpush1.bf16.msra.mxu0 %v3460
      %3617 = vmatprep.subr.bf16.mxu0 0
      %3618 = vmatpush1.bf16.msra.mxu0 %v3459
      %3619 = vmatprep.subr.bf16.mxu0 0
      %3620 = vmatpush2.bf16.msra.mxu0 %v3474
      %3621 = vmatprep.subr.bf16.mxu0 0
      %3622 = vmatpush2.bf16.msra.mxu0 %v3473
      %3623 = vmatprep.subr.bf16.mxu0 0
      %3624 = vmatpush2.bf16.msra.mxu0 %v3472
      %3625 = vmatprep.subr.bf16.mxu0 0
      %3626 = vmatpush2.bf16.msra.mxu0 %v3471
      %3627 = vmatprep.subr.bf16.mxu0 0
      %3628 = vmatpush2.bf16.msra.mxu0 %v3470
      %3629 = vmatprep.subr.bf16.mxu0 0
      %3630 = vmatpush2.bf16.msra.mxu0 %v3469
      %3631 = vmatprep.subr.bf16.mxu0 0
      %3632 = vmatpush2.bf16.msra.mxu0 %v3468
      %3633 = vmatprep.subr.bf16.mxu0 0
      %3634 = vmatpush2.bf16.msra.mxu0 %v3467
      %3635 = vmatprep.mubr.bf16.mxu0 %v2884
      %3636 = vmatmul.mubr.bf16.gmra.mxu0 %v2883
      %v3637 = vpop.f32.mrf.mxu0
      %v3638 = vadd.f32 0.0, %v3637
      %v3639 = vpop.f32.mrf.mxu0
      %v3640 = vpop.f32.mrf.mxu0
      %v3641 = vadd.f32 0.0, %v3640
      %v3642 = vpop.f32.mrf.mxu0
      %3643 = vmatprep.mubr.bf16.mxu0 %v2893
      %3644 = vmatmul.mubr.bf16.gmra.mxu0 %v2892
      %v3645 = vpop.f32.mrf.mxu0
      %v3646 = vadd.f32 0.0, %v3645
      %v3647 = vpop.f32.mrf.mxu0
      %v3648 = vpop.f32.mrf.mxu0
      %v3649 = vadd.f32 0.0, %v3648
      %v3650 = vpop.f32.mrf.mxu0
      %3651 = vmatprep.mubr.bf16.mxu0 %v2902
      %3652 = vmatmul.mubr.bf16.gmra.mxu0 %v2901
      %v3653 = vpop.f32.mrf.mxu0
      %v3654 = vadd.f32 0.0, %v3653
      %v3655 = vpop.f32.mrf.mxu0
      %v3656 = vpop.f32.mrf.mxu0
      %v3657 = vadd.f32 0.0, %v3656
      %v3658 = vpop.f32.mrf.mxu0
      %3659 = vmatprep.mubr.bf16.mxu0 %v2911
      %3660 = vmatmul.mubr.bf16.gmra.mxu0 %v2910
      %v3661 = vpop.f32.mrf.mxu0
      %v3662 = vadd.f32 0.0, %v3661
      %v3663 = vpop.f32.mrf.mxu0
      %v3664 = vpop.f32.mrf.mxu0
      %v3665 = vadd.f32 0.0, %v3664
      %v3666 = vpop.f32.mrf.mxu0
      %3667 = vmatprep.mubr.bf16.mxu0 %v2920
      %3668 = vmatmul.mubr.bf16.gmra.mxu0 %v2919
      %v3669 = vpop.f32.mrf.mxu0
      %v3670 = vadd.f32 0.0, %v3669
      %v3671 = vpop.f32.mrf.mxu0
      %v3672 = vpop.f32.mrf.mxu0
      %v3673 = vadd.f32 0.0, %v3672
      %v3674 = vpop.f32.mrf.mxu0
      %3675 = vmatprep.mubr.bf16.mxu0 %v2929
      %3676 = vmatmul.mubr.bf16.gmra.mxu0 %v2928
      %v3677 = vpop.f32.mrf.mxu0
      %v3678 = vadd.f32 0.0, %v3677
      %v3679 = vpop.f32.mrf.mxu0
      %v3680 = vpop.f32.mrf.mxu0
      %v3681 = vadd.f32 0.0, %v3680
      %v3682 = vpop.f32.mrf.mxu0
      %3683 = vmatprep.mubr.bf16.mxu0 %v2938
      %3684 = vmatmul.mubr.bf16.gmra.mxu0 %v2937
      %v3685 = vpop.f32.mrf.mxu0
      %v3686 = vadd.f32 0.0, %v3685
      %v3687 = vpop.f32.mrf.mxu0
      %v3688 = vpop.f32.mrf.mxu0
      %v3689 = vadd.f32 0.0, %v3688
      %v3690 = vpop.f32.mrf.mxu0
      %3691 = vmatprep.mubr.bf16.mxu0 %v2947
      %3692 = vmatmul.mubr.bf16.gmra.mxu0 %v2946
      %v3693 = vpop.f32.mrf.mxu0
      %v3694 = vadd.f32 0.0, %v3693
      %v3695 = vpop.f32.mrf.mxu0
      %v3696 = vpop.f32.mrf.mxu0
      %v3697 = vadd.f32 0.0, %v3696
      %v3698 = vpop.f32.mrf.mxu0
      %3699 = vmatprep.mubr.bf16.mxu0 %v2956
      %3700 = vmatmul.mubr.bf16.gmra.mxu0 %v2955
      %v3701 = vpop.f32.mrf.mxu0
      %v3702 = vadd.f32 0.0, %v3701
      %v3703 = vpop.f32.mrf.mxu0
      %v3704 = vpop.f32.mrf.mxu0
      %v3705 = vadd.f32 0.0, %v3704
      %v3706 = vpop.f32.mrf.mxu0
      %3707 = vmatprep.mubr.bf16.mxu0 %v2965
      %3708 = vmatmul.mubr.bf16.gmra.mxu0 %v2964
      %v3709 = vpop.f32.mrf.mxu0
      %v3710 = vadd.f32 0.0, %v3709
      %v3711 = vpop.f32.mrf.mxu0
      %v3712 = vpop.f32.mrf.mxu0
      %v3713 = vadd.f32 0.0, %v3712
      %v3714 = vpop.f32.mrf.mxu0
      %3715 = vmatprep.mubr.bf16.mxu0 %v2974
      %3716 = vmatmul.mubr.bf16.gmra.mxu0 %v2973
      %v3717 = vpop.f32.mrf.mxu0
      %v3718 = vadd.f32 0.0, %v3717
      %v3719 = vpop.f32.mrf.mxu0
      %v3720 = vpop.f32.mrf.mxu0
      %v3721 = vadd.f32 0.0, %v3720
      %v3722 = vpop.f32.mrf.mxu0
      %3723 = vmatprep.mubr.bf16.mxu0 %v2983
      %3724 = vmatmul.mubr.bf16.gmra.mxu0 %v2982
      %v3725 = vpop.f32.mrf.mxu0
      %v3726 = vadd.f32 0.0, %v3725
      %v3727 = vpop.f32.mrf.mxu0
      %v3728 = vpop.f32.mrf.mxu0
      %v3729 = vadd.f32 0.0, %v3728
      %v3730 = vpop.f32.mrf.mxu0
      %3731 = vmatprep.mubr.bf16.mxu0 %v2992
      %3732 = vmatmul.mubr.bf16.gmra.mxu0 %v2991
      %v3733 = vpop.f32.mrf.mxu0
      %v3734 = vadd.f32 0.0, %v3733
      %v3735 = vpop.f32.mrf.mxu0
      %v3736 = vpop.f32.mrf.mxu0
      %v3737 = vadd.f32 0.0, %v3736
      %v3738 = vpop.f32.mrf.mxu0
      %3739 = vmatprep.mubr.bf16.mxu0 %v3001
      %3740 = vmatmul.mubr.bf16.gmra.mxu0 %v3000
      %v3741 = vpop.f32.mrf.mxu0
      %v3742 = vadd.f32 0.0, %v3741
      %v3743 = vpop.f32.mrf.mxu0
      %v3744 = vpop.f32.mrf.mxu0
      %v3745 = vadd.f32 0.0, %v3744
      %v3746 = vpop.f32.mrf.mxu0
      %3747 = vmatprep.mubr.bf16.mxu0 %v3010
      %3748 = vmatmul.mubr.bf16.gmra.mxu0 %v3009
      %v3749 = vpop.f32.mrf.mxu0
      %v3750 = vadd.f32 0.0, %v3749
      %v3751 = vpop.f32.mrf.mxu0
      %v3752 = vpop.f32.mrf.mxu0
      %v3753 = vadd.f32 0.0, %v3752
      %v3754 = vpop.f32.mrf.mxu0
      %3755 = vmatprep.mubr.bf16.mxu0 %v3019
      %3756 = vmatmul.mubr.bf16.gmra.mxu0 %v3018
      %v3757 = vpop.f32.mrf.mxu0
      %v3758 = vadd.f32 0.0, %v3757
      %v3759 = vpop.f32.mrf.mxu0
      %v3760 = vpop.f32.mrf.mxu0
      %v3761 = vadd.f32 0.0, %v3760
      %v3762 = vpop.f32.mrf.mxu0
      %3763 = vdwg.mxu0
      %3764 = vmatprep.subr.bf16.mxu0 0
      %3765 = vmatpush1.bf16.msra.mxu0 %v3482
      %3766 = vmatprep.subr.bf16.mxu0 0
      %3767 = vmatpush1.bf16.msra.mxu0 %v3481
      %3768 = vmatprep.subr.bf16.mxu0 0
      %3769 = vmatpush1.bf16.msra.mxu0 %v3480
      %3770 = vmatprep.subr.bf16.mxu0 0
      %3771 = vmatpush1.bf16.msra.mxu0 %v3479
      %3772 = vmatprep.subr.bf16.mxu0 0
      %3773 = vmatpush1.bf16.msra.mxu0 %v3478
      %3774 = vmatprep.subr.bf16.mxu0 0
      %3775 = vmatpush1.bf16.msra.mxu0 %v3477
      %3776 = vmatprep.subr.bf16.mxu0 0
      %3777 = vmatpush1.bf16.msra.mxu0 %v3476
      %3778 = vmatprep.subr.bf16.mxu0 0
      %3779 = vmatpush1.bf16.msra.mxu0 %v3475
      %3780 = vmatprep.subr.bf16.mxu0 0
      %3781 = vmatpush2.bf16.msra.mxu0 %v3490
      %3782 = vmatprep.subr.bf16.mxu0 0
      %3783 = vmatpush2.bf16.msra.mxu0 %v3489
      %3784 = vmatprep.subr.bf16.mxu0 0
      %3785 = vmatpush2.bf16.msra.mxu0 %v3488
      %3786 = vmatprep.subr.bf16.mxu0 0
      %3787 = vmatpush2.bf16.msra.mxu0 %v3487
      %3788 = vmatprep.subr.bf16.mxu0 0
      %3789 = vmatpush2.bf16.msra.mxu0 %v3486
      %3790 = vmatprep.subr.bf16.mxu0 0
      %3791 = vmatpush2.bf16.msra.mxu0 %v3485
      %3792 = vmatprep.subr.bf16.mxu0 0
      %3793 = vmatpush2.bf16.msra.mxu0 %v3484
      %3794 = vmatprep.subr.bf16.mxu0 0
      %3795 = vmatpush2.bf16.msra.mxu0 %v3483
      %3796 = vmatprep.mubr.bf16.mxu0 %v2886
      %3797 = vmatmul.mubr.bf16.gmra.mxu0 %v2885
      %v3798 = vpop.f32.mrf.mxu0
      %v3799 = vadd.f32 %v3638, %v3798
      %v3800 = vpop.f32.mrf.mxu0
      %v3801 = vpop.f32.mrf.mxu0
      %v3802 = vadd.f32 %v3641, %v3801
      %v3803 = vpop.f32.mrf.mxu0
      %3804 = vmatprep.mubr.bf16.mxu0 %v2895
      %3805 = vmatmul.mubr.bf16.gmra.mxu0 %v2894
      %v3806 = vpop.f32.mrf.mxu0
      %v3807 = vadd.f32 %v3646, %v3806
      %v3808 = vpop.f32.mrf.mxu0
      %v3809 = vpop.f32.mrf.mxu0
      %v3810 = vadd.f32 %v3649, %v3809
      %v3811 = vpop.f32.mrf.mxu0
      %3812 = vmatprep.mubr.bf16.mxu0 %v2904
      %3813 = vmatmul.mubr.bf16.gmra.mxu0 %v2903
      %v3814 = vpop.f32.mrf.mxu0
      %v3815 = vadd.f32 %v3654, %v3814
      %v3816 = vpop.f32.mrf.mxu0
      %v3817 = vpop.f32.mrf.mxu0
      %v3818 = vadd.f32 %v3657, %v3817
      %v3819 = vpop.f32.mrf.mxu0
      %3820 = vmatprep.mubr.bf16.mxu0 %v2913
      %3821 = vmatmul.mubr.bf16.gmra.mxu0 %v2912
      %v3822 = vpop.f32.mrf.mxu0
      %v3823 = vadd.f32 %v3662, %v3822
      %v3824 = vpop.f32.mrf.mxu0
      %v3825 = vpop.f32.mrf.mxu0
      %v3826 = vadd.f32 %v3665, %v3825
      %v3827 = vpop.f32.mrf.mxu0
      %3828 = vmatprep.mubr.bf16.mxu0 %v2922
      %3829 = vmatmul.mubr.bf16.gmra.mxu0 %v2921
      %v3830 = vpop.f32.mrf.mxu0
      %v3831 = vadd.f32 %v3670, %v3830
      %v3832 = vpop.f32.mrf.mxu0
      %v3833 = vpop.f32.mrf.mxu0
      %v3834 = vadd.f32 %v3673, %v3833
      %v3835 = vpop.f32.mrf.mxu0
      %3836 = vmatprep.mubr.bf16.mxu0 %v2931
      %3837 = vmatmul.mubr.bf16.gmra.mxu0 %v2930
      %v3838 = vpop.f32.mrf.mxu0
      %v3839 = vadd.f32 %v3678, %v3838
      %v3840 = vpop.f32.mrf.mxu0
      %v3841 = vpop.f32.mrf.mxu0
      %v3842 = vadd.f32 %v3681, %v3841
      %v3843 = vpop.f32.mrf.mxu0
      %3844 = vmatprep.mubr.bf16.mxu0 %v2940
      %3845 = vmatmul.mubr.bf16.gmra.mxu0 %v2939
      %v3846 = vpop.f32.mrf.mxu0
      %v3847 = vadd.f32 %v3686, %v3846
      %v3848 = vpop.f32.mrf.mxu0
      %v3849 = vpop.f32.mrf.mxu0
      %v3850 = vadd.f32 %v3689, %v3849
      %v3851 = vpop.f32.mrf.mxu0
      %3852 = vmatprep.mubr.bf16.mxu0 %v2949
      %3853 = vmatmul.mubr.bf16.gmra.mxu0 %v2948
      %v3854 = vpop.f32.mrf.mxu0
      %v3855 = vadd.f32 %v3694, %v3854
      %v3856 = vpop.f32.mrf.mxu0
      %v3857 = vpop.f32.mrf.mxu0
      %v3858 = vadd.f32 %v3697, %v3857
      %v3859 = vpop.f32.mrf.mxu0
      %3860 = vmatprep.mubr.bf16.mxu0 %v2958
      %3861 = vmatmul.mubr.bf16.gmra.mxu0 %v2957
      %v3862 = vpop.f32.mrf.mxu0
      %v3863 = vadd.f32 %v3702, %v3862
      %v3864 = vpop.f32.mrf.mxu0
      %v3865 = vpop.f32.mrf.mxu0
      %v3866 = vadd.f32 %v3705, %v3865
      %v3867 = vpop.f32.mrf.mxu0
      %3868 = vmatprep.mubr.bf16.mxu0 %v2967
      %3869 = vmatmul.mubr.bf16.gmra.mxu0 %v2966
      %v3870 = vpop.f32.mrf.mxu0
      %v3871 = vadd.f32 %v3710, %v3870
      %v3872 = vpop.f32.mrf.mxu0
      %v3873 = vpop.f32.mrf.mxu0
      %v3874 = vadd.f32 %v3713, %v3873
      %v3875 = vpop.f32.mrf.mxu0
      %3876 = vmatprep.mubr.bf16.mxu0 %v2976
      %3877 = vmatmul.mubr.bf16.gmra.mxu0 %v2975
      %v3878 = vpop.f32.mrf.mxu0
      %v3879 = vadd.f32 %v3718, %v3878
      %v3880 = vpop.f32.mrf.mxu0
      %v3881 = vpop.f32.mrf.mxu0
      %v3882 = vadd.f32 %v3721, %v3881
      %v3883 = vpop.f32.mrf.mxu0
      %3884 = vmatprep.mubr.bf16.mxu0 %v2985
      %3885 = vmatmul.mubr.bf16.gmra.mxu0 %v2984
      %v3886 = vpop.f32.mrf.mxu0
      %v3887 = vadd.f32 %v3726, %v3886
      %v3888 = vpop.f32.mrf.mxu0
      %v3889 = vpop.f32.mrf.mxu0
      %v3890 = vadd.f32 %v3729, %v3889
      %v3891 = vpop.f32.mrf.mxu0
      %3892 = vmatprep.mubr.bf16.mxu0 %v2994
      %3893 = vmatmul.mubr.bf16.gmra.mxu0 %v2993
      %v3894 = vpop.f32.mrf.mxu0
      %v3895 = vadd.f32 %v3734, %v3894
      %v3896 = vpop.f32.mrf.mxu0
      %v3897 = vpop.f32.mrf.mxu0
      %v3898 = vadd.f32 %v3737, %v3897
      %v3899 = vpop.f32.mrf.mxu0
      %3900 = vmatprep.mubr.bf16.mxu0 %v3003
      %3901 = vmatmul.mubr.bf16.gmra.mxu0 %v3002
      %v3902 = vpop.f32.mrf.mxu0
      %v3903 = vadd.f32 %v3742, %v3902
      %v3904 = vpop.f32.mrf.mxu0
      %v3905 = vpop.f32.mrf.mxu0
      %v3906 = vadd.f32 %v3745, %v3905
      %v3907 = vpop.f32.mrf.mxu0
      %3908 = vmatprep.mubr.bf16.mxu0 %v3012
      %3909 = vmatmul.mubr.bf16.gmra.mxu0 %v3011
      %v3910 = vpop.f32.mrf.mxu0
      %v3911 = vadd.f32 %v3750, %v3910
      %v3912 = vpop.f32.mrf.mxu0
      %v3913 = vpop.f32.mrf.mxu0
      %v3914 = vadd.f32 %v3753, %v3913
      %v3915 = vpop.f32.mrf.mxu0
      %3916 = vmatprep.mubr.bf16.mxu0 %v3021
      %3917 = vmatmul.mubr.bf16.gmra.mxu0 %v3020
      %v3918 = vpop.f32.mrf.mxu0
      %v3919 = vadd.f32 %v3758, %v3918
      %v3920 = vpop.f32.mrf.mxu0
      %v3921 = vpop.f32.mrf.mxu0
      %v3922 = vadd.f32 %v3761, %v3921
      %v3923 = vpop.f32.mrf.mxu0
      %3924 = vdwg.mxu0
      %3925 = vmatprep.subr.bf16.mxu0 0
      %3926 = vmatpush1.bf16.msra.mxu0 %v3498
      %3927 = vmatprep.subr.bf16.mxu0 0
      %3928 = vmatpush1.bf16.msra.mxu0 %v3497
      %3929 = vmatprep.subr.bf16.mxu0 0
      %3930 = vmatpush1.bf16.msra.mxu0 %v3496
      %3931 = vmatprep.subr.bf16.mxu0 0
      %3932 = vmatpush1.bf16.msra.mxu0 %v3495
      %3933 = vmatprep.subr.bf16.mxu0 0
      %3934 = vmatpush1.bf16.msra.mxu0 %v3494
      %3935 = vmatprep.subr.bf16.mxu0 0
      %3936 = vmatpush1.bf16.msra.mxu0 %v3493
      %3937 = vmatprep.subr.bf16.mxu0 0
      %3938 = vmatpush1.bf16.msra.mxu0 %v3492
      %3939 = vmatprep.subr.bf16.mxu0 0
      %3940 = vmatpush1.bf16.msra.mxu0 %v3491
      %3941 = vmatprep.subr.bf16.mxu0 0
      %3942 = vmatpush2.bf16.msra.mxu0 %v3506
      %3943 = vmatprep.subr.bf16.mxu0 0
      %3944 = vmatpush2.bf16.msra.mxu0 %v3505
      %3945 = vmatprep.subr.bf16.mxu0 0
      %3946 = vmatpush2.bf16.msra.mxu0 %v3504
      %3947 = vmatprep.subr.bf16.mxu0 0
      %3948 = vmatpush2.bf16.msra.mxu0 %v3503
      %3949 = vmatprep.subr.bf16.mxu0 0
      %3950 = vmatpush2.bf16.msra.mxu0 %v3502
      %3951 = vmatprep.subr.bf16.mxu0 0
      %3952 = vmatpush2.bf16.msra.mxu0 %v3501
      %3953 = vmatprep.subr.bf16.mxu0 0
      %3954 = vmatpush2.bf16.msra.mxu0 %v3500
      %3955 = vmatprep.subr.bf16.mxu0 0
      %3956 = vmatpush2.bf16.msra.mxu0 %v3499
      %3957 = vmatprep.mubr.bf16.mxu0 %v2888
      %3958 = vmatmul.mubr.bf16.gmra.mxu0 %v2887
      %v3959 = vpop.f32.mrf.mxu0
      %v3960 = vadd.f32 %v3799, %v3959
      %v3961 = vpop.f32.mrf.mxu0
      %v3962 = vpop.f32.mrf.mxu0
      %v3963 = vadd.f32 %v3802, %v3962
      %v3964 = vpop.f32.mrf.mxu0
      %3965 = vmatprep.mubr.bf16.mxu0 %v2897
      %3966 = vmatmul.mubr.bf16.gmra.mxu0 %v2896
      %v3967 = vpop.f32.mrf.mxu0
      %v3968 = vadd.f32 %v3807, %v3967
      %v3969 = vpop.f32.mrf.mxu0
      %v3970 = vpop.f32.mrf.mxu0
      %v3971 = vadd.f32 %v3810, %v3970
      %v3972 = vpop.f32.mrf.mxu0
      %3973 = vmatprep.mubr.bf16.mxu0 %v2906
      %3974 = vmatmul.mubr.bf16.gmra.mxu0 %v2905
      %v3975 = vpop.f32.mrf.mxu0
      %v3976 = vadd.f32 %v3815, %v3975
      %v3977 = vpop.f32.mrf.mxu0
      %v3978 = vpop.f32.mrf.mxu0
      %v3979 = vadd.f32 %v3818, %v3978
      %v3980 = vpop.f32.mrf.mxu0
      %3981 = vmatprep.mubr.bf16.mxu0 %v2915
      %3982 = vmatmul.mubr.bf16.gmra.mxu0 %v2914
      %v3983 = vpop.f32.mrf.mxu0
      %v3984 = vadd.f32 %v3823, %v3983
      %v3985 = vpop.f32.mrf.mxu0
      %v3986 = vpop.f32.mrf.mxu0
      %v3987 = vadd.f32 %v3826, %v3986
      %v3988 = vpop.f32.mrf.mxu0
      %3989 = vmatprep.mubr.bf16.mxu0 %v2924
      %3990 = vmatmul.mubr.bf16.gmra.mxu0 %v2923
      %v3991 = vpop.f32.mrf.mxu0
      %v3992 = vadd.f32 %v3831, %v3991
      %v3993 = vpop.f32.mrf.mxu0
      %v3994 = vpop.f32.mrf.mxu0
      %v3995 = vadd.f32 %v3834, %v3994
      %v3996 = vpop.f32.mrf.mxu0
      %3997 = vmatprep.mubr.bf16.mxu0 %v2933
      %3998 = vmatmul.mubr.bf16.gmra.mxu0 %v2932
      %v3999 = vpop.f32.mrf.mxu0
      %v4000 = vadd.f32 %v3839, %v3999
      %v4001 = vpop.f32.mrf.mxu0
      %v4002 = vpop.f32.mrf.mxu0
      %v4003 = vadd.f32 %v3842, %v4002
      %v4004 = vpop.f32.mrf.mxu0
      %4005 = vmatprep.mubr.bf16.mxu0 %v2942
      %4006 = vmatmul.mubr.bf16.gmra.mxu0 %v2941
      %v4007 = vpop.f32.mrf.mxu0
      %v4008 = vadd.f32 %v3847, %v4007
      %v4009 = vpop.f32.mrf.mxu0
      %v4010 = vpop.f32.mrf.mxu0
      %v4011 = vadd.f32 %v3850, %v4010
      %v4012 = vpop.f32.mrf.mxu0
      %4013 = vmatprep.mubr.bf16.mxu0 %v2951
      %4014 = vmatmul.mubr.bf16.gmra.mxu0 %v2950
      %v4015 = vpop.f32.mrf.mxu0
      %v4016 = vadd.f32 %v3855, %v4015
      %v4017 = vpop.f32.mrf.mxu0
      %v4018 = vpop.f32.mrf.mxu0
      %v4019 = vadd.f32 %v3858, %v4018
      %v4020 = vpop.f32.mrf.mxu0
      %4021 = vmatprep.mubr.bf16.mxu0 %v2960
      %4022 = vmatmul.mubr.bf16.gmra.mxu0 %v2959
      %v4023 = vpop.f32.mrf.mxu0
      %v4024 = vadd.f32 %v3863, %v4023
      %v4025 = vpop.f32.mrf.mxu0
      %v4026 = vpop.f32.mrf.mxu0
      %v4027 = vadd.f32 %v3866, %v4026
      %v4028 = vpop.f32.mrf.mxu0
      %4029 = vmatprep.mubr.bf16.mxu0 %v2969
      %4030 = vmatmul.mubr.bf16.gmra.mxu0 %v2968
      %v4031 = vpop.f32.mrf.mxu0
      %v4032 = vadd.f32 %v3871, %v4031
      %v4033 = vpop.f32.mrf.mxu0
      %v4034 = vpop.f32.mrf.mxu0
      %v4035 = vadd.f32 %v3874, %v4034
      %v4036 = vpop.f32.mrf.mxu0
      %4037 = vmatprep.mubr.bf16.mxu0 %v2978
      %4038 = vmatmul.mubr.bf16.gmra.mxu0 %v2977
      %v4039 = vpop.f32.mrf.mxu0
      %v4040 = vadd.f32 %v3879, %v4039
      %v4041 = vpop.f32.mrf.mxu0
      %v4042 = vpop.f32.mrf.mxu0
      %v4043 = vadd.f32 %v3882, %v4042
      %v4044 = vpop.f32.mrf.mxu0
      %4045 = vmatprep.mubr.bf16.mxu0 %v2987
      %4046 = vmatmul.mubr.bf16.gmra.mxu0 %v2986
      %v4047 = vpop.f32.mrf.mxu0
      %v4048 = vadd.f32 %v3887, %v4047
      %v4049 = vpop.f32.mrf.mxu0
      %v4050 = vpop.f32.mrf.mxu0
      %v4051 = vadd.f32 %v3890, %v4050
      %v4052 = vpop.f32.mrf.mxu0
      %4053 = vmatprep.mubr.bf16.mxu0 %v2996
      %4054 = vmatmul.mubr.bf16.gmra.mxu0 %v2995
      %v4055 = vpop.f32.mrf.mxu0
      %v4056 = vadd.f32 %v3895, %v4055
      %v4057 = vpop.f32.mrf.mxu0
      %v4058 = vpop.f32.mrf.mxu0
      %v4059 = vadd.f32 %v3898, %v4058
      %v4060 = vpop.f32.mrf.mxu0
      %4061 = vmatprep.mubr.bf16.mxu0 %v3005
      %4062 = vmatmul.mubr.bf16.gmra.mxu0 %v3004
      %v4063 = vpop.f32.mrf.mxu0
      %v4064 = vadd.f32 %v3903, %v4063
      %v4065 = vpop.f32.mrf.mxu0
      %v4066 = vpop.f32.mrf.mxu0
      %v4067 = vadd.f32 %v3906, %v4066
      %v4068 = vpop.f32.mrf.mxu0
      %4069 = vmatprep.mubr.bf16.mxu0 %v3014
      %4070 = vmatmul.mubr.bf16.gmra.mxu0 %v3013
      %v4071 = vpop.f32.mrf.mxu0
      %v4072 = vadd.f32 %v3911, %v4071
      %v4073 = vpop.f32.mrf.mxu0
      %v4074 = vpop.f32.mrf.mxu0
      %v4075 = vadd.f32 %v3914, %v4074
      %v4076 = vpop.f32.mrf.mxu0
      %4077 = vmatprep.mubr.bf16.mxu0 %v3023
      %4078 = vmatmul.mubr.bf16.gmra.mxu0 %v3022
      %v4079 = vpop.f32.mrf.mxu0
      %v4080 = vadd.f32 %v3919, %v4079
      %v4081 = vpop.f32.mrf.mxu0
      %v4082 = vpop.f32.mrf.mxu0
      %v4083 = vadd.f32 %v3922, %v4082
      %v4084 = vpop.f32.mrf.mxu0
      %4085 = vdwg.mxu0
      %4086 = vmatprep.subr.bf16.mxu0 0
      %4087 = vmatpush1.bf16.msra.mxu0 %v3514
      %4088 = vmatprep.subr.bf16.mxu0 0
      %4089 = vmatpush1.bf16.msra.mxu0 %v3513
      %4090 = vmatprep.subr.bf16.mxu0 0
      %4091 = vmatpush1.bf16.msra.mxu0 %v3512
      %4092 = vmatprep.subr.bf16.mxu0 0
      %4093 = vmatpush1.bf16.msra.mxu0 %v3511
      %4094 = vmatprep.subr.bf16.mxu0 0
      %4095 = vmatpush1.bf16.msra.mxu0 %v3510
      %4096 = vmatprep.subr.bf16.mxu0 0
      %4097 = vmatpush1.bf16.msra.mxu0 %v3509
      %4098 = vmatprep.subr.bf16.mxu0 0
      %4099 = vmatpush1.bf16.msra.mxu0 %v3508
      %4100 = vmatprep.subr.bf16.mxu0 0
      %4101 = vmatpush1.bf16.msra.mxu0 %v3507
      %4102 = vmatprep.subr.bf16.mxu0 0
      %4103 = vmatpush2.bf16.msra.mxu0 %v3522
      %4104 = vmatprep.subr.bf16.mxu0 0
      %4105 = vmatpush2.bf16.msra.mxu0 %v3521
      %4106 = vmatprep.subr.bf16.mxu0 0
      %4107 = vmatpush2.bf16.msra.mxu0 %v3520
      %4108 = vmatprep.subr.bf16.mxu0 0
      %4109 = vmatpush2.bf16.msra.mxu0 %v3519
      %4110 = vmatprep.subr.bf16.mxu0 0
      %4111 = vmatpush2.bf16.msra.mxu0 %v3518
      %4112 = vmatprep.subr.bf16.mxu0 0
      %4113 = vmatpush2.bf16.msra.mxu0 %v3517
      %4114 = vmatprep.subr.bf16.mxu0 0
      %4115 = vmatpush2.bf16.msra.mxu0 %v3516
      %4116 = vmatprep.subr.bf16.mxu0 0
      %4117 = vmatpush2.bf16.msra.mxu0 %v3515
      %4118 = vmatprep.mubr.bf16.mxu0 %v2890
      %4119 = vmatmul.mubr.bf16.gmra.mxu0 %v2889
      %v4120 = vpop.f32.mrf.mxu0
      %v4121 = vadd.f32 %v3960, %v4120
      %v4122 = vpop.f32.mrf.mxu0
      %v4123 = vpop.f32.mrf.mxu0
      %v4124 = vadd.f32 %v3963, %v4123
      %v4125 = vpop.f32.mrf.mxu0
      %4126 = vmatprep.mubr.bf16.mxu0 %v2899
      %4127 = vmatmul.mubr.bf16.gmra.mxu0 %v2898
      %v4128 = vpop.f32.mrf.mxu0
      %v4129 = vadd.f32 %v3968, %v4128
      %v4130 = vpop.f32.mrf.mxu0
      %v4131 = vpop.f32.mrf.mxu0
      %v4132 = vadd.f32 %v3971, %v4131
      %v4133 = vpop.f32.mrf.mxu0
      %4134 = vmatprep.mubr.bf16.mxu0 %v2908
      %4135 = vmatmul.mubr.bf16.gmra.mxu0 %v2907
      %v4136 = vpop.f32.mrf.mxu0
      %v4137 = vadd.f32 %v3976, %v4136
      %v4138 = vpop.f32.mrf.mxu0
      %v4139 = vpop.f32.mrf.mxu0
      %v4140 = vadd.f32 %v3979, %v4139
      %v4141 = vpop.f32.mrf.mxu0
      %4142 = vmatprep.mubr.bf16.mxu0 %v2917
      %4143 = vmatmul.mubr.bf16.gmra.mxu0 %v2916
      %v4144 = vpop.f32.mrf.mxu0
      %v4145 = vadd.f32 %v3984, %v4144
      %v4146 = vpop.f32.mrf.mxu0
      %v4147 = vpop.f32.mrf.mxu0
      %v4148 = vadd.f32 %v3987, %v4147
      %v4149 = vpop.f32.mrf.mxu0
      %4150 = vmatprep.mubr.bf16.mxu0 %v2926
      %4151 = vmatmul.mubr.bf16.gmra.mxu0 %v2925
      %v4152 = vpop.f32.mrf.mxu0
      %v4153 = vadd.f32 %v3992, %v4152
      %v4154 = vpop.f32.mrf.mxu0
      %v4155 = vpop.f32.mrf.mxu0
      %v4156 = vadd.f32 %v3995, %v4155
      %v4157 = vpop.f32.mrf.mxu0
      %4158 = vmatprep.mubr.bf16.mxu0 %v2935
      %4159 = vmatmul.mubr.bf16.gmra.mxu0 %v2934
      %v4160 = vpop.f32.mrf.mxu0
      %v4161 = vadd.f32 %v4000, %v4160
      %v4162 = vpop.f32.mrf.mxu0
      %v4163 = vpop.f32.mrf.mxu0
      %v4164 = vadd.f32 %v4003, %v4163
      %v4165 = vpop.f32.mrf.mxu0
      %4166 = vmatprep.mubr.bf16.mxu0 %v2944
      %4167 = vmatmul.mubr.bf16.gmra.mxu0 %v2943
      %v4168 = vpop.f32.mrf.mxu0
      %v4169 = vadd.f32 %v4008, %v4168
      %v4170 = vpop.f32.mrf.mxu0
      %v4171 = vpop.f32.mrf.mxu0
      %v4172 = vadd.f32 %v4011, %v4171
      %v4173 = vpop.f32.mrf.mxu0
      %4174 = vmatprep.mubr.bf16.mxu0 %v2953
      %4175 = vmatmul.mubr.bf16.gmra.mxu0 %v2952
      %v4176 = vpop.f32.mrf.mxu0
      %v4177 = vadd.f32 %v4016, %v4176
      %v4178 = vpop.f32.mrf.mxu0
      %v4179 = vpop.f32.mrf.mxu0
      %v4180 = vadd.f32 %v4019, %v4179
      %v4181 = vpop.f32.mrf.mxu0
      %4182 = vmatprep.mubr.bf16.mxu0 %v2962
      %4183 = vmatmul.mubr.bf16.gmra.mxu0 %v2961
      %v4184 = vpop.f32.mrf.mxu0
      %v4185 = vadd.f32 %v4024, %v4184
      %v4186 = vpop.f32.mrf.mxu0
      %v4187 = vpop.f32.mrf.mxu0
      %v4188 = vadd.f32 %v4027, %v4187
      %v4189 = vpop.f32.mrf.mxu0
      %4190 = vmatprep.mubr.bf16.mxu0 %v2971
      %4191 = vmatmul.mubr.bf16.gmra.mxu0 %v2970
      %v4192 = vpop.f32.mrf.mxu0
      %v4193 = vadd.f32 %v4032, %v4192
      %v4194 = vpop.f32.mrf.mxu0
      %v4195 = vpop.f32.mrf.mxu0
      %v4196 = vadd.f32 %v4035, %v4195
      %v4197 = vpop.f32.mrf.mxu0
      %4198 = vmatprep.mubr.bf16.mxu0 %v2980
      %4199 = vmatmul.mubr.bf16.gmra.mxu0 %v2979
      %v4200 = vpop.f32.mrf.mxu0
      %v4201 = vadd.f32 %v4040, %v4200
      %v4202 = vpop.f32.mrf.mxu0
      %v4203 = vpop.f32.mrf.mxu0
      %v4204 = vadd.f32 %v4043, %v4203
      %v4205 = vpop.f32.mrf.mxu0
      %4206 = vmatprep.mubr.bf16.mxu0 %v2989
      %4207 = vmatmul.mubr.bf16.gmra.mxu0 %v2988
      %v4208 = vpop.f32.mrf.mxu0
      %v4209 = vadd.f32 %v4048, %v4208
      %v4210 = vpop.f32.mrf.mxu0
      %v4211 = vpop.f32.mrf.mxu0
      %v4212 = vadd.f32 %v4051, %v4211
      %v4213 = vpop.f32.mrf.mxu0
      %4214 = vmatprep.mubr.bf16.mxu0 %v2998
      %4215 = vmatmul.mubr.bf16.gmra.mxu0 %v2997
      %v4216 = vpop.f32.mrf.mxu0
      %v4217 = vadd.f32 %v4056, %v4216
      %v4218 = vpop.f32.mrf.mxu0
      %v4219 = vpop.f32.mrf.mxu0
      %v4220 = vadd.f32 %v4059, %v4219
      %v4221 = vpop.f32.mrf.mxu0
      %4222 = vmatprep.mubr.bf16.mxu0 %v3007
      %4223 = vmatmul.mubr.bf16.gmra.mxu0 %v3006
      %v4224 = vpop.f32.mrf.mxu0
      %v4225 = vadd.f32 %v4064, %v4224
      %v4226 = vpop.f32.mrf.mxu0
      %v4227 = vpop.f32.mrf.mxu0
      %v4228 = vadd.f32 %v4067, %v4227
      %v4229 = vpop.f32.mrf.mxu0
      %4230 = vmatprep.mubr.bf16.mxu0 %v3016
      %4231 = vmatmul.mubr.bf16.gmra.mxu0 %v3015
      %v4232 = vpop.f32.mrf.mxu0
      %v4233 = vadd.f32 %v4072, %v4232
      %v4234 = vpop.f32.mrf.mxu0
      %v4235 = vpop.f32.mrf.mxu0
      %v4236 = vadd.f32 %v4075, %v4235
      %v4237 = vpop.f32.mrf.mxu0
      %4238 = vmatprep.mubr.bf16.mxu0 %v3025
      %4239 = vmatmul.mubr.bf16.gmra.mxu0 %v3024
      %v4240 = vpop.f32.mrf.mxu0
      %v4241 = vadd.f32 %v4080, %v4240
      %v4242 = vpop.f32.mrf.mxu0
      %v4243 = vpop.f32.mrf.mxu0
      %v4244 = vadd.f32 %v4083, %v4243
      %v4245 = vpop.f32.mrf.mxu0
      %4246 = vdwg.mxu0
      %4247 = vmatprep.subr.bf16.mxu0 0
      %4248 = vmatpush1.bf16.msra.mxu0 %v3530
      %4249 = vmatprep.subr.bf16.mxu0 0
      %4250 = vmatpush1.bf16.msra.mxu0 %v3529
      %4251 = vmatprep.subr.bf16.mxu0 0
      %4252 = vmatpush1.bf16.msra.mxu0 %v3528
      %4253 = vmatprep.subr.bf16.mxu0 0
      %4254 = vmatpush1.bf16.msra.mxu0 %v3527
      %4255 = vmatprep.subr.bf16.mxu0 0
      %4256 = vmatpush1.bf16.msra.mxu0 %v3526
      %4257 = vmatprep.subr.bf16.mxu0 0
      %4258 = vmatpush1.bf16.msra.mxu0 %v3525
      %4259 = vmatprep.subr.bf16.mxu0 0
      %4260 = vmatpush1.bf16.msra.mxu0 %v3524
      %4261 = vmatprep.subr.bf16.mxu0 0
      %4262 = vmatpush1.bf16.msra.mxu0 %v3523
      %4263 = vmatprep.subr.bf16.mxu0 0
      %4264 = vmatpush2.bf16.msra.mxu0 0
      %4265 = vmatprep.subr.bf16.mxu0 0
      %4266 = vmatpush2.bf16.msra.mxu0 0
      %4267 = vmatprep.subr.bf16.mxu0 0
      %4268 = vmatpush2.bf16.msra.mxu0 0
      %4269 = vmatprep.subr.bf16.mxu0 0
      %4270 = vmatpush2.bf16.msra.mxu0 0
      %4271 = vmatprep.subr.bf16.mxu0 0
      %4272 = vmatpush2.bf16.msra.mxu0 0
      %4273 = vmatprep.subr.bf16.mxu0 0
      %4274 = vmatpush2.bf16.msra.mxu0 0
      %4275 = vmatprep.subr.bf16.mxu0 0
      %4276 = vmatpush2.bf16.msra.mxu0 0
      %4277 = vmatprep.subr.bf16.mxu0 0
      %4278 = vmatpush2.bf16.msra.mxu0 0
      %4279 = vmatprep.mubr.bf16.mxu0 0
      %4280 = vmatmul.mubr.bf16.gmra.mxu0 %v2891
      %v4281 = vpop.f32.mrf.mxu0
      %v4282 = vadd.f32 %v4121, %v4281
      %v4283 = vpop.f32.mrf.mxu0
      %v4284 = vpop.f32.mrf.mxu0
      %v4285 = vadd.f32 %v4124, %v4284
      %v4286 = vpop.f32.mrf.mxu0
      %4287 = vmatprep.mubr.bf16.mxu0 0
      %4288 = vmatmul.mubr.bf16.gmra.mxu0 %v2900
      %v4289 = vpop.f32.mrf.mxu0
      %v4290 = vadd.f32 %v4129, %v4289
      %v4291 = vpop.f32.mrf.mxu0
      %v4292 = vpop.f32.mrf.mxu0
      %v4293 = vadd.f32 %v4132, %v4292
      %v4294 = vpop.f32.mrf.mxu0
      %4295 = vmatprep.mubr.bf16.mxu0 0
      %4296 = vmatmul.mubr.bf16.gmra.mxu0 %v2909
      %v4297 = vpop.f32.mrf.mxu0
      %v4298 = vadd.f32 %v4137, %v4297
      %v4299 = vpop.f32.mrf.mxu0
      %v4300 = vpop.f32.mrf.mxu0
      %v4301 = vadd.f32 %v4140, %v4300
      %v4302 = vpop.f32.mrf.mxu0
      %4303 = vmatprep.mubr.bf16.mxu0 0
      %4304 = vmatmul.mubr.bf16.gmra.mxu0 %v2918
      %v4305 = vpop.f32.mrf.mxu0
      %v4306 = vadd.f32 %v4145, %v4305
      %v4307 = vpop.f32.mrf.mxu0
      %v4308 = vpop.f32.mrf.mxu0
      %v4309 = vadd.f32 %v4148, %v4308
      %v4310 = vpop.f32.mrf.mxu0
      %4311 = vmatprep.mubr.bf16.mxu0 0
      %4312 = vmatmul.mubr.bf16.gmra.mxu0 %v2927
      %v4313 = vpop.f32.mrf.mxu0
      %v4314 = vadd.f32 %v4153, %v4313
      %v4315 = vpop.f32.mrf.mxu0
      %v4316 = vpop.f32.mrf.mxu0
      %v4317 = vadd.f32 %v4156, %v4316
      %v4318 = vpop.f32.mrf.mxu0
      %4319 = vmatprep.mubr.bf16.mxu0 0
      %4320 = vmatmul.mubr.bf16.gmra.mxu0 %v2936
      %v4321 = vpop.f32.mrf.mxu0
      %v4322 = vadd.f32 %v4161, %v4321
      %v4323 = vpop.f32.mrf.mxu0
      %v4324 = vpop.f32.mrf.mxu0
      %v4325 = vadd.f32 %v4164, %v4324
      %v4326 = vpop.f32.mrf.mxu0
      %4327 = vmatprep.mubr.bf16.mxu0 0
      %4328 = vmatmul.mubr.bf16.gmra.mxu0 %v2945
      %v4329 = vpop.f32.mrf.mxu0
      %v4330 = vadd.f32 %v4169, %v4329
      %v4331 = vpop.f32.mrf.mxu0
      %v4332 = vpop.f32.mrf.mxu0
      %v4333 = vadd.f32 %v4172, %v4332
      %v4334 = vpop.f32.mrf.mxu0
      %4335 = vmatprep.mubr.bf16.mxu0 0
      %4336 = vmatmul.mubr.bf16.gmra.mxu0 %v2954
      %v4337 = vpop.f32.mrf.mxu0
      %v4338 = vadd.f32 %v4177, %v4337
      %v4339 = vpop.f32.mrf.mxu0
      %v4340 = vpop.f32.mrf.mxu0
      %v4341 = vadd.f32 %v4180, %v4340
      %v4342 = vpop.f32.mrf.mxu0
      %4343 = vmatprep.mubr.bf16.mxu0 0
      %4344 = vmatmul.mubr.bf16.gmra.mxu0 %v2963
      %v4345 = vpop.f32.mrf.mxu0
      %v4346 = vadd.f32 %v4185, %v4345
      %v4347 = vpop.f32.mrf.mxu0
      %v4348 = vpop.f32.mrf.mxu0
      %v4349 = vadd.f32 %v4188, %v4348
      %v4350 = vpop.f32.mrf.mxu0
      %4351 = vmatprep.mubr.bf16.mxu0 0
      %4352 = vmatmul.mubr.bf16.gmra.mxu0 %v2972
      %v4353 = vpop.f32.mrf.mxu0
      %v4354 = vadd.f32 %v4193, %v4353
      %v4355 = vpop.f32.mrf.mxu0
      %v4356 = vpop.f32.mrf.mxu0
      %v4357 = vadd.f32 %v4196, %v4356
      %v4358 = vpop.f32.mrf.mxu0
      %4359 = vmatprep.mubr.bf16.mxu0 0
      %4360 = vmatmul.mubr.bf16.gmra.mxu0 %v2981
      %v4361 = vpop.f32.mrf.mxu0
      %v4362 = vadd.f32 %v4201, %v4361
      %v4363 = vpop.f32.mrf.mxu0
      %v4364 = vpop.f32.mrf.mxu0
      %v4365 = vadd.f32 %v4204, %v4364
      %v4366 = vpop.f32.mrf.mxu0
      %4367 = vmatprep.mubr.bf16.mxu0 0
      %4368 = vmatmul.mubr.bf16.gmra.mxu0 %v2990
      %v4369 = vpop.f32.mrf.mxu0
      %v4370 = vadd.f32 %v4209, %v4369
      %v4371 = vpop.f32.mrf.mxu0
      %v4372 = vpop.f32.mrf.mxu0
      %v4373 = vadd.f32 %v4212, %v4372
      %v4374 = vpop.f32.mrf.mxu0
      %4375 = vmatprep.mubr.bf16.mxu0 0
      %4376 = vmatmul.mubr.bf16.gmra.mxu0 %v2999
      %v4377 = vpop.f32.mrf.mxu0
      %v4378 = vadd.f32 %v4217, %v4377
      %v4379 = vpop.f32.mrf.mxu0
      %v4380 = vpop.f32.mrf.mxu0
      %v4381 = vadd.f32 %v4220, %v4380
      %v4382 = vpop.f32.mrf.mxu0
      %4383 = vmatprep.mubr.bf16.mxu0 0
      %4384 = vmatmul.mubr.bf16.gmra.mxu0 %v3008
      %v4385 = vpop.f32.mrf.mxu0
      %v4386 = vadd.f32 %v4225, %v4385
      %v4387 = vpop.f32.mrf.mxu0
      %v4388 = vpop.f32.mrf.mxu0
      %v4389 = vadd.f32 %v4228, %v4388
      %v4390 = vpop.f32.mrf.mxu0
      %4391 = vmatprep.mubr.bf16.mxu0 0
      %4392 = vmatmul.mubr.bf16.gmra.mxu0 %v3017
      %v4393 = vpop.f32.mrf.mxu0
      %v4394 = vadd.f32 %v4233, %v4393
      %v4395 = vpop.f32.mrf.mxu0
      %v4396 = vpop.f32.mrf.mxu0
      %v4397 = vadd.f32 %v4236, %v4396
      %v4398 = vpop.f32.mrf.mxu0
      %4399 = vmatprep.mubr.bf16.mxu0 0
      %4400 = vmatmul.mubr.bf16.gmra.mxu0 %v3026
      %v4401 = vpop.f32.mrf.mxu0
      %v4402 = vadd.f32 %v4241, %v4401
      %v4403 = vpop.f32.mrf.mxu0
      %v4404 = vpop.f32.mrf.mxu0
      %v4405 = vadd.f32 %v4244, %v4404
      %v4406 = vpop.f32.mrf.mxu0
      %4407 = vdwg.mxu0
      %v4408 = vld [vmem:[%s5] sm:$0x1]
      %v4409 = vlaneseq
      %v4410 = vshrl.u32 %v4409, 7
      %v4411 = vsub.s32 0, %v4410
      %v4412 = vrot.slane %v4408, %v4411
      %v4413 = vmul.f32 %v4282, %v4412
      %v4414 = vmul.f32 %v4285, %v4412
      %v4415 = vmul.f32 %v4290, %v4412
      %v4416 = vmul.f32 %v4293, %v4412
      %v4417 = vmul.f32 %v4298, %v4412
      %v4418 = vmul.f32 %v4301, %v4412
      %v4419 = vmul.f32 %v4306, %v4412
      %v4420 = vmul.f32 %v4309, %v4412
      %v4421 = vmul.f32 %v4314, %v4412
      %v4422 = vmul.f32 %v4317, %v4412
      %v4423 = vmul.f32 %v4322, %v4412
      %v4424 = vmul.f32 %v4325, %v4412
      %v4425 = vmul.f32 %v4330, %v4412
      %v4426 = vmul.f32 %v4333, %v4412
      %v4427 = vmul.f32 %v4338, %v4412
      %v4428 = vmul.f32 %v4341, %v4412
      %v4429 = vmul.f32 %v4346, %v4412
      %v4430 = vmul.f32 %v4349, %v4412
      %v4431 = vmul.f32 %v4354, %v4412
      %v4432 = vmul.f32 %v4357, %v4412
      %v4433 = vmul.f32 %v4362, %v4412
      %v4434 = vmul.f32 %v4365, %v4412
      %v4435 = vmul.f32 %v4370, %v4412
      %v4436 = vmul.f32 %v4373, %v4412
      %v4437 = vmul.f32 %v4378, %v4412
      %v4438 = vmul.f32 %v4381, %v4412
      %v4439 = vmul.f32 %v4386, %v4412
      %v4440 = vmul.f32 %v4389, %v4412
      %v4441 = vmul.f32 %v4394, %v4412
      %v4442 = vmul.f32 %v4397, %v4412
      %v4443 = vmul.f32 %v4402, %v4412
      %v4444 = vmul.f32 %v4405, %v4412
      %v4445 = vld [vmem:[%s5 + $0x1] sm:$0x1]
      %v4446 = vlaneseq
      %v4447 = vshrl.u32 %v4446, 7
      %v4448 = vsub.s32 0, %v4447
      %v4449 = vrot.slane %v4445, %v4448
      %v4450 = vadd.f32 %v4413, %v4449
      %v4451 = vadd.f32 %v4414, %v4449
      %v4452 = vadd.f32 %v4415, %v4449
      %v4453 = vadd.f32 %v4416, %v4449
      %v4454 = vadd.f32 %v4417, %v4449
      %v4455 = vadd.f32 %v4418, %v4449
      %v4456 = vadd.f32 %v4419, %v4449
      %v4457 = vadd.f32 %v4420, %v4449
      %v4458 = vadd.f32 %v4421, %v4449
      %v4459 = vadd.f32 %v4422, %v4449
      %v4460 = vadd.f32 %v4423, %v4449
      %v4461 = vadd.f32 %v4424, %v4449
      %v4462 = vadd.f32 %v4425, %v4449
      %v4463 = vadd.f32 %v4426, %v4449
      %v4464 = vadd.f32 %v4427, %v4449
      %v4465 = vadd.f32 %v4428, %v4449
      %v4466 = vadd.f32 %v4429, %v4449
      %v4467 = vadd.f32 %v4430, %v4449
      %v4468 = vadd.f32 %v4431, %v4449
      %v4469 = vadd.f32 %v4432, %v4449
      %v4470 = vadd.f32 %v4433, %v4449
      %v4471 = vadd.f32 %v4434, %v4449
      %v4472 = vadd.f32 %v4435, %v4449
      %v4473 = vadd.f32 %v4436, %v4449
      %v4474 = vadd.f32 %v4437, %v4449
      %v4475 = vadd.f32 %v4438, %v4449
      %v4476 = vadd.f32 %v4439, %v4449
      %v4477 = vadd.f32 %v4440, %v4449
      %v4478 = vadd.f32 %v4441, %v4449
      %v4479 = vadd.f32 %v4442, %v4449
      %v4480 = vadd.f32 %v4443, %v4449
      %v4481 = vadd.f32 %v4444, %v4449
      %v4482 = vmax.f32 %v4450, 0.0
      %v4483 = vmax.f32 %v4451, 0.0
      %v4484 = vmax.f32 %v4452, 0.0
      %v4485 = vmax.f32 %v4453, 0.0
      %v4486 = vmax.f32 %v4454, 0.0
      %v4487 = vmax.f32 %v4455, 0.0
      %v4488 = vmax.f32 %v4456, 0.0
      %v4489 = vmax.f32 %v4457, 0.0
      %v4490 = vmax.f32 %v4458, 0.0
      %v4491 = vmax.f32 %v4459, 0.0
      %v4492 = vmax.f32 %v4460, 0.0
      %v4493 = vmax.f32 %v4461, 0.0
      %v4494 = vmax.f32 %v4462, 0.0
      %v4495 = vmax.f32 %v4463, 0.0
      %v4496 = vmax.f32 %v4464, 0.0
      %v4497 = vmax.f32 %v4465, 0.0
      %v4498 = vmax.f32 %v4466, 0.0
      %v4499 = vmax.f32 %v4467, 0.0
      %v4500 = vmax.f32 %v4468, 0.0
      %v4501 = vmax.f32 %v4469, 0.0
      %v4502 = vmax.f32 %v4470, 0.0
      %v4503 = vmax.f32 %v4471, 0.0
      %v4504 = vmax.f32 %v4472, 0.0
      %v4505 = vmax.f32 %v4473, 0.0
      %v4506 = vmax.f32 %v4474, 0.0
      %v4507 = vmax.f32 %v4475, 0.0
      %v4508 = vmax.f32 %v4476, 0.0
      %v4509 = vmax.f32 %v4477, 0.0
      %v4510 = vmax.f32 %v4478, 0.0
      %v4511 = vmax.f32 %v4479, 0.0
      %v4512 = vmax.f32 %v4480, 0.0
      %v4513 = vmax.f32 %v4481, 0.0
      %v4514 = vpack.c.bf16 %v4483, %v4482
      %v4515 = vpack.c.bf16 %v4485, %v4484
      %v4516 = vpack.c.bf16 %v4487, %v4486
      %v4517 = vpack.c.bf16 %v4489, %v4488
      %v4518 = vpack.c.bf16 %v4491, %v4490
      %v4519 = vpack.c.bf16 %v4493, %v4492
      %v4520 = vpack.c.bf16 %v4495, %v4494
      %v4521 = vpack.c.bf16 %v4497, %v4496
      %v4522 = vpack.c.bf16 %v4499, %v4498
      %v4523 = vpack.c.bf16 %v4501, %v4500
      %v4524 = vpack.c.bf16 %v4503, %v4502
      %v4525 = vpack.c.bf16 %v4505, %v4504
      %v4526 = vpack.c.bf16 %v4507, %v4506
      %v4527 = vpack.c.bf16 %v4509, %v4508
      %v4528 = vpack.c.bf16 %v4511, %v4510
      %v4529 = vpack.c.bf16 %v4513, %v4512
      %v4530 = vld [vmem:[%s3] sm:$0xf]
      %v4531 = vld [vmem:[%s300] sm:$0xf]
      %v4532 = vld [vmem:[%s300 + $0x4] sm:$0xf]
      %v4533 = vld [vmem:[%s300 + $0x8] sm:$0xf]
      %v4534 = vld [vmem:[%s300 + $0xc] sm:$0xf]
      %v4535 = vld [vmem:[%s300 + $0x10] sm:$0xf]
      %v4536 = vld [vmem:[%s300 + $0x14] sm:$0xf]
      %v4537 = vld [vmem:[%s300 + $0x18] sm:$0xf]
      %v4538 = vld [vmem:[%s300 + $0x1c] sm:$0xf]
      %v4539 = vld [vmem:[%s300 + $0x20] sm:$0xf]
      %v4540 = vld [vmem:[%s300 + $0x24] sm:$0xf]
      %v4541 = vld [vmem:[%s300 + $0x28] sm:$0xf]
      %v4542 = vld [vmem:[%s300 + $0x2c] sm:$0xf]
      %v4543 = vld [vmem:[%s300 + $0x30] sm:$0xf]
      %v4544 = vld [vmem:[%s300 + $0x34] sm:$0xf]
      %v4545 = vld [vmem:[%s300 + $0x38] sm:$0xf]
      %v4546 = vld [vmem:[%s300 + $0x3c] sm:$0xf]
      %v4547 = vld [vmem:[%s300 + $0x40] sm:$0xf]
      %v4548 = vld [vmem:[%s300 + $0x44] sm:$0xf]
      %v4549 = vld [vmem:[%s300 + $0x48] sm:$0xf]
      %v4550 = vld [vmem:[%s300 + $0x4c] sm:$0xf]
      %v4551 = vld [vmem:[%s300 + $0x50] sm:$0xf]
      %v4552 = vld [vmem:[%s300 + $0x54] sm:$0xf]
      %v4553 = vld [vmem:[%s300 + $0x58] sm:$0xf]
      %v4554 = vld [vmem:[%s300 + $0x5c] sm:$0xf]
      %v4555 = vld [vmem:[%s300 + $0x60] sm:$0xf]
      %v4556 = vld [vmem:[%s300 + $0x64] sm:$0xf]
      %v4557 = vld [vmem:[%s300 + $0x68] sm:$0xf]
      %v4558 = vld [vmem:[%s300 + $0x6c] sm:$0xf]
      %v4559 = vld [vmem:[%s300 + $0x70] sm:$0xf]
      %v4560 = vld [vmem:[%s300 + $0x74] sm:$0xf]
      %v4561 = vld [vmem:[%s300 + $0x78] sm:$0xf]
      %v4562 = vld [vmem:[%s300 + $0x7c] sm:$0xf]
      %v4563 = vunpack.c.l.bf16 %v4531
      %v4564 = vunpack.c.l.bf16 %v4532
      %v4565 = vunpack.c.l.bf16 %v4533
      %v4566 = vunpack.c.l.bf16 %v4534
      %v4567 = vunpack.c.l.bf16 %v4535
      %v4568 = vunpack.c.l.bf16 %v4536
      %v4569 = vunpack.c.l.bf16 %v4537
      %v4570 = vunpack.c.l.bf16 %v4538
      %v4571 = vunpack.c.l.bf16 %v4539
      %v4572 = vunpack.c.l.bf16 %v4540
      %v4573 = vunpack.c.l.bf16 %v4541
      %v4574 = vunpack.c.l.bf16 %v4542
      %v4575 = vunpack.c.l.bf16 %v4543
      %v4576 = vunpack.c.l.bf16 %v4544
      %v4577 = vunpack.c.l.bf16 %v4545
      %v4578 = vunpack.c.l.bf16 %v4546
      %v4579 = vunpack.c.l.bf16 %v4547
      %v4580 = vunpack.c.l.bf16 %v4548
      %v4581 = vunpack.c.l.bf16 %v4549
      %v4582 = vunpack.c.l.bf16 %v4550
      %v4583 = vunpack.c.l.bf16 %v4551
      %v4584 = vunpack.c.l.bf16 %v4552
      %v4585 = vunpack.c.l.bf16 %v4553
      %v4586 = vunpack.c.l.bf16 %v4554
      %v4587 = vunpack.c.l.bf16 %v4555
      %v4588 = vunpack.c.l.bf16 %v4556
      %v4589 = vunpack.c.l.bf16 %v4557
      %v4590 = vunpack.c.l.bf16 %v4558
      %v4591 = vunpack.c.l.bf16 %v4559
      %v4592 = vunpack.c.l.bf16 %v4560
      %v4593 = vunpack.c.l.bf16 %v4561
      %v4594 = vunpack.c.l.bf16 %v4562
      %vm4595 = vcmask 523264
      %v4596 = vsel %vm4595, %v4563, 0.0
      %v4597 = vsel %vm4595, %v4564, 0.0
      %v4598 = vadd.f32 %v4596, %v4597
      %v4599 = vsel %vm4595, %v4565, 0.0
      %v4600 = vadd.f32 %v4598, %v4599
      %v4601 = vsel %vm4595, %v4566, 0.0
      %v4602 = vadd.f32 %v4600, %v4601
      %v4603 = vsel %vm4595, %v4567, 0.0
      %v4604 = vadd.f32 %v4602, %v4603
      %v4605 = vsel %vm4595, %v4568, 0.0
      %v4606 = vadd.f32 %v4604, %v4605
      %v4607 = vsel %vm4595, %v4569, 0.0
      %v4608 = vadd.f32 %v4606, %v4607
      %v4609 = vsel %vm4595, %v4570, 0.0
      %v4610 = vadd.f32 %v4608, %v4609
      %v4611 = vsel %vm4595, %v4571, 0.0
      %v4612 = vadd.f32 %v4610, %v4611
      %v4613 = vsel %vm4595, %v4572, 0.0
      %v4614 = vadd.f32 %v4612, %v4613
      %v4615 = vsel %vm4595, %v4573, 0.0
      %v4616 = vadd.f32 %v4614, %v4615
      %v4617 = vsel %vm4595, %v4574, 0.0
      %v4618 = vadd.f32 %v4616, %v4617
      %v4619 = vsel %vm4595, %v4575, 0.0
      %v4620 = vadd.f32 %v4618, %v4619
      %v4621 = vsel %vm4595, %v4576, 0.0
      %v4622 = vadd.f32 %v4620, %v4621
      %v4623 = vsel %vm4595, %v4577, 0.0
      %v4624 = vadd.f32 %v4622, %v4623
      %v4625 = vsel %vm4595, %v4578, 0.0
      %v4626 = vadd.f32 %v4624, %v4625
      %v4627 = vsel %vm4595, %v4579, 0.0
      %v4628 = vadd.f32 %v4626, %v4627
      %v4629 = vsel %vm4595, %v4580, 0.0
      %v4630 = vadd.f32 %v4628, %v4629
      %v4631 = vsel %vm4595, %v4581, 0.0
      %v4632 = vadd.f32 %v4630, %v4631
      %v4633 = vsel %vm4595, %v4582, 0.0
      %v4634 = vadd.f32 %v4632, %v4633
      %v4635 = vsel %vm4595, %v4583, 0.0
      %v4636 = vadd.f32 %v4634, %v4635
      %v4637 = vsel %vm4595, %v4584, 0.0
      %v4638 = vadd.f32 %v4636, %v4637
      %v4639 = vsel %vm4595, %v4585, 0.0
      %v4640 = vadd.f32 %v4638, %v4639
      %v4641 = vsel %vm4595, %v4586, 0.0
      %v4642 = vadd.f32 %v4640, %v4641
      %v4643 = vsel %vm4595, %v4587, 0.0
      %v4644 = vadd.f32 %v4642, %v4643
      %v4645 = vsel %vm4595, %v4588, 0.0
      %v4646 = vadd.f32 %v4644, %v4645
      %v4647 = vsel %vm4595, %v4589, 0.0
      %v4648 = vadd.f32 %v4646, %v4647
      %v4649 = vsel %vm4595, %v4590, 0.0
      %v4650 = vadd.f32 %v4648, %v4649
      %v4651 = vsel %vm4595, %v4591, 0.0
      %v4652 = vadd.f32 %v4650, %v4651
      %v4653 = vsel %vm4595, %v4592, 0.0
      %v4654 = vadd.f32 %v4652, %v4653
      %v4655 = vsel %vm4595, %v4593, 0.0
      %v4656 = vadd.f32 %v4654, %v4655
      %v4657 = vsel %vm4595, %v4594, 0.0
      %v4658 = vadd.f32 %v4656, %v4657
      %v4659 = vrot.slane %v4658, 4
      %v4660 = vadd.f32 %v4658, %v4659
      %v4661 = vrot.slane %v4660, 2
      %v4662 = vadd.f32 %v4660, %v4661
      %v4663 = vrot.slane %v4662, 1
      %v4664 = vadd.f32 %v4662, %v4663
      %v4665 = vrcp.pop 256.0
      %v4666 = vmul.f32 %v4664, %v4665
      %v4667 = vpack.c.bf16 %v4666, %v4666
      %v4668 = vld [vmem:[%s2] sm:$0xf]
      %v4669 = vld [vmem:[%s2 + $0x4] sm:$0xf]
      %v4670 = vld [vmem:[%s2 + $0x8] sm:$0xf]
      %v4671 = vld [vmem:[%s2 + $0xc] sm:$0xf]
      %v4672 = vld [vmem:[%s2 + $0x10] sm:$0xf]
      %v4673 = vld [vmem:[%s2 + $0x14] sm:$0xf]
      %v4674 = vld [vmem:[%s2 + $0x18] sm:$0xf]
      %v4675 = vld [vmem:[%s2 + $0x1c] sm:$0xf]
      %v4684 = vunpack.c.l.b16 %v4668
      %v4685 = vunpack.c.l.b16 %v4669
      %v4686 = vunpack.c.l.b16 %v4670
      %v4687 = vunpack.c.l.b16 %v4671
      %v4688 = vunpack.c.l.b16 %v4672
      %v4689 = vunpack.c.l.b16 %v4673
      %v4690 = vunpack.c.l.b16 %v4674
      %v4691 = vunpack.c.l.b16 %v4675
      %v4692 = vpack.c.b16 %v4685, %v4684
      %v4693 = vpack.c.b16 %v4687, %v4686
      %v4694 = vpack.c.b16 %v4689, %v4688
      %v4695 = vpack.c.b16 %v4691, %v4690
      %v4701 = vsel %vm4595, %v4667, 0
      %4703 = vmatprep.subr.bf16.mxu0 0
      %4704 = vmatpush1.bf16.msra.mxu0 0
      %4705 = vmatprep.subr.bf16.mxu0 0
      %4706 = vmatpush1.bf16.msra.mxu0 0
      %4707 = vmatprep.subr.bf16.mxu0 0
      %4708 = vmatpush1.bf16.msra.mxu0 0
      %4709 = vmatprep.subr.bf16.mxu0 0
      %4710 = vmatpush1.bf16.msra.mxu0 0
      %4711 = vmatprep.subr.bf16.mxu0 0
      %4712 = vmatpush1.bf16.msra.mxu0 %v4695
      %4713 = vmatprep.subr.bf16.mxu0 0
      %4714 = vmatpush1.bf16.msra.mxu0 %v4694
      %4715 = vmatprep.subr.bf16.mxu0 0
      %4716 = vmatpush1.bf16.msra.mxu0 %v4693
      %4717 = vmatprep.subr.bf16.mxu0 0
      %4718 = vmatpush1.bf16.msra.mxu0 %v4692
      %4719 = vmatprep.subr.bf16.mxu0 0
      %4720 = vmatpush2.bf16.msra.mxu0 0
      %4721 = vmatprep.subr.bf16.mxu0 0
      %4722 = vmatpush2.bf16.msra.mxu0 0
      %4723 = vmatprep.subr.bf16.mxu0 0
      %4724 = vmatpush2.bf16.msra.mxu0 0
      %4725 = vmatprep.subr.bf16.mxu0 0
      %4726 = vmatpush2.bf16.msra.mxu0 0
      %4727 = vmatprep.subr.bf16.mxu0 0
      %4728 = vmatpush2.bf16.msra.mxu0 0
      %4729 = vmatprep.subr.bf16.mxu0 0
      %4730 = vmatpush2.bf16.msra.mxu0 0
      %4731 = vmatprep.subr.bf16.mxu0 0
      %4732 = vmatpush2.bf16.msra.mxu0 0
      %4733 = vmatprep.subr.bf16.mxu0 0
      %4734 = vmatpush2.bf16.msra.mxu0 0
      %4735 = vmatprep.mubr.bf16.mxu0 0
      %4736 = vmatmul.mubr.bf16.gmra.mxu0 %v4701
      %v4737 = vpop.f32.mrf.mxu0
      %v4738 = vadd.f32 0.0, %v4737
      %v4739 = vpop.f32.mrf.mxu0
      %v4740 = vpop.f32.mrf.mxu0
      %v4741 = vpop.f32.mrf.mxu0
      %4742 = vdwg.mxu0
      %v4743 = vld [vmem:[%s6] sm:$0x1]
      %v4744 = vmul.f32 %v4738, %v4743
      %v4745 = vld [vmem:[%s6 + $0x1] sm:$0x1]
      %v4746 = vadd.f32 %v4744, %v4745
      %v4747 = vmax.f32 %v4746, 0.0
      %v4748 = vld [vmem:[%s4] sm:$0xff]
      %v4749 = vlaneseq
      %v4750 = vshrl.u32 %v4749, 7
      %v4751 = vsub.s32 0, %v4750
      %v4752 = vrot.slane %v4747, %v4751
      %v4753 = vmul.f32 %v4748, %v4752
      %vm4754 = vcmask 64512
      %v4755 = vsel %vm4754, %v4753, 0.0
      %4756 = vadd.xlane.f32.xlu0 %v4755
      %v4757 = vpop.xlane.xlu0 %4756
      %vm4758 = vcmask 261120
      %v4760 = vsel %vm4758, %v4530, 0
      %v4763 = vsel %vm4758, %v4514, 0
      %v4766 = vsel %vm4758, %v4515, 0
      %v4769 = vsel %vm4758, %v4516, 0
      %v4772 = vsel %vm4758, %v4517, 0
      %v4775 = vsel %vm4758, %v4518, 0
      %v4778 = vsel %vm4758, %v4519, 0
      %v4781 = vsel %vm4758, %v4520, 0
      %v4784 = vsel %vm4758, %v4521, 0
      %v4787 = vsel %vm4758, %v4522, 0
      %v4790 = vsel %vm4758, %v4523, 0
      %v4793 = vsel %vm4758, %v4524, 0
      %v4796 = vsel %vm4758, %v4525, 0
      %v4799 = vsel %vm4758, %v4526, 0
      %v4802 = vsel %vm4758, %v4527, 0
      %v4805 = vsel %vm4758, %v4528, 0
      %v4808 = vsel %vm4758, %v4529, 0
      %4810 = vmatprep.subr.bf16.mxu0 0
      %4811 = vmatpush1.bf16.xpose.msra.mxu0 %v4784
      %4812 = vmatprep.subr.bf16.mxu0 0
      %4813 = vmatpush1.bf16.xpose.msra.mxu0 %v4781
      %4814 = vmatprep.subr.bf16.mxu0 0
      %4815 = vmatpush1.bf16.xpose.msra.mxu0 %v4778
      %4816 = vmatprep.subr.bf16.mxu0 0
      %4817 = vmatpush1.bf16.xpose.msra.mxu0 %v4775
      %4818 = vmatprep.subr.bf16.mxu0 0
      %4819 = vmatpush1.bf16.xpose.msra.mxu0 %v4772
      %4820 = vmatprep.subr.bf16.mxu0 0
      %4821 = vmatpush1.bf16.xpose.msra.mxu0 %v4769
      %4822 = vmatprep.subr.bf16.mxu0 0
      %4823 = vmatpush1.bf16.xpose.msra.mxu0 %v4766
      %4824 = vmatprep.subr.bf16.mxu0 0
      %4825 = vmatpush1.bf16.xpose.msra.mxu0 %v4763
      %4826 = vmatprep.subr.bf16.mxu0 0
      %4827 = vmatpush2.bf16.xpose.msra.mxu0 %v4808
      %4828 = vmatprep.subr.bf16.mxu0 0
      %4829 = vmatpush2.bf16.xpose.msra.mxu0 %v4805
      %4830 = vmatprep.subr.bf16.mxu0 0
      %4831 = vmatpush2.bf16.xpose.msra.mxu0 %v4802
      %4832 = vmatprep.subr.bf16.mxu0 0
      %4833 = vmatpush2.bf16.xpose.msra.mxu0 %v4799
      %4834 = vmatprep.subr.bf16.mxu0 0
      %4835 = vmatpush2.bf16.xpose.msra.mxu0 %v4796
      %4836 = vmatprep.subr.bf16.mxu0 0
      %4837 = vmatpush2.bf16.xpose.msra.mxu0 %v4793
      %4838 = vmatprep.subr.bf16.mxu0 0
      %4839 = vmatpush2.bf16.xpose.msra.mxu0 %v4790
      %4840 = vmatprep.subr.bf16.mxu0 0
      %4841 = vmatpush2.bf16.xpose.msra.mxu0 %v4787
      %4842 = vmatprep.mubr.bf16.mxu0 0
      %4843 = vmatmul.mubr.bf16.gmra.mxu0 %v4760
      %v4844 = vpop.f32.mrf.mxu0
      %v4845 = vadd.f32 %v4757, %v4844
      %v4846 = vpop.f32.mrf.mxu0
      %v4847 = vadd.f32 %v4757, %v4846
      %v4848 = vpop.f32.mrf.mxu0
      %v4849 = vpop.f32.mrf.mxu0
      %4850 = vdwg.mxu0
      %v4851 = vld [vmem:[%s7] sm:$0xff]
      %4853 = vset.pattern.permute.xlu0 0
      %4854 = vperm.xlu0 %4853, %v4851
      %v4855 = vpop.permute.xlu0 %4854
      %v4857 = vmul.f32 %v4845, %v4855
      %v4858 = vmul.f32 %v4847, %v4855
      %4859 = vset.pattern.permute.xlu0 1
      %4860 = vperm.xlu0 %4859, %v4851
      %v4861 = vpop.permute.xlu0 %4860
      %v4863 = vadd.f32 %v4857, %v4861
      %v4864 = vadd.f32 %v4858, %v4861
      %v4865 = vmax.f32 %v4863, 0.0
      %v4866 = vmax.f32 %v4864, 0.0
      %4867 = vst [vmem:[%s305] sm:$0xff] %v4865
      %4868 = vst [vmem:[%s305 + $0x8] sm:$0xff] %v4866
      %p4869 = scmp.lt.s32.totalorder %s19, 1
      %s4870 = scalar_select %p4869, %s19, 1
      %s4871 = smul.addr %s4870, 2
      %s4872 = smul.addr %s4871, 8
      %s4873 = scalar_lea.vmem %s8, %s4872
      // Predicated region
      $region53: #{aspp_forward.1} parent=51 // pred_check
        %p4874 = pneg %p210
      $region54: #{aspp_forward.1} parent=51 // pred_check_branch
        %4876 = sbr.rel (%p4874) target = $region56
      $region55: #{aspp_forward.1} parent=51 // pred_region
        _
      $region56: #{aspp_forward.1} parent=51 // pred_fallthru
        _
    $region52: #{aspp_forward.1} parent=5 // pred_fallthru
      _
    %p4877 = scmp.le.s32.totalorder 2, %s14
    // Predicated region
    $region57: #{aspp_forward.1} parent=5 // pred_check
      %p4878 = pneg %p4877
    $region58: #{aspp_forward.1} parent=5 // pred_check_branch
      %4880 = sbr.rel (%p4878) target = $region60
    $region59: #{aspp_forward.1} parent=5 // pred_region
      %s4881 = ssub.s32 %s14, 2
      // Predicated region
      $region61: #{aspp_forward.1} parent=59 // pred_check
        %p4882 = pneg %p216
      $region62: #{aspp_forward.1} parent=59 // pred_check_branch
        %4884 = sbr.rel (%p4882) target = $region64
      $region63: #{aspp_forward.1} parent=59 // pred_region
        %p4885 = scmp.lt.s32.totalorder %s20, 1
        %s4886 = scalar_select %p4885, %s20, 1
        %s4887 = smul.addr %s4886, 2
        %s4888 = smul.addr %s4887, 8
        %s4889 = scalar_lea.vmem %s8, %s4888
      $region64: #{aspp_forward.1} parent=59 // pred_fallthru
        _
    $region60: #{aspp_forward.1} parent=5 // pred_fallthru
      _
  $region6: #{aspp_forward.1} parent=0 // loop_footer
    %s18 = sadd.s32 1, %s14
  $region7: #{aspp_forward.1} parent=0 // loop_footer_branch
    %13 = sbr.rel target = $region3
  $region8: #{aspp_forward.1} parent=0 // loop_exit
    _

</llo_original>
